<compile_context>
chip_gen: v7x
topology: tpu7x:2x2x1
jax: 0.10.0
libtpu: 0.0.40
codegen_flags: <defaults>
</compile_context>

<pallas_src>
import functools

import jax
import jax.numpy as jnp
import numpy as np
from jax.experimental import pallas as pl
from jax.experimental.pallas import tpu as pltpu


def sketch_rnn_kernel(
    gx_ref,     # [CT, Bt, 4H] f32  precomputed input-side gates (time chunk)
    len_ref,    # [Bt, 1]      i32  sequence lengths for this batch tile
    whh0_ref,   # [H, 4H]      f32  layer-0 recurrent weights (i,f,o,g)
    wih1_ref,   # [H, 4H]      f32  layer-1 input weights
    whh1_ref,   # [H, 4H]      f32  layer-1 recurrent weights
    b1_ref,     # [1, 4H]      f32  layer-1 combined bias
    clsw_ref,   # [H, Cp]      f32  classifier weights (lane-padded)
    clsb_ref,   # [1, Cp]      f32  classifier bias
    out_ref,    # [Bt, Cp]     f32  logits (written at last time chunk)
    h0_ref, c0_ref, h1_ref, c1_ref,   # VMEM scratch [Bt, H] f32 (persistent)
):
    t_chunk = pl.program_id(1)
    n_chunks = pl.num_programs(1)
    CT = gx_ref.shape[0]
    Bt = gx_ref.shape[1]
    H = whh0_ref.shape[0]

    @pl.when(t_chunk == 0)
    def _():
        h0_ref[...] = jnp.zeros_like(h0_ref)
        c0_ref[...] = jnp.zeros_like(c0_ref)
        h1_ref[...] = jnp.zeros_like(h1_ref)
        c1_ref[...] = jnp.zeros_like(c1_ref)

    whh0 = whh0_ref[...]
    wih1 = wih1_ref[...]
    whh1 = whh1_ref[...]
    # hoisted broadcasts (JAX does not CSE broadcast_in_dim inside the loop)
    b1 = jnp.broadcast_to(b1_ref[...], (Bt, 4 * H))
    len_bc = jnp.broadcast_to(len_ref[...], (Bt, H))
    t0 = t_chunk * CT

    def gate_act(g):
        # gate order (i, f, o, g): one sigmoid slab + one tanh slab
        sig = jax.nn.sigmoid(g[:, : 3 * H])
        gg = jnp.tanh(g[:, 3 * H :])
        return sig[:, :H], sig[:, H : 2 * H], sig[:, 2 * H : 3 * H], gg

    def step(s, carry):
        h0, c0, h1, c1 = carry
        # layer-1 recurrent matmul does not depend on h0n: issue it first so
        # it overlaps layer-0's matmul + activations on the serial chain.
        r1 = jnp.dot(h1, whh1, preferred_element_type=jnp.float32)
        # layer 0: input-side gates precomputed; single recurrent matmul
        g0 = gx_ref[s] + jnp.dot(h0, whh0, preferred_element_type=jnp.float32)
        i0, f0, o0, gg0 = gate_act(g0)
        c0 = f0 * c0 + i0 * gg0
        h0 = o0 * jnp.tanh(c0)
        # layer 1 (inter-layer dropout = identity in eval mode)
        g1 = jnp.dot(h0, wih1, preferred_element_type=jnp.float32) + r1 + b1
        i1, f1, o1, gg1 = gate_act(g1)
        c1 = f1 * c1 + i1 * gg1
        h1n = o1 * jnp.tanh(c1)
        # packed-sequence semantics: only h1 (-> h_n[-1]) needs freezing;
        # frozen rows' h0/c0/c1 never feed the returned logits.
        valid = (t0 + s) < len_bc
        h1 = jnp.where(valid, h1n, h1)
        return (h0, c0, h1, c1)

    carry = (h0_ref[...], c0_ref[...], h1_ref[...], c1_ref[...])
    h0, c0, h1, c1 = jax.lax.fori_loop(0, CT, step, carry, unroll=True)
    h0_ref[...] = h0
    c0_ref[...] = c0
    h1_ref[...] = h1
    c1_ref[...] = c1

    @pl.when(t_chunk == n_chunks - 1)
    def _():
        # classifier (Dropout is identity in eval mode) on h_n[-1] == h1
        out_ref[...] = (
            jnp.dot(h1, clsw_ref[...], preferred_element_type=jnp.float32)
            + clsb_ref[...]
        )


def _round_up(n, m):
    return ((n + m - 1) // m) * m


def init_params(key, input_dim=3, hidden_dim=32, num_classes=20):
    """Deterministic synthetic parameters (PyTorch-like uniform init).

    Stored transposed relative to PyTorch, gate order (i, f, g, o),
    combined bias = b_ih + b_hh.
    """
    ks = jax.random.split(key, 12)
    H, D, C = hidden_dim, input_dim, num_classes

    def u(k, shape, fan_in):
        bound = 1.0 / np.sqrt(fan_in)
        return jax.random.uniform(k, shape, jnp.float32, -bound, bound)

    return dict(
        emb_w=u(ks[0], (D, H), D),
        emb_b=u(ks[1], (1, H), D),
        wih0=u(ks[2], (H, 4 * H), H),
        whh0=u(ks[3], (H, 4 * H), H),
        b0=u(ks[4], (1, 4 * H), H) + u(ks[5], (1, 4 * H), H),
        wih1=u(ks[6], (H, 4 * H), H),
        whh1=u(ks[7], (H, 4 * H), H),
        b1=u(ks[8], (1, 4 * H), H) + u(ks[9], (1, 4 * H), H),
        cls_w=u(ks[10], (H, C), H),
        cls_b=u(ks[11], (1, C), H),
    )


@functools.partial(
    jax.jit, static_argnames=("num_classes", "time_chunk", "batch_tile")
)
def sketch_rnn_forward(x, lengths, params, num_classes=20,
                       time_chunk=16, batch_tile=256):
    """x: [B, T, 3] f32, lengths: [B] int.  Returns logits [B, num_classes]."""
    B, T, D = x.shape
    H = params["whh0"].shape[0]

    Bt = min(_round_up(batch_tile, 8), _round_up(max(B, 8), 8))
    Bp = _round_up(B, Bt)                         # padded batch, Bp % Bt == 0
    CT = max(1, min(time_chunk, T))               # inner (unrolled) chunk
    Tp = _round_up(T, CT)
    Cp = _round_up(max(num_classes, 128), 128)    # lane-dense classifier out
    nb, nt = Bp // Bt, Tp // CT

    # ---- parameter folding / packing (pure layout plumbing, plain XLA) ----
    def reorder(w):  # gate columns (i,f,g,o) -> (i,f,o,g) along last axis
        i, f, g, o = jnp.split(w, 4, axis=-1)
        return jnp.concatenate([i, f, o, g], axis=-1)

    wih0 = reorder(params["wih0"])
    whh0 = reorder(params["whh0"])
    b0 = reorder(params["b0"])
    wih1 = reorder(params["wih1"])
    whh1 = reorder(params["whh1"])
    b1 = reorder(params["b1"])

    # fold the embedding Linear into layer-0's input weights and precompute
    # ALL input-side gate work outside the kernel (one big XLA matmul)
    w0x = params["emb_w"] @ wih0                          # [3, 4H]
    bx0 = params["emb_b"] @ wih0 + b0                     # [1, 4H]
    gx = jnp.einsum("btd,dg->btg", x.astype(jnp.float32), w0x) + bx0  # [B,T,4H]
    gx_tm = jnp.zeros((Tp, Bp, 4 * H), jnp.float32)
    gx_tm = gx_tm.at[:T, :B].set(jnp.transpose(gx, (1, 0, 2)))  # time-major

    clsw = jnp.zeros((H, Cp), jnp.float32).at[:, :num_classes].set(params["cls_w"])
    clsb = jnp.zeros((1, Cp), jnp.float32).at[:, :num_classes].set(params["cls_b"])
    len_p = jnp.zeros((Bp, 1), jnp.int32).at[:B, 0].set(lengths.astype(jnp.int32))

    out = pl.pallas_call(
        sketch_rnn_kernel,
        out_shape=jax.ShapeDtypeStruct((Bp, Cp), jnp.float32),
        grid_spec=pltpu.PrefetchScalarGridSpec(
            num_scalar_prefetch=0,
            grid=(nb, nt),
            in_specs=[
                pl.BlockSpec((CT, Bt, 4 * H), lambda b, t: (t, b, 0)),  # gx
                pl.BlockSpec((Bt, 1), lambda b, t: (b, 0)),             # lengths
                pl.BlockSpec((H, 4 * H), lambda b, t: (0, 0)),          # whh0
                pl.BlockSpec((H, 4 * H), lambda b, t: (0, 0)),          # wih1
                pl.BlockSpec((H, 4 * H), lambda b, t: (0, 0)),          # whh1
                pl.BlockSpec((1, 4 * H), lambda b, t: (0, 0)),          # b1
                pl.BlockSpec((H, Cp), lambda b, t: (0, 0)),             # cls_w
                pl.BlockSpec((1, Cp), lambda b, t: (0, 0)),             # cls_b
            ],
            out_specs=pl.BlockSpec((Bt, Cp), lambda b, t: (b, 0)),
            scratch_shapes=[pltpu.VMEM((Bt, H), jnp.float32)] * 4,
        ),
        compiler_params=pltpu.CompilerParams(
            dimension_semantics=("parallel", "arbitrary"),
            vmem_limit_bytes=32 * 1024 * 1024,
        ),
    )(gx_tm, len_p, whh0, wih1, whh1, b1, clsw, clsb)
    return out[:B, :num_classes]


def sketch_rnn_reference(x, lengths, params):
    """Pure-JAX reference mirroring the PyTorch forward semantics."""
    B, T, D = x.shape
    H = params["whh0"].shape[0]

    def cell(x_t, h, c, wih, whh, b):
        g = x_t @ wih + h @ whh + b
        i = jax.nn.sigmoid(g[:, 0 * H : 1 * H])
        f = jax.nn.sigmoid(g[:, 1 * H : 2 * H])
        gg = jnp.tanh(g[:, 2 * H : 3 * H])
        o = jax.nn.sigmoid(g[:, 3 * H : 4 * H])
        c = f * c + i * gg
        return o * jnp.tanh(c), c

    emb = x @ params["emb_w"] + params["emb_b"]               # [B, T, H]
    z = jnp.zeros((B, H), jnp.float32)
    h0 = c0 = h1 = c1 = z
    for t in range(T):
        h0n, c0n = cell(emb[:, t], h0, c0, params["wih0"], params["whh0"], params["b0"])
        h1n, c1n = cell(h0n, h1, c1, params["wih1"], params["whh1"], params["b1"])
        valid = (t < lengths).reshape(B, 1)
        h0 = jnp.where(valid, h0n, h0)
        c0 = jnp.where(valid, c0n, c0)
        h1 = jnp.where(valid, h1n, h1)
        c1 = jnp.where(valid, c1n, c1)
    return h1 @ params["cls_w"] + params["cls_b"]


if __name__ == "__main__":
    B, T, D = 2, 16, 3
    H, C = 32, 20

    key = jax.random.PRNGKey(0)
    kx, kp = jax.random.split(key)
    x = jax.random.normal(kx, (B, T, D), jnp.float32)
    lengths = jnp.array([T, 11], dtype=jnp.int32)   # variable, unsorted ok

    params = init_params(kp, input_dim=D, hidden_dim=H, num_classes=C)

    logits = sketch_rnn_forward(x, lengths, params, num_classes=C, time_chunk=8)
    logits = jax.block_until_ready(logits)

    ref = sketch_rnn_reference(x, lengths, params)
    # tolerance slightly loosened: emb->wih0 folding changes fp associativity
    np.testing.assert_allclose(np.asarray(logits), np.asarray(ref),
                               rtol=1e-4, atol=1e-4)
    assert logits.shape == (B, C)
    print("KERNEL_OK")
</pallas_src>

<mosaic_0001>
module attributes {stable_mosaic.version = 11 : i64} {
  func.func @sketch_rnn_kernel(%arg0: i32, %arg1: i32, %arg2: memref<8x8x128xf32, #tpu.memory_space<vmem>>, %arg3: memref<8x1xi32, #tpu.memory_space<vmem>>, %arg4: memref<32x128xf32, #tpu.memory_space<vmem>>, %arg5: memref<32x128xf32, #tpu.memory_space<vmem>>, %arg6: memref<32x128xf32, #tpu.memory_space<vmem>>, %arg7: memref<1x128xf32, #tpu.memory_space<vmem>>, %arg8: memref<32x128xf32, #tpu.memory_space<vmem>>, %arg9: memref<1x128xf32, #tpu.memory_space<vmem>>, %arg10: memref<8x128xf32, #tpu.memory_space<vmem>>, %arg11: memref<8x32xf32, #tpu.memory_space<vmem>>, %arg12: memref<8x32xf32, #tpu.memory_space<vmem>>, %arg13: memref<8x32xf32, #tpu.memory_space<vmem>>, %arg14: memref<8x32xf32, #tpu.memory_space<vmem>>) attributes {dimension_semantics = [#tpu.dimension_semantics<parallel>, #tpu.dimension_semantics<arbitrary>], iteration_bounds = array<i64: 1, 2>, scalar_prefetch = 0 : i64, scratch_operands = 4 : i64, tpu.core_type = #tpu.core_type<tc>, window_params = [{transform_indices = @transform_0, window_bounds = array<i64: 8, 8, 128>}, {transform_indices = @transform_1, window_bounds = array<i64: 8, 1>}, {pipeline_mode = #tpu.pipeline_mode<synchronous>, transform_indices = @transform_2, window_bounds = array<i64: 32, 128>}, {pipeline_mode = #tpu.pipeline_mode<synchronous>, transform_indices = @transform_3, window_bounds = array<i64: 32, 128>}, {pipeline_mode = #tpu.pipeline_mode<synchronous>, transform_indices = @transform_4, window_bounds = array<i64: 32, 128>}, {pipeline_mode = #tpu.pipeline_mode<synchronous>, transform_indices = @transform_5, window_bounds = array<i64: 1, 128>}, {pipeline_mode = #tpu.pipeline_mode<synchronous>, transform_indices = @transform_6, window_bounds = array<i64: 32, 128>}, {pipeline_mode = #tpu.pipeline_mode<synchronous>, transform_indices = @transform_7, window_bounds = array<i64: 1, 128>}, {transform_indices = @transform_8, window_bounds = array<i64: 8, 128>}]} {
    %c0_i32 = arith.constant 0 : i32
    %0 = arith.cmpi eq, %arg1, %c0_i32 : i32
    %1 = arith.extui %0 : i1 to i32
    %c0_i32_0 = arith.constant 0 : i32
    %2 = arith.cmpi ne, %1, %c0_i32_0 : i32
    scf.if %2 {
      %cst_85 = arith.constant 0.000000e+00 : f32
      %384 = vector.broadcast %cst_85 : f32 to vector<8x32xf32>
      %c0_86 = arith.constant 0 : index
      %c0_87 = arith.constant 0 : index
      %385 = vector.load %arg11[%c0_86, %c0_87] : memref<8x32xf32, #tpu.memory_space<vmem>>, vector<8x32xf32>
      tpu.vector_store %arg11[%c0_86, %c0_87], %384 {strides = array<i32>} : memref<8x32xf32, #tpu.memory_space<vmem>>, vector<8x32xf32>,
      %cst_88 = arith.constant 0.000000e+00 : f32
      %386 = vector.broadcast %cst_88 : f32 to vector<8x32xf32>
      %c0_89 = arith.constant 0 : index
      %c0_90 = arith.constant 0 : index
      %387 = vector.load %arg12[%c0_89, %c0_90] : memref<8x32xf32, #tpu.memory_space<vmem>>, vector<8x32xf32>
      tpu.vector_store %arg12[%c0_89, %c0_90], %386 {strides = array<i32>} : memref<8x32xf32, #tpu.memory_space<vmem>>, vector<8x32xf32>,
      %cst_91 = arith.constant 0.000000e+00 : f32
      %388 = vector.broadcast %cst_91 : f32 to vector<8x32xf32>
      %c0_92 = arith.constant 0 : index
      %c0_93 = arith.constant 0 : index
      %389 = vector.load %arg13[%c0_92, %c0_93] : memref<8x32xf32, #tpu.memory_space<vmem>>, vector<8x32xf32>
      tpu.vector_store %arg13[%c0_92, %c0_93], %388 {strides = array<i32>} : memref<8x32xf32, #tpu.memory_space<vmem>>, vector<8x32xf32>,
      %cst_94 = arith.constant 0.000000e+00 : f32
      %390 = vector.broadcast %cst_94 : f32 to vector<8x32xf32>
      %c0_95 = arith.constant 0 : index
      %c0_96 = arith.constant 0 : index
      %391 = vector.load %arg14[%c0_95, %c0_96] : memref<8x32xf32, #tpu.memory_space<vmem>>, vector<8x32xf32>
      tpu.vector_store %arg14[%c0_95, %c0_96], %390 {strides = array<i32>} : memref<8x32xf32, #tpu.memory_space<vmem>>, vector<8x32xf32>,
    } else {
    }
    %c0 = arith.constant 0 : index
    %c0_1 = arith.constant 0 : index
    %3 = vector.load %arg4[%c0, %c0_1] : memref<32x128xf32, #tpu.memory_space<vmem>>, vector<32x128xf32>
    %c0_2 = arith.constant 0 : index
    %c0_3 = arith.constant 0 : index
    %4 = vector.load %arg5[%c0_2, %c0_3] : memref<32x128xf32, #tpu.memory_space<vmem>>, vector<32x128xf32>
    %c0_4 = arith.constant 0 : index
    %c0_5 = arith.constant 0 : index
    %5 = vector.load %arg6[%c0_4, %c0_5] : memref<32x128xf32, #tpu.memory_space<vmem>>, vector<32x128xf32>
    %c0_6 = arith.constant 0 : index
    %c0_7 = arith.constant 0 : index
    %6 = vector.load %arg7[%c0_6, %c0_7] : memref<1x128xf32, #tpu.memory_space<vmem>>, vector<1x128xf32>
    %7 = vector.shape_cast %6 : vector<1x128xf32> to vector<1x128xf32>
    %8 = vector.broadcast %7 : vector<1x128xf32> to vector<8x128xf32>
    %c0_8 = arith.constant 0 : index
    %c0_9 = arith.constant 0 : index
    %9 = vector.load %arg3[%c0_8, %c0_9] : memref<8x1xi32, #tpu.memory_space<vmem>>, vector<8x1xi32>
    %10 = vector.shape_cast %9 : vector<8x1xi32> to vector<8x1xi32>
    %11 = vector.broadcast %10 : vector<8x1xi32> to vector<8x32xi32>
    %c8_i32 = arith.constant 8 : i32
    %12 = arith.muli %arg1, %c8_i32 : i32
    %c0_10 = arith.constant 0 : index
    %c0_11 = arith.constant 0 : index
    %13 = vector.load %arg11[%c0_10, %c0_11] : memref<8x32xf32, #tpu.memory_space<vmem>>, vector<8x32xf32>
    %c0_12 = arith.constant 0 : index
    %c0_13 = arith.constant 0 : index
    %14 = vector.load %arg12[%c0_12, %c0_13] : memref<8x32xf32, #tpu.memory_space<vmem>>, vector<8x32xf32>
    %c0_14 = arith.constant 0 : index
    %c0_15 = arith.constant 0 : index
    %15 = vector.load %arg13[%c0_14, %c0_15] : memref<8x32xf32, #tpu.memory_space<vmem>>, vector<8x32xf32>
    %c0_16 = arith.constant 0 : index
    %c0_17 = arith.constant 0 : index
    %16 = vector.load %arg14[%c0_16, %c0_17] : memref<8x32xf32, #tpu.memory_space<vmem>>, vector<8x32xf32>
    %c0_i32_18 = arith.constant 0 : i32
    %cst = arith.constant dense<0.000000e+00> : vector<8x128xf32>
    %17 = tpu.matmul %15, %5, %cst {dimension_numbers = #tpu.dot_dimension_numbers<[1], [0], [0], [1], [0, 0, 1, 1], [], []>} : vector<8x32xf32>, vector<32x128xf32>, vector<8x128xf32> -> vector<8x128xf32>
    %18 = arith.index_cast %c0_i32_18 : i32 to index
    %c0_19 = arith.constant 0 : index
    %c0_20 = arith.constant 0 : index
    %19 = vector.load %arg2[%18, %c0_19, %c0_20] : memref<8x8x128xf32, #tpu.memory_space<vmem>>, vector<1x8x128xf32>
    %20 = vector.shape_cast %19 : vector<1x8x128xf32> to vector<8x128xf32>
    %cst_21 = arith.constant dense<0.000000e+00> : vector<8x128xf32>
    %21 = tpu.matmul %13, %3, %cst_21 {dimension_numbers = #tpu.dot_dimension_numbers<[1], [0], [0], [1], [0, 0, 1, 1], [], []>} : vector<8x32xf32>, vector<32x128xf32>, vector<8x128xf32> -> vector<8x128xf32>
    %22 = arith.addf %20, %21 : vector<8x128xf32>
    %23 = vector.extract_strided_slice %22 {offsets = [0, 0], sizes = [8, 96], strides = [1, 1]} : vector<8x128xf32> to vector<8x96xf32>
    %24 = arith.negf %23 : vector<8x96xf32>
    %25 = math.exp %24 : vector<8x96xf32>
    %cst_22 = arith.constant 1.000000e+00 : f32
    %26 = vector.broadcast %cst_22 : f32 to vector<8x96xf32>
    %27 = arith.addf %26, %25 : vector<8x96xf32>
    %28 = arith.divf %26, %27 : vector<8x96xf32>
    %29 = vector.extract_strided_slice %22 {offsets = [0, 96], sizes = [8, 32], strides = [1, 1]} : vector<8x128xf32> to vector<8x32xf32>
    %30 = math.tanh %29 : vector<8x32xf32>
    %31 = vector.extract_strided_slice %28 {offsets = [0, 0], sizes = [8, 32], strides = [1, 1]} : vector<8x96xf32> to vector<8x32xf32>
    %32 = vector.extract_strided_slice %28 {offsets = [0, 32], sizes = [8, 32], strides = [1, 1]} : vector<8x96xf32> to vector<8x32xf32>
    %33 = vector.extract_strided_slice %28 {offsets = [0, 64], sizes = [8, 32], strides = [1, 1]} : vector<8x96xf32> to vector<8x32xf32>
    %34 = arith.mulf %32, %14 : vector<8x32xf32>
    %35 = arith.mulf %31, %30 : vector<8x32xf32>
    %36 = arith.addf %34, %35 : vector<8x32xf32>
    %37 = math.tanh %36 : vector<8x32xf32>
    %38 = arith.mulf %33, %37 : vector<8x32xf32>
    %cst_23 = arith.constant dense<0.000000e+00> : vector<8x128xf32>
    %39 = tpu.matmul %38, %4, %cst_23 {dimension_numbers = #tpu.dot_dimension_numbers<[1], [0], [0], [1], [0, 0, 1, 1], [], []>} : vector<8x32xf32>, vector<32x128xf32>, vector<8x128xf32> -> vector<8x128xf32>
    %40 = arith.addf %39, %17 : vector<8x128xf32>
    %41 = arith.addf %40, %8 : vector<8x128xf32>
    %42 = vector.extract_strided_slice %41 {offsets = [0, 0], sizes = [8, 96], strides = [1, 1]} : vector<8x128xf32> to vector<8x96xf32>
    %43 = arith.negf %42 : vector<8x96xf32>
    %44 = math.exp %43 : vector<8x96xf32>
    %cst_24 = arith.constant 1.000000e+00 : f32
    %45 = vector.broadcast %cst_24 : f32 to vector<8x96xf32>
    %46 = arith.addf %45, %44 : vector<8x96xf32>
    %47 = arith.divf %45, %46 : vector<8x96xf32>
    %48 = vector.extract_strided_slice %41 {offsets = [0, 96], sizes = [8, 32], strides = [1, 1]} : vector<8x128xf32> to vector<8x32xf32>
    %49 = math.tanh %48 : vector<8x32xf32>
    %50 = vector.extract_strided_slice %47 {offsets = [0, 0], sizes = [8, 32], strides = [1, 1]} : vector<8x96xf32> to vector<8x32xf32>
    %51 = vector.extract_strided_slice %47 {offsets = [0, 32], sizes = [8, 32], strides = [1, 1]} : vector<8x96xf32> to vector<8x32xf32>
    %52 = vector.extract_strided_slice %47 {offsets = [0, 64], sizes = [8, 32], strides = [1, 1]} : vector<8x96xf32> to vector<8x32xf32>
    %53 = arith.mulf %51, %16 : vector<8x32xf32>
    %54 = arith.mulf %50, %49 : vector<8x32xf32>
    %55 = arith.addf %53, %54 : vector<8x32xf32>
    %56 = math.tanh %55 : vector<8x32xf32>
    %57 = arith.mulf %52, %56 : vector<8x32xf32>
    %58 = arith.addi %12, %c0_i32_18 : i32
    %59 = vector.broadcast %58 : i32 to vector<8x32xi32>
    %60 = arith.cmpi slt, %59, %11 : vector<8x32xi32>
    %61 = arith.select %60, %57, %15 : vector<8x32xi1>, vector<8x32xf32>
    %c1_i32 = arith.constant 1 : i32
    %cst_25 = arith.constant dense<0.000000e+00> : vector<8x128xf32>
    %62 = tpu.matmul %61, %5, %cst_25 {dimension_numbers = #tpu.dot_dimension_numbers<[1], [0], [0], [1], [0, 0, 1, 1], [], []>} : vector<8x32xf32>, vector<32x128xf32>, vector<8x128xf32> -> vector<8x128xf32>
    %63 = arith.index_cast %c1_i32 : i32 to index
    %c0_26 = arith.constant 0 : index
    %c0_27 = arith.constant 0 : index
    %64 = vector.load %arg2[%63, %c0_26, %c0_27] : memref<8x8x128xf32, #tpu.memory_space<vmem>>, vector<1x8x128xf32>
    %65 = vector.shape_cast %64 : vector<1x8x128xf32> to vector<8x128xf32>
    %cst_28 = arith.constant dense<0.000000e+00> : vector<8x128xf32>
    %66 = tpu.matmul %38, %3, %cst_28 {dimension_numbers = #tpu.dot_dimension_numbers<[1], [0], [0], [1], [0, 0, 1, 1], [], []>} : vector<8x32xf32>, vector<32x128xf32>, vector<8x128xf32> -> vector<8x128xf32>
    %67 = arith.addf %65, %66 : vector<8x128xf32>
    %68 = vector.extract_strided_slice %67 {offsets = [0, 0], sizes = [8, 96], strides = [1, 1]} : vector<8x128xf32> to vector<8x96xf32>
    %69 = arith.negf %68 : vector<8x96xf32>
    %70 = math.exp %69 : vector<8x96xf32>
    %cst_29 = arith.constant 1.000000e+00 : f32
    %71 = vector.broadcast %cst_29 : f32 to vector<8x96xf32>
    %72 = arith.addf %71, %70 : vector<8x96xf32>
    %73 = arith.divf %71, %72 : vector<8x96xf32>
    %74 = vector.extract_strided_slice %67 {offsets = [0, 96], sizes = [8, 32], strides = [1, 1]} : vector<8x128xf32> to vector<8x32xf32>
    %75 = math.tanh %74 : vector<8x32xf32>
    %76 = vector.extract_strided_slice %73 {offsets = [0, 0], sizes = [8, 32], strides = [1, 1]} : vector<8x96xf32> to vector<8x32xf32>
    %77 = vector.extract_strided_slice %73 {offsets = [0, 32], sizes = [8, 32], strides = [1, 1]} : vector<8x96xf32> to vector<8x32xf32>
    %78 = vector.extract_strided_slice %73 {offsets = [0, 64], sizes = [8, 32], strides = [1, 1]} : vector<8x96xf32> to vector<8x32xf32>
    %79 = arith.mulf %77, %36 : vector<8x32xf32>
    %80 = arith.mulf %76, %75 : vector<8x32xf32>
    %81 = arith.addf %79, %80 : vector<8x32xf32>
    %82 = math.tanh %81 : vector<8x32xf32>
    %83 = arith.mulf %78, %82 : vector<8x32xf32>
    %cst_30 = arith.constant dense<0.000000e+00> : vector<8x128xf32>
    %84 = tpu.matmul %83, %4, %cst_30 {dimension_numbers = #tpu.dot_dimension_numbers<[1], [0], [0], [1], [0, 0, 1, 1], [], []>} : vector<8x32xf32>, vector<32x128xf32>, vector<8x128xf32> -> vector<8x128xf32>
    %85 = arith.addf %84, %62 : vector<8x128xf32>
    %86 = arith.addf %85, %8 : vector<8x128xf32>
    %87 = vector.extract_strided_slice %86 {offsets = [0, 0], sizes = [8, 96], strides = [1, 1]} : vector<8x128xf32> to vector<8x96xf32>
    %88 = arith.negf %87 : vector<8x96xf32>
    %89 = math.exp %88 : vector<8x96xf32>
    %cst_31 = arith.constant 1.000000e+00 : f32
    %90 = vector.broadcast %cst_31 : f32 to vector<8x96xf32>
    %91 = arith.addf %90, %89 : vector<8x96xf32>
    %92 = arith.divf %90, %91 : vector<8x96xf32>
    %93 = vector.extract_strided_slice %86 {offsets = [0, 96], sizes = [8, 32], strides = [1, 1]} : vector<8x128xf32> to vector<8x32xf32>
    %94 = math.tanh %93 : vector<8x32xf32>
    %95 = vector.extract_strided_slice %92 {offsets = [0, 0], sizes = [8, 32], strides = [1, 1]} : vector<8x96xf32> to vector<8x32xf32>
    %96 = vector.extract_strided_slice %92 {offsets = [0, 32], sizes = [8, 32], strides = [1, 1]} : vector<8x96xf32> to vector<8x32xf32>
    %97 = vector.extract_strided_slice %92 {offsets = [0, 64], sizes = [8, 32], strides = [1, 1]} : vector<8x96xf32> to vector<8x32xf32>
    %98 = arith.mulf %96, %55 : vector<8x32xf32>
    %99 = arith.mulf %95, %94 : vector<8x32xf32>
    %100 = arith.addf %98, %99 : vector<8x32xf32>
    %101 = math.tanh %100 : vector<8x32xf32>
    %102 = arith.mulf %97, %101 : vector<8x32xf32>
    %103 = arith.addi %12, %c1_i32 : i32
    %104 = vector.broadcast %103 : i32 to vector<8x32xi32>
    %105 = arith.cmpi slt, %104, %11 : vector<8x32xi32>
    %106 = arith.select %105, %102, %61 : vector<8x32xi1>, vector<8x32xf32>
    %c2_i32 = arith.constant 2 : i32
    %cst_32 = arith.constant dense<0.000000e+00> : vector<8x128xf32>
    %107 = tpu.matmul %106, %5, %cst_32 {dimension_numbers = #tpu.dot_dimension_numbers<[1], [0], [0], [1], [0, 0, 1, 1], [], []>} : vector<8x32xf32>, vector<32x128xf32>, vector<8x128xf32> -> vector<8x128xf32>
    %108 = arith.index_cast %c2_i32 : i32 to index
    %c0_33 = arith.constant 0 : index
    %c0_34 = arith.constant 0 : index
    %109 = vector.load %arg2[%108, %c0_33, %c0_34] : memref<8x8x128xf32, #tpu.memory_space<vmem>>, vector<1x8x128xf32>
    %110 = vector.shape_cast %109 : vector<1x8x128xf32> to vector<8x128xf32>
    %cst_35 = arith.constant dense<0.000000e+00> : vector<8x128xf32>
    %111 = tpu.matmul %83, %3, %cst_35 {dimension_numbers = #tpu.dot_dimension_numbers<[1], [0], [0], [1], [0, 0, 1, 1], [], []>} : vector<8x32xf32>, vector<32x128xf32>, vector<8x128xf32> -> vector<8x128xf32>
    %112 = arith.addf %110, %111 : vector<8x128xf32>
    %113 = vector.extract_strided_slice %112 {offsets = [0, 0], sizes = [8, 96], strides = [1, 1]} : vector<8x128xf32> to vector<8x96xf32>
    %114 = arith.negf %113 : vector<8x96xf32>
    %115 = math.exp %114 : vector<8x96xf32>
    %cst_36 = arith.constant 1.000000e+00 : f32
    %116 = vector.broadcast %cst_36 : f32 to vector<8x96xf32>
    %117 = arith.addf %116, %115 : vector<8x96xf32>
    %118 = arith.divf %116, %117 : vector<8x96xf32>
    %119 = vector.extract_strided_slice %112 {offsets = [0, 96], sizes = [8, 32], strides = [1, 1]} : vector<8x128xf32> to vector<8x32xf32>
    %120 = math.tanh %119 : vector<8x32xf32>
    %121 = vector.extract_strided_slice %118 {offsets = [0, 0], sizes = [8, 32], strides = [1, 1]} : vector<8x96xf32> to vector<8x32xf32>
    %122 = vector.extract_strided_slice %118 {offsets = [0, 32], sizes = [8, 32], strides = [1, 1]} : vector<8x96xf32> to vector<8x32xf32>
    %123 = vector.extract_strided_slice %118 {offsets = [0, 64], sizes = [8, 32], strides = [1, 1]} : vector<8x96xf32> to vector<8x32xf32>
    %124 = arith.mulf %122, %81 : vector<8x32xf32>
    %125 = arith.mulf %121, %120 : vector<8x32xf32>
    %126 = arith.addf %124, %125 : vector<8x32xf32>
    %127 = math.tanh %126 : vector<8x32xf32>
    %128 = arith.mulf %123, %127 : vector<8x32xf32>
    %cst_37 = arith.constant dense<0.000000e+00> : vector<8x128xf32>
    %129 = tpu.matmul %128, %4, %cst_37 {dimension_numbers = #tpu.dot_dimension_numbers<[1], [0], [0], [1], [0, 0, 1, 1], [], []>} : vector<8x32xf32>, vector<32x128xf32>, vector<8x128xf32> -> vector<8x128xf32>
    %130 = arith.addf %129, %107 : vector<8x128xf32>
    %131 = arith.addf %130, %8 : vector<8x128xf32>
    %132 = vector.extract_strided_slice %131 {offsets = [0, 0], sizes = [8, 96], strides = [1, 1]} : vector<8x128xf32> to vector<8x96xf32>
    %133 = arith.negf %132 : vector<8x96xf32>
    %134 = math.exp %133 : vector<8x96xf32>
    %cst_38 = arith.constant 1.000000e+00 : f32
    %135 = vector.broadcast %cst_38 : f32 to vector<8x96xf32>
    %136 = arith.addf %135, %134 : vector<8x96xf32>
    %137 = arith.divf %135, %136 : vector<8x96xf32>
    %138 = vector.extract_strided_slice %131 {offsets = [0, 96], sizes = [8, 32], strides = [1, 1]} : vector<8x128xf32> to vector<8x32xf32>
    %139 = math.tanh %138 : vector<8x32xf32>
    %140 = vector.extract_strided_slice %137 {offsets = [0, 0], sizes = [8, 32], strides = [1, 1]} : vector<8x96xf32> to vector<8x32xf32>
    %141 = vector.extract_strided_slice %137 {offsets = [0, 32], sizes = [8, 32], strides = [1, 1]} : vector<8x96xf32> to vector<8x32xf32>
    %142 = vector.extract_strided_slice %137 {offsets = [0, 64], sizes = [8, 32], strides = [1, 1]} : vector<8x96xf32> to vector<8x32xf32>
    %143 = arith.mulf %141, %100 : vector<8x32xf32>
    %144 = arith.mulf %140, %139 : vector<8x32xf32>
    %145 = arith.addf %143, %144 : vector<8x32xf32>
    %146 = math.tanh %145 : vector<8x32xf32>
    %147 = arith.mulf %142, %146 : vector<8x32xf32>
    %148 = arith.addi %12, %c2_i32 : i32
    %149 = vector.broadcast %148 : i32 to vector<8x32xi32>
    %150 = arith.cmpi slt, %149, %11 : vector<8x32xi32>
    %151 = arith.select %150, %147, %106 : vector<8x32xi1>, vector<8x32xf32>
    %c3_i32 = arith.constant 3 : i32
    %cst_39 = arith.constant dense<0.000000e+00> : vector<8x128xf32>
    %152 = tpu.matmul %151, %5, %cst_39 {dimension_numbers = #tpu.dot_dimension_numbers<[1], [0], [0], [1], [0, 0, 1, 1], [], []>} : vector<8x32xf32>, vector<32x128xf32>, vector<8x128xf32> -> vector<8x128xf32>
    %153 = arith.index_cast %c3_i32 : i32 to index
    %c0_40 = arith.constant 0 : index
    %c0_41 = arith.constant 0 : index
    %154 = vector.load %arg2[%153, %c0_40, %c0_41] : memref<8x8x128xf32, #tpu.memory_space<vmem>>, vector<1x8x128xf32>
    %155 = vector.shape_cast %154 : vector<1x8x128xf32> to vector<8x128xf32>
    %cst_42 = arith.constant dense<0.000000e+00> : vector<8x128xf32>
    %156 = tpu.matmul %128, %3, %cst_42 {dimension_numbers = #tpu.dot_dimension_numbers<[1], [0], [0], [1], [0, 0, 1, 1], [], []>} : vector<8x32xf32>, vector<32x128xf32>, vector<8x128xf32> -> vector<8x128xf32>
    %157 = arith.addf %155, %156 : vector<8x128xf32>
    %158 = vector.extract_strided_slice %157 {offsets = [0, 0], sizes = [8, 96], strides = [1, 1]} : vector<8x128xf32> to vector<8x96xf32>
    %159 = arith.negf %158 : vector<8x96xf32>
    %160 = math.exp %159 : vector<8x96xf32>
    %cst_43 = arith.constant 1.000000e+00 : f32
    %161 = vector.broadcast %cst_43 : f32 to vector<8x96xf32>
    %162 = arith.addf %161, %160 : vector<8x96xf32>
    %163 = arith.divf %161, %162 : vector<8x96xf32>
    %164 = vector.extract_strided_slice %157 {offsets = [0, 96], sizes = [8, 32], strides = [1, 1]} : vector<8x128xf32> to vector<8x32xf32>
    %165 = math.tanh %164 : vector<8x32xf32>
    %166 = vector.extract_strided_slice %163 {offsets = [0, 0], sizes = [8, 32], strides = [1, 1]} : vector<8x96xf32> to vector<8x32xf32>
    %167 = vector.extract_strided_slice %163 {offsets = [0, 32], sizes = [8, 32], strides = [1, 1]} : vector<8x96xf32> to vector<8x32xf32>
    %168 = vector.extract_strided_slice %163 {offsets = [0, 64], sizes = [8, 32], strides = [1, 1]} : vector<8x96xf32> to vector<8x32xf32>
    %169 = arith.mulf %167, %126 : vector<8x32xf32>
    %170 = arith.mulf %166, %165 : vector<8x32xf32>
    %171 = arith.addf %169, %170 : vector<8x32xf32>
    %172 = math.tanh %171 : vector<8x32xf32>
    %173 = arith.mulf %168, %172 : vector<8x32xf32>
    %cst_44 = arith.constant dense<0.000000e+00> : vector<8x128xf32>
    %174 = tpu.matmul %173, %4, %cst_44 {dimension_numbers = #tpu.dot_dimension_numbers<[1], [0], [0], [1], [0, 0, 1, 1], [], []>} : vector<8x32xf32>, vector<32x128xf32>, vector<8x128xf32> -> vector<8x128xf32>
    %175 = arith.addf %174, %152 : vector<8x128xf32>
    %176 = arith.addf %175, %8 : vector<8x128xf32>
    %177 = vector.extract_strided_slice %176 {offsets = [0, 0], sizes = [8, 96], strides = [1, 1]} : vector<8x128xf32> to vector<8x96xf32>
    %178 = arith.negf %177 : vector<8x96xf32>
    %179 = math.exp %178 : vector<8x96xf32>
    %cst_45 = arith.constant 1.000000e+00 : f32
    %180 = vector.broadcast %cst_45 : f32 to vector<8x96xf32>
    %181 = arith.addf %180, %179 : vector<8x96xf32>
    %182 = arith.divf %180, %181 : vector<8x96xf32>
    %183 = vector.extract_strided_slice %176 {offsets = [0, 96], sizes = [8, 32], strides = [1, 1]} : vector<8x128xf32> to vector<8x32xf32>
    %184 = math.tanh %183 : vector<8x32xf32>
    %185 = vector.extract_strided_slice %182 {offsets = [0, 0], sizes = [8, 32], strides = [1, 1]} : vector<8x96xf32> to vector<8x32xf32>
    %186 = vector.extract_strided_slice %182 {offsets = [0, 32], sizes = [8, 32], strides = [1, 1]} : vector<8x96xf32> to vector<8x32xf32>
    %187 = vector.extract_strided_slice %182 {offsets = [0, 64], sizes = [8, 32], strides = [1, 1]} : vector<8x96xf32> to vector<8x32xf32>
    %188 = arith.mulf %186, %145 : vector<8x32xf32>
    %189 = arith.mulf %185, %184 : vector<8x32xf32>
    %190 = arith.addf %188, %189 : vector<8x32xf32>
    %191 = math.tanh %190 : vector<8x32xf32>
    %192 = arith.mulf %187, %191 : vector<8x32xf32>
    %193 = arith.addi %12, %c3_i32 : i32
    %194 = vector.broadcast %193 : i32 to vector<8x32xi32>
    %195 = arith.cmpi slt, %194, %11 : vector<8x32xi32>
    %196 = arith.select %195, %192, %151 : vector<8x32xi1>, vector<8x32xf32>
    %c4_i32 = arith.constant 4 : i32
    %cst_46 = arith.constant dense<0.000000e+00> : vector<8x128xf32>
    %197 = tpu.matmul %196, %5, %cst_46 {dimension_numbers = #tpu.dot_dimension_numbers<[1], [0], [0], [1], [0, 0, 1, 1], [], []>} : vector<8x32xf32>, vector<32x128xf32>, vector<8x128xf32> -> vector<8x128xf32>
    %198 = arith.index_cast %c4_i32 : i32 to index
    %c0_47 = arith.constant 0 : index
    %c0_48 = arith.constant 0 : index
    %199 = vector.load %arg2[%198, %c0_47, %c0_48] : memref<8x8x128xf32, #tpu.memory_space<vmem>>, vector<1x8x128xf32>
    %200 = vector.shape_cast %199 : vector<1x8x128xf32> to vector<8x128xf32>
    %cst_49 = arith.constant dense<0.000000e+00> : vector<8x128xf32>
    %201 = tpu.matmul %173, %3, %cst_49 {dimension_numbers = #tpu.dot_dimension_numbers<[1], [0], [0], [1], [0, 0, 1, 1], [], []>} : vector<8x32xf32>, vector<32x128xf32>, vector<8x128xf32> -> vector<8x128xf32>
    %202 = arith.addf %200, %201 : vector<8x128xf32>
    %203 = vector.extract_strided_slice %202 {offsets = [0, 0], sizes = [8, 96], strides = [1, 1]} : vector<8x128xf32> to vector<8x96xf32>
    %204 = arith.negf %203 : vector<8x96xf32>
    %205 = math.exp %204 : vector<8x96xf32>
    %cst_50 = arith.constant 1.000000e+00 : f32
    %206 = vector.broadcast %cst_50 : f32 to vector<8x96xf32>
    %207 = arith.addf %206, %205 : vector<8x96xf32>
    %208 = arith.divf %206, %207 : vector<8x96xf32>
    %209 = vector.extract_strided_slice %202 {offsets = [0, 96], sizes = [8, 32], strides = [1, 1]} : vector<8x128xf32> to vector<8x32xf32>
    %210 = math.tanh %209 : vector<8x32xf32>
    %211 = vector.extract_strided_slice %208 {offsets = [0, 0], sizes = [8, 32], strides = [1, 1]} : vector<8x96xf32> to vector<8x32xf32>
    %212 = vector.extract_strided_slice %208 {offsets = [0, 32], sizes = [8, 32], strides = [1, 1]} : vector<8x96xf32> to vector<8x32xf32>
    %213 = vector.extract_strided_slice %208 {offsets = [0, 64], sizes = [8, 32], strides = [1, 1]} : vector<8x96xf32> to vector<8x32xf32>
    %214 = arith.mulf %212, %171 : vector<8x32xf32>
    %215 = arith.mulf %211, %210 : vector<8x32xf32>
    %216 = arith.addf %214, %215 : vector<8x32xf32>
    %217 = math.tanh %216 : vector<8x32xf32>
    %218 = arith.mulf %213, %217 : vector<8x32xf32>
    %cst_51 = arith.constant dense<0.000000e+00> : vector<8x128xf32>
    %219 = tpu.matmul %218, %4, %cst_51 {dimension_numbers = #tpu.dot_dimension_numbers<[1], [0], [0], [1], [0, 0, 1, 1], [], []>} : vector<8x32xf32>, vector<32x128xf32>, vector<8x128xf32> -> vector<8x128xf32>
    %220 = arith.addf %219, %197 : vector<8x128xf32>
    %221 = arith.addf %220, %8 : vector<8x128xf32>
    %222 = vector.extract_strided_slice %221 {offsets = [0, 0], sizes = [8, 96], strides = [1, 1]} : vector<8x128xf32> to vector<8x96xf32>
    %223 = arith.negf %222 : vector<8x96xf32>
    %224 = math.exp %223 : vector<8x96xf32>
    %cst_52 = arith.constant 1.000000e+00 : f32
    %225 = vector.broadcast %cst_52 : f32 to vector<8x96xf32>
    %226 = arith.addf %225, %224 : vector<8x96xf32>
    %227 = arith.divf %225, %226 : vector<8x96xf32>
    %228 = vector.extract_strided_slice %221 {offsets = [0, 96], sizes = [8, 32], strides = [1, 1]} : vector<8x128xf32> to vector<8x32xf32>
    %229 = math.tanh %228 : vector<8x32xf32>
    %230 = vector.extract_strided_slice %227 {offsets = [0, 0], sizes = [8, 32], strides = [1, 1]} : vector<8x96xf32> to vector<8x32xf32>
    %231 = vector.extract_strided_slice %227 {offsets = [0, 32], sizes = [8, 32], strides = [1, 1]} : vector<8x96xf32> to vector<8x32xf32>
    %232 = vector.extract_strided_slice %227 {offsets = [0, 64], sizes = [8, 32], strides = [1, 1]} : vector<8x96xf32> to vector<8x32xf32>
    %233 = arith.mulf %231, %190 : vector<8x32xf32>
    %234 = arith.mulf %230, %229 : vector<8x32xf32>
    %235 = arith.addf %233, %234 : vector<8x32xf32>
    %236 = math.tanh %235 : vector<8x32xf32>
    %237 = arith.mulf %232, %236 : vector<8x32xf32>
    %238 = arith.addi %12, %c4_i32 : i32
    %239 = vector.broadcast %238 : i32 to vector<8x32xi32>
    %240 = arith.cmpi slt, %239, %11 : vector<8x32xi32>
    %241 = arith.select %240, %237, %196 : vector<8x32xi1>, vector<8x32xf32>
    %c5_i32 = arith.constant 5 : i32
    %cst_53 = arith.constant dense<0.000000e+00> : vector<8x128xf32>
    %242 = tpu.matmul %241, %5, %cst_53 {dimension_numbers = #tpu.dot_dimension_numbers<[1], [0], [0], [1], [0, 0, 1, 1], [], []>} : vector<8x32xf32>, vector<32x128xf32>, vector<8x128xf32> -> vector<8x128xf32>
    %243 = arith.index_cast %c5_i32 : i32 to index
    %c0_54 = arith.constant 0 : index
    %c0_55 = arith.constant 0 : index
    %244 = vector.load %arg2[%243, %c0_54, %c0_55] : memref<8x8x128xf32, #tpu.memory_space<vmem>>, vector<1x8x128xf32>
    %245 = vector.shape_cast %244 : vector<1x8x128xf32> to vector<8x128xf32>
    %cst_56 = arith.constant dense<0.000000e+00> : vector<8x128xf32>
    %246 = tpu.matmul %218, %3, %cst_56 {dimension_numbers = #tpu.dot_dimension_numbers<[1], [0], [0], [1], [0, 0, 1, 1], [], []>} : vector<8x32xf32>, vector<32x128xf32>, vector<8x128xf32> -> vector<8x128xf32>
    %247 = arith.addf %245, %246 : vector<8x128xf32>
    %248 = vector.extract_strided_slice %247 {offsets = [0, 0], sizes = [8, 96], strides = [1, 1]} : vector<8x128xf32> to vector<8x96xf32>
    %249 = arith.negf %248 : vector<8x96xf32>
    %250 = math.exp %249 : vector<8x96xf32>
    %cst_57 = arith.constant 1.000000e+00 : f32
    %251 = vector.broadcast %cst_57 : f32 to vector<8x96xf32>
    %252 = arith.addf %251, %250 : vector<8x96xf32>
    %253 = arith.divf %251, %252 : vector<8x96xf32>
    %254 = vector.extract_strided_slice %247 {offsets = [0, 96], sizes = [8, 32], strides = [1, 1]} : vector<8x128xf32> to vector<8x32xf32>
    %255 = math.tanh %254 : vector<8x32xf32>
    %256 = vector.extract_strided_slice %253 {offsets = [0, 0], sizes = [8, 32], strides = [1, 1]} : vector<8x96xf32> to vector<8x32xf32>
    %257 = vector.extract_strided_slice %253 {offsets = [0, 32], sizes = [8, 32], strides = [1, 1]} : vector<8x96xf32> to vector<8x32xf32>
    %258 = vector.extract_strided_slice %253 {offsets = [0, 64], sizes = [8, 32], strides = [1, 1]} : vector<8x96xf32> to vector<8x32xf32>
    %259 = arith.mulf %257, %216 : vector<8x32xf32>
    %260 = arith.mulf %256, %255 : vector<8x32xf32>
    %261 = arith.addf %259, %260 : vector<8x32xf32>
    %262 = math.tanh %261 : vector<8x32xf32>
    %263 = arith.mulf %258, %262 : vector<8x32xf32>
    %cst_58 = arith.constant dense<0.000000e+00> : vector<8x128xf32>
    %264 = tpu.matmul %263, %4, %cst_58 {dimension_numbers = #tpu.dot_dimension_numbers<[1], [0], [0], [1], [0, 0, 1, 1], [], []>} : vector<8x32xf32>, vector<32x128xf32>, vector<8x128xf32> -> vector<8x128xf32>
    %265 = arith.addf %264, %242 : vector<8x128xf32>
    %266 = arith.addf %265, %8 : vector<8x128xf32>
    %267 = vector.extract_strided_slice %266 {offsets = [0, 0], sizes = [8, 96], strides = [1, 1]} : vector<8x128xf32> to vector<8x96xf32>
    %268 = arith.negf %267 : vector<8x96xf32>
    %269 = math.exp %268 : vector<8x96xf32>
    %cst_59 = arith.constant 1.000000e+00 : f32
    %270 = vector.broadcast %cst_59 : f32 to vector<8x96xf32>
    %271 = arith.addf %270, %269 : vector<8x96xf32>
    %272 = arith.divf %270, %271 : vector<8x96xf32>
    %273 = vector.extract_strided_slice %266 {offsets = [0, 96], sizes = [8, 32], strides = [1, 1]} : vector<8x128xf32> to vector<8x32xf32>
    %274 = math.tanh %273 : vector<8x32xf32>
    %275 = vector.extract_strided_slice %272 {offsets = [0, 0], sizes = [8, 32], strides = [1, 1]} : vector<8x96xf32> to vector<8x32xf32>
    %276 = vector.extract_strided_slice %272 {offsets = [0, 32], sizes = [8, 32], strides = [1, 1]} : vector<8x96xf32> to vector<8x32xf32>
    %277 = vector.extract_strided_slice %272 {offsets = [0, 64], sizes = [8, 32], strides = [1, 1]} : vector<8x96xf32> to vector<8x32xf32>
    %278 = arith.mulf %276, %235 : vector<8x32xf32>
    %279 = arith.mulf %275, %274 : vector<8x32xf32>
    %280 = arith.addf %278, %279 : vector<8x32xf32>
    %281 = math.tanh %280 : vector<8x32xf32>
    %282 = arith.mulf %277, %281 : vector<8x32xf32>
    %283 = arith.addi %12, %c5_i32 : i32
    %284 = vector.broadcast %283 : i32 to vector<8x32xi32>
    %285 = arith.cmpi slt, %284, %11 : vector<8x32xi32>
    %286 = arith.select %285, %282, %241 : vector<8x32xi1>, vector<8x32xf32>
    %c6_i32 = arith.constant 6 : i32
    %cst_60 = arith.constant dense<0.000000e+00> : vector<8x128xf32>
    %287 = tpu.matmul %286, %5, %cst_60 {dimension_numbers = #tpu.dot_dimension_numbers<[1], [0], [0], [1], [0, 0, 1, 1], [], []>} : vector<8x32xf32>, vector<32x128xf32>, vector<8x128xf32> -> vector<8x128xf32>
    %288 = arith.index_cast %c6_i32 : i32 to index
    %c0_61 = arith.constant 0 : index
    %c0_62 = arith.constant 0 : index
    %289 = vector.load %arg2[%288, %c0_61, %c0_62] : memref<8x8x128xf32, #tpu.memory_space<vmem>>, vector<1x8x128xf32>
    %290 = vector.shape_cast %289 : vector<1x8x128xf32> to vector<8x128xf32>
    %cst_63 = arith.constant dense<0.000000e+00> : vector<8x128xf32>
    %291 = tpu.matmul %263, %3, %cst_63 {dimension_numbers = #tpu.dot_dimension_numbers<[1], [0], [0], [1], [0, 0, 1, 1], [], []>} : vector<8x32xf32>, vector<32x128xf32>, vector<8x128xf32> -> vector<8x128xf32>
    %292 = arith.addf %290, %291 : vector<8x128xf32>
    %293 = vector.extract_strided_slice %292 {offsets = [0, 0], sizes = [8, 96], strides = [1, 1]} : vector<8x128xf32> to vector<8x96xf32>
    %294 = arith.negf %293 : vector<8x96xf32>
    %295 = math.exp %294 : vector<8x96xf32>
    %cst_64 = arith.constant 1.000000e+00 : f32
    %296 = vector.broadcast %cst_64 : f32 to vector<8x96xf32>
    %297 = arith.addf %296, %295 : vector<8x96xf32>
    %298 = arith.divf %296, %297 : vector<8x96xf32>
    %299 = vector.extract_strided_slice %292 {offsets = [0, 96], sizes = [8, 32], strides = [1, 1]} : vector<8x128xf32> to vector<8x32xf32>
    %300 = math.tanh %299 : vector<8x32xf32>
    %301 = vector.extract_strided_slice %298 {offsets = [0, 0], sizes = [8, 32], strides = [1, 1]} : vector<8x96xf32> to vector<8x32xf32>
    %302 = vector.extract_strided_slice %298 {offsets = [0, 32], sizes = [8, 32], strides = [1, 1]} : vector<8x96xf32> to vector<8x32xf32>
    %303 = vector.extract_strided_slice %298 {offsets = [0, 64], sizes = [8, 32], strides = [1, 1]} : vector<8x96xf32> to vector<8x32xf32>
    %304 = arith.mulf %302, %261 : vector<8x32xf32>
    %305 = arith.mulf %301, %300 : vector<8x32xf32>
    %306 = arith.addf %304, %305 : vector<8x32xf32>
    %307 = math.tanh %306 : vector<8x32xf32>
    %308 = arith.mulf %303, %307 : vector<8x32xf32>
    %cst_65 = arith.constant dense<0.000000e+00> : vector<8x128xf32>
    %309 = tpu.matmul %308, %4, %cst_65 {dimension_numbers = #tpu.dot_dimension_numbers<[1], [0], [0], [1], [0, 0, 1, 1], [], []>} : vector<8x32xf32>, vector<32x128xf32>, vector<8x128xf32> -> vector<8x128xf32>
    %310 = arith.addf %309, %287 : vector<8x128xf32>
    %311 = arith.addf %310, %8 : vector<8x128xf32>
    %312 = vector.extract_strided_slice %311 {offsets = [0, 0], sizes = [8, 96], strides = [1, 1]} : vector<8x128xf32> to vector<8x96xf32>
    %313 = arith.negf %312 : vector<8x96xf32>
    %314 = math.exp %313 : vector<8x96xf32>
    %cst_66 = arith.constant 1.000000e+00 : f32
    %315 = vector.broadcast %cst_66 : f32 to vector<8x96xf32>
    %316 = arith.addf %315, %314 : vector<8x96xf32>
    %317 = arith.divf %315, %316 : vector<8x96xf32>
    %318 = vector.extract_strided_slice %311 {offsets = [0, 96], sizes = [8, 32], strides = [1, 1]} : vector<8x128xf32> to vector<8x32xf32>
    %319 = math.tanh %318 : vector<8x32xf32>
    %320 = vector.extract_strided_slice %317 {offsets = [0, 0], sizes = [8, 32], strides = [1, 1]} : vector<8x96xf32> to vector<8x32xf32>
    %321 = vector.extract_strided_slice %317 {offsets = [0, 32], sizes = [8, 32], strides = [1, 1]} : vector<8x96xf32> to vector<8x32xf32>
    %322 = vector.extract_strided_slice %317 {offsets = [0, 64], sizes = [8, 32], strides = [1, 1]} : vector<8x96xf32> to vector<8x32xf32>
    %323 = arith.mulf %321, %280 : vector<8x32xf32>
    %324 = arith.mulf %320, %319 : vector<8x32xf32>
    %325 = arith.addf %323, %324 : vector<8x32xf32>
    %326 = math.tanh %325 : vector<8x32xf32>
    %327 = arith.mulf %322, %326 : vector<8x32xf32>
    %328 = arith.addi %12, %c6_i32 : i32
    %329 = vector.broadcast %328 : i32 to vector<8x32xi32>
    %330 = arith.cmpi slt, %329, %11 : vector<8x32xi32>
    %331 = arith.select %330, %327, %286 : vector<8x32xi1>, vector<8x32xf32>
    %c7_i32 = arith.constant 7 : i32
    %cst_67 = arith.constant dense<0.000000e+00> : vector<8x128xf32>
    %332 = tpu.matmul %331, %5, %cst_67 {dimension_numbers = #tpu.dot_dimension_numbers<[1], [0], [0], [1], [0, 0, 1, 1], [], []>} : vector<8x32xf32>, vector<32x128xf32>, vector<8x128xf32> -> vector<8x128xf32>
    %333 = arith.index_cast %c7_i32 : i32 to index
    %c0_68 = arith.constant 0 : index
    %c0_69 = arith.constant 0 : index
    %334 = vector.load %arg2[%333, %c0_68, %c0_69] : memref<8x8x128xf32, #tpu.memory_space<vmem>>, vector<1x8x128xf32>
    %335 = vector.shape_cast %334 : vector<1x8x128xf32> to vector<8x128xf32>
    %cst_70 = arith.constant dense<0.000000e+00> : vector<8x128xf32>
    %336 = tpu.matmul %308, %3, %cst_70 {dimension_numbers = #tpu.dot_dimension_numbers<[1], [0], [0], [1], [0, 0, 1, 1], [], []>} : vector<8x32xf32>, vector<32x128xf32>, vector<8x128xf32> -> vector<8x128xf32>
    %337 = arith.addf %335, %336 : vector<8x128xf32>
    %338 = vector.extract_strided_slice %337 {offsets = [0, 0], sizes = [8, 96], strides = [1, 1]} : vector<8x128xf32> to vector<8x96xf32>
    %339 = arith.negf %338 : vector<8x96xf32>
    %340 = math.exp %339 : vector<8x96xf32>
    %cst_71 = arith.constant 1.000000e+00 : f32
    %341 = vector.broadcast %cst_71 : f32 to vector<8x96xf32>
    %342 = arith.addf %341, %340 : vector<8x96xf32>
    %343 = arith.divf %341, %342 : vector<8x96xf32>
    %344 = vector.extract_strided_slice %337 {offsets = [0, 96], sizes = [8, 32], strides = [1, 1]} : vector<8x128xf32> to vector<8x32xf32>
    %345 = math.tanh %344 : vector<8x32xf32>
    %346 = vector.extract_strided_slice %343 {offsets = [0, 0], sizes = [8, 32], strides = [1, 1]} : vector<8x96xf32> to vector<8x32xf32>
    %347 = vector.extract_strided_slice %343 {offsets = [0, 32], sizes = [8, 32], strides = [1, 1]} : vector<8x96xf32> to vector<8x32xf32>
    %348 = vector.extract_strided_slice %343 {offsets = [0, 64], sizes = [8, 32], strides = [1, 1]} : vector<8x96xf32> to vector<8x32xf32>
    %349 = arith.mulf %347, %306 : vector<8x32xf32>
    %350 = arith.mulf %346, %345 : vector<8x32xf32>
    %351 = arith.addf %349, %350 : vector<8x32xf32>
    %352 = math.tanh %351 : vector<8x32xf32>
    %353 = arith.mulf %348, %352 : vector<8x32xf32>
    %cst_72 = arith.constant dense<0.000000e+00> : vector<8x128xf32>
    %354 = tpu.matmul %353, %4, %cst_72 {dimension_numbers = #tpu.dot_dimension_numbers<[1], [0], [0], [1], [0, 0, 1, 1], [], []>} : vector<8x32xf32>, vector<32x128xf32>, vector<8x128xf32> -> vector<8x128xf32>
    %355 = arith.addf %354, %332 : vector<8x128xf32>
    %356 = arith.addf %355, %8 : vector<8x128xf32>
    %357 = vector.extract_strided_slice %356 {offsets = [0, 0], sizes = [8, 96], strides = [1, 1]} : vector<8x128xf32> to vector<8x96xf32>
    %358 = arith.negf %357 : vector<8x96xf32>
    %359 = math.exp %358 : vector<8x96xf32>
    %cst_73 = arith.constant 1.000000e+00 : f32
    %360 = vector.broadcast %cst_73 : f32 to vector<8x96xf32>
    %361 = arith.addf %360, %359 : vector<8x96xf32>
    %362 = arith.divf %360, %361 : vector<8x96xf32>
    %363 = vector.extract_strided_slice %356 {offsets = [0, 96], sizes = [8, 32], strides = [1, 1]} : vector<8x128xf32> to vector<8x32xf32>
    %364 = math.tanh %363 : vector<8x32xf32>
    %365 = vector.extract_strided_slice %362 {offsets = [0, 0], sizes = [8, 32], strides = [1, 1]} : vector<8x96xf32> to vector<8x32xf32>
    %366 = vector.extract_strided_slice %362 {offsets = [0, 32], sizes = [8, 32], strides = [1, 1]} : vector<8x96xf32> to vector<8x32xf32>
    %367 = vector.extract_strided_slice %362 {offsets = [0, 64], sizes = [8, 32], strides = [1, 1]} : vector<8x96xf32> to vector<8x32xf32>
    %368 = arith.mulf %366, %325 : vector<8x32xf32>
    %369 = arith.mulf %365, %364 : vector<8x32xf32>
    %370 = arith.addf %368, %369 : vector<8x32xf32>
    %371 = math.tanh %370 : vector<8x32xf32>
    %372 = arith.mulf %367, %371 : vector<8x32xf32>
    %373 = arith.addi %12, %c7_i32 : i32
    %374 = vector.broadcast %373 : i32 to vector<8x32xi32>
    %375 = arith.cmpi slt, %374, %11 : vector<8x32xi32>
    %376 = arith.select %375, %372, %331 : vector<8x32xi1>, vector<8x32xf32>
    %c8_i32_74 = arith.constant 8 : i32
    %c0_75 = arith.constant 0 : index
    %c0_76 = arith.constant 0 : index
    %377 = vector.load %arg11[%c0_75, %c0_76] : memref<8x32xf32, #tpu.memory_space<vmem>>, vector<8x32xf32>
    tpu.vector_store %arg11[%c0_75, %c0_76], %353 {strides = array<i32>} : memref<8x32xf32, #tpu.memory_space<vmem>>, vector<8x32xf32>,
    %c0_77 = arith.constant 0 : index
    %c0_78 = arith.constant 0 : index
    %378 = vector.load %arg12[%c0_77, %c0_78] : memref<8x32xf32, #tpu.memory_space<vmem>>, vector<8x32xf32>
    tpu.vector_store %arg12[%c0_77, %c0_78], %351 {strides = array<i32>} : memref<8x32xf32, #tpu.memory_space<vmem>>, vector<8x32xf32>,
    %c0_79 = arith.constant 0 : index
    %c0_80 = arith.constant 0 : index
    %379 = vector.load %arg13[%c0_79, %c0_80] : memref<8x32xf32, #tpu.memory_space<vmem>>, vector<8x32xf32>
    tpu.vector_store %arg13[%c0_79, %c0_80], %376 {strides = array<i32>} : memref<8x32xf32, #tpu.memory_space<vmem>>, vector<8x32xf32>,
    %c0_81 = arith.constant 0 : index
    %c0_82 = arith.constant 0 : index
    %380 = vector.load %arg14[%c0_81, %c0_82] : memref<8x32xf32, #tpu.memory_space<vmem>>, vector<8x32xf32>
    tpu.vector_store %arg14[%c0_81, %c0_82], %370 {strides = array<i32>} : memref<8x32xf32, #tpu.memory_space<vmem>>, vector<8x32xf32>,
    %c1_i32_83 = arith.constant 1 : i32
    %381 = arith.cmpi eq, %arg1, %c1_i32_83 : i32
    %382 = arith.extui %381 : i1 to i32
    %c0_i32_84 = arith.constant 0 : i32
    %383 = arith.cmpi ne, %382, %c0_i32_84 : i32
    scf.if %383 {
      %c0_85 = arith.constant 0 : index
      %c0_86 = arith.constant 0 : index
      %384 = vector.load %arg8[%c0_85, %c0_86] : memref<32x128xf32, #tpu.memory_space<vmem>>, vector<32x128xf32>
      %cst_87 = arith.constant dense<0.000000e+00> : vector<8x128xf32>
      %385 = tpu.matmul %376, %384, %cst_87 {dimension_numbers = #tpu.dot_dimension_numbers<[1], [0], [0], [1], [0, 0, 1, 1], [], []>} : vector<8x32xf32>, vector<32x128xf32>, vector<8x128xf32> -> vector<8x128xf32>
      %c0_88 = arith.constant 0 : index
      %c0_89 = arith.constant 0 : index
      %386 = vector.load %arg9[%c0_88, %c0_89] : memref<1x128xf32, #tpu.memory_space<vmem>>, vector<1x128xf32>
      %387 = vector.broadcast %386 : vector<1x128xf32> to vector<8x128xf32>
      %388 = arith.addf %385, %387 : vector<8x128xf32>
      %c0_90 = arith.constant 0 : index
      %c0_91 = arith.constant 0 : index
      %389 = vector.load %arg10[%c0_90, %c0_91] : memref<8x128xf32, #tpu.memory_space<vmem>>, vector<8x128xf32>
      tpu.vector_store %arg10[%c0_90, %c0_91], %388 {strides = array<i32>} : memref<8x128xf32, #tpu.memory_space<vmem>>, vector<8x128xf32>,
    } else {
    }
    return
  }
  func.func @transform_0(%arg0: i32, %arg1: i32) -> (i32, i32, i32) {
    %c0_i32 = arith.constant 0 : i32
    %c0_i32_0 = arith.constant 0 : i32
    return %arg1, %arg0, %c0_i32 : i32, i32, i32
  }
  func.func @transform_1(%arg0: i32, %arg1: i32) -> (i32, i32) {
    %c0_i32 = arith.constant 0 : i32
    %c0_i32_0 = arith.constant 0 : i32
    return %arg0, %c0_i32 : i32, i32
  }
  func.func @transform_2(%arg0: i32, %arg1: i32) -> (i32, i32) {
    %c0_i32 = arith.constant 0 : i32
    %c0_i32_0 = arith.constant 0 : i32
    %c0_i32_1 = arith.constant 0 : i32
    return %c0_i32, %c0_i32_0 : i32, i32
  }
  func.func @transform_3(%arg0: i32, %arg1: i32) -> (i32, i32) {
    %c0_i32 = arith.constant 0 : i32
    %c0_i32_0 = arith.constant 0 : i32
    %c0_i32_1 = arith.constant 0 : i32
    return %c0_i32, %c0_i32_0 : i32, i32
  }
  func.func @transform_4(%arg0: i32, %arg1: i32) -> (i32, i32) {
    %c0_i32 = arith.constant 0 : i32
    %c0_i32_0 = arith.constant 0 : i32
    %c0_i32_1 = arith.constant 0 : i32
    return %c0_i32, %c0_i32_0 : i32, i32
  }
  func.func @transform_5(%arg0: i32, %arg1: i32) -> (i32, i32) {
    %c0_i32 = arith.constant 0 : i32
    %c0_i32_0 = arith.constant 0 : i32
    %c0_i32_1 = arith.constant 0 : i32
    return %c0_i32, %c0_i32_0 : i32, i32
  }
  func.func @transform_6(%arg0: i32, %arg1: i32) -> (i32, i32) {
    %c0_i32 = arith.constant 0 : i32
    %c0_i32_0 = arith.constant 0 : i32
    %c0_i32_1 = arith.constant 0 : i32
    return %c0_i32, %c0_i32_0 : i32, i32
  }
  func.func @transform_7(%arg0: i32, %arg1: i32) -> (i32, i32) {
    %c0_i32 = arith.constant 0 : i32
    %c0_i32_0 = arith.constant 0 : i32
    %c0_i32_1 = arith.constant 0 : i32
    return %c0_i32, %c0_i32_0 : i32, i32
  }
  func.func @transform_8(%arg0: i32, %arg1: i32) -> (i32, i32) {
    %c0_i32 = arith.constant 0 : i32
    %c0_i32_0 = arith.constant 0 : i32
    return %arg0, %c0_i32 : i32, i32
  }
}

</mosaic_0001>

<llo_original>
// kernel: sketch_rnn_forward.1
$region0: #{sketch_rnn_forward.1}
  #allocation0 [shape = 'u32[]', space=smem, size = 0x4, offset = 0x4, fixed_abs, tag = 'smem constant byte address 0x4 - core index']
  #allocation1 [shape = 'u32[144,128]{1,0:T(1,128)}', space=vmem, size = 0x12000, scoped, tag = 'internal scratch']
  #allocation2 [shape = 'f32[8,32]{1,0:T(8,128)}', space=vmem, size = 0x1000, scoped, tag = 'scratch operand']
  #allocation3 [shape = 'f32[8,32]{1,0:T(8,128)}', space=vmem, size = 0x1000, scoped, tag = 'scratch operand']
  #allocation4 [shape = 'f32[8,32]{1,0:T(8,128)}', space=vmem, size = 0x1000, scoped, tag = 'scratch operand']
  #allocation5 [shape = 'f32[8,32]{1,0:T(8,128)}', space=vmem, size = 0x1000, scoped, tag = 'scratch operand']
  %s0 = inlined_call_operand.vmem [shape: f32[16,8,128], index: 0, kind: input, shape index: {}]
  %s1 = inlined_call_operand.vmem [shape: s32[8,1], index: 1, kind: input, shape index: {}]
  %s2 = inlined_call_operand.vmem [shape: f32[32,128], index: 2, kind: input, shape index: {}]
  %s3 = inlined_call_operand.vmem [shape: f32[32,128], index: 3, kind: input, shape index: {}]
  %s4 = inlined_call_operand.vmem [shape: f32[32,128], index: 4, kind: input, shape index: {}]
  %s5 = inlined_call_operand.vmem [shape: f32[1,128], index: 5, kind: input, shape index: {}]
  %s6 = inlined_call_operand.vmem [shape: f32[32,128], index: 6, kind: input, shape index: {}]
  %s7 = inlined_call_operand.vmem [shape: f32[1,128], index: 7, kind: input, shape index: {}]
  %s8 = inlined_call_operand.vmem [shape: f32[8,128], index: 8, kind: output, shape index: {}]
  %s9 = sld [smem:[#allocation0]]
  $region73: #{sketch_rnn_forward.1} parent=0
    _
  %s11 = ssub.s32 1, %s9
  %s12 = scalar_select 0, %s11, %s9
  loop: start=0, step=1, limit=4
  $region2: #{sketch_rnn_forward.1} parent=0 // loop_pre_header
    _
  $region3: #{sketch_rnn_forward.1} parent=0 // loop_header
    %s14 = sphi 0, %s18
    %p15 = scmp.ge.s32.totalorder %s14, 4
    %s21 = sphi 0, %s33
    %s22 = sphi 0, %s29
    %s23 = sphi 0, %s21
    %s24 = sphi 0, %s22
    %s25 = sphi 0, %s23
    %s26 = sphi 0, %s24
    %s38 = sphi 0, %s40
    %s41 = sphi 0, %s38
    %s42 = sphi 0, %s41
    %s58 = sphi 0, %s42
    %s64 = sphi 0, %s66
    %s67 = sphi 0, %s64
    %s68 = sphi 0, %s67
    %s84 = sphi 0, %s68
    %s88 = sphi 0, %s88
    %s90 = sphi 0, %s88
    %s91 = sphi 0, %s90
    %s105 = sphi 0, %s91
    %s109 = sphi 0, %s109
    %s111 = sphi 0, %s109
    %s112 = sphi 0, %s111
    %s126 = sphi 0, %s112
    %s130 = sphi 0, %s130
    %s132 = sphi 0, %s130
    %s133 = sphi 0, %s132
    %s147 = sphi 0, %s133
    %s151 = sphi 0, %s151
    %s153 = sphi 0, %s151
    %s154 = sphi 0, %s153
    %s168 = sphi 0, %s154
    %s172 = sphi 0, %s172
    %s174 = sphi 0, %s172
    %s175 = sphi 0, %s174
    %s189 = sphi 0, %s175
    %s193 = sphi 0, %s193
    %s195 = sphi 0, %s193
    %s196 = sphi 0, %s195
    %s210 = sphi 0, %s196
    %s216 = sphi 0, %s218
    %s219 = sphi 0, %s216
    %s220 = sphi 0, %s219
    %s236 = sphi 0, %s220
  $region4: #{sketch_rnn_forward.1} parent=0 // loop_header_branch
    %17 = sbr.rel (%p15) target = $region8
  $region5: #{sketch_rnn_forward.1} parent=0 // loop_body
    %s19 = ssub.s32 %s14, 1
    %s20 = ssub.s32 %s14, 2
    %s27 = sadd.s32 1, %s22
    %p28 = scmp.ge.s32.totalorder %s27, 2
    %s29 = scalar_select %p28, 0, %s27
    %s30 = sadd.s32 1, %s21
    %s31 = scalar_select %p28, %s30, %s21
    %p32 = scmp.ge.s32.totalorder %s31, 1
    %s33 = scalar_select %p32, 0, %s31
    %s34 = ssub.s32 %s22, %s29
    %s35 = ssub.s32 %s21, %s33
    %s36 = sor.u32 %s34, %s35
    %p37 = scmp.eq.s32.totalorder %s36, 0
    %s39 = sadd.s32 %s38, 1
    %s40 = scalar_select %p37, %s38, %s39
    %p43 = pneg %p37
    %p44 = scmp.eq.s32.totalorder %s14, 1
    %p45 = por %p43, %p44
    %p46 = scmp.ne.s32.totalorder %s38, %s41
    %p47 = scmp.eq.s32.totalorder %s14, 0
    %p48 = por %p46, %p47
    %p49 = scmp.ne.s32.totalorder %s38, %s41
    %p50 = scmp.eq.s32.totalorder %s19, 1
    %p51 = por %p49, %p50
    %p52 = scmp.ne.s32.totalorder %s41, %s42
    %p53 = scmp.eq.s32.totalorder %s19, 0
    %p54 = por %p52, %p53
    %p55 = scmp.ne.s32.totalorder %s41, %s42
    %p56 = scmp.eq.s32.totalorder %s20, 1
    %p57 = por %p55, %p56
    %p59 = scmp.ne.s32.totalorder %s42, %s58
    %p60 = scmp.eq.s32.totalorder %s20, 0
    %p61 = por %p59, %p60
    %s62 = ssub.s32 %s21, %s33
    %p63 = scmp.eq.s32.totalorder %s62, 0
    %s65 = sadd.s32 %s64, 1
    %s66 = scalar_select %p63, %s64, %s65
    %p69 = pneg %p63
    %p70 = scmp.eq.s32.totalorder %s14, 1
    %p71 = por %p69, %p70
    %p72 = scmp.ne.s32.totalorder %s64, %s67
    %p73 = scmp.eq.s32.totalorder %s14, 0
    %p74 = por %p72, %p73
    %p75 = scmp.ne.s32.totalorder %s64, %s67
    %p76 = scmp.eq.s32.totalorder %s19, 1
    %p77 = por %p75, %p76
    %p78 = scmp.ne.s32.totalorder %s67, %s68
    %p79 = scmp.eq.s32.totalorder %s19, 0
    %p80 = por %p78, %p79
    %p81 = scmp.ne.s32.totalorder %s67, %s68
    %p82 = scmp.eq.s32.totalorder %s20, 1
    %p83 = por %p81, %p82
    %p85 = scmp.ne.s32.totalorder %s68, %s84
    %p86 = scmp.eq.s32.totalorder %s20, 0
    %p87 = por %p85, %p86
    %s89 = sadd.s32 %s88, 1
    %p92 = scmp.eq.s32.totalorder %s14, 1
    %p93 = scmp.ne.s32.totalorder %s88, %s90
    %p94 = scmp.eq.s32.totalorder %s14, 0
    %p95 = por %p93, %p94
    %p96 = scmp.ne.s32.totalorder %s88, %s90
    %p97 = scmp.eq.s32.totalorder %s19, 1
    %p98 = por %p96, %p97
    %p99 = scmp.ne.s32.totalorder %s90, %s91
    %p100 = scmp.eq.s32.totalorder %s19, 0
    %p101 = por %p99, %p100
    %p102 = scmp.ne.s32.totalorder %s90, %s91
    %p103 = scmp.eq.s32.totalorder %s20, 1
    %p104 = por %p102, %p103
    %p106 = scmp.ne.s32.totalorder %s91, %s105
    %p107 = scmp.eq.s32.totalorder %s20, 0
    %p108 = por %p106, %p107
    %s110 = sadd.s32 %s109, 1
    %p113 = scmp.eq.s32.totalorder %s14, 1
    %p114 = scmp.ne.s32.totalorder %s109, %s111
    %p115 = scmp.eq.s32.totalorder %s14, 0
    %p116 = por %p114, %p115
    %p117 = scmp.ne.s32.totalorder %s109, %s111
    %p118 = scmp.eq.s32.totalorder %s19, 1
    %p119 = por %p117, %p118
    %p120 = scmp.ne.s32.totalorder %s111, %s112
    %p121 = scmp.eq.s32.totalorder %s19, 0
    %p122 = por %p120, %p121
    %p123 = scmp.ne.s32.totalorder %s111, %s112
    %p124 = scmp.eq.s32.totalorder %s20, 1
    %p125 = por %p123, %p124
    %p127 = scmp.ne.s32.totalorder %s112, %s126
    %p128 = scmp.eq.s32.totalorder %s20, 0
    %p129 = por %p127, %p128
    %s131 = sadd.s32 %s130, 1
    %p134 = scmp.eq.s32.totalorder %s14, 1
    %p135 = scmp.ne.s32.totalorder %s130, %s132
    %p136 = scmp.eq.s32.totalorder %s14, 0
    %p137 = por %p135, %p136
    %p138 = scmp.ne.s32.totalorder %s130, %s132
    %p139 = scmp.eq.s32.totalorder %s19, 1
    %p140 = por %p138, %p139
    %p141 = scmp.ne.s32.totalorder %s132, %s133
    %p142 = scmp.eq.s32.totalorder %s19, 0
    %p143 = por %p141, %p142
    %p144 = scmp.ne.s32.totalorder %s132, %s133
    %p145 = scmp.eq.s32.totalorder %s20, 1
    %p146 = por %p144, %p145
    %p148 = scmp.ne.s32.totalorder %s133, %s147
    %p149 = scmp.eq.s32.totalorder %s20, 0
    %p150 = por %p148, %p149
    %s152 = sadd.s32 %s151, 1
    %p155 = scmp.eq.s32.totalorder %s14, 1
    %p156 = scmp.ne.s32.totalorder %s151, %s153
    %p157 = scmp.eq.s32.totalorder %s14, 0
    %p158 = por %p156, %p157
    %p159 = scmp.ne.s32.totalorder %s151, %s153
    %p160 = scmp.eq.s32.totalorder %s19, 1
    %p161 = por %p159, %p160
    %p162 = scmp.ne.s32.totalorder %s153, %s154
    %p163 = scmp.eq.s32.totalorder %s19, 0
    %p164 = por %p162, %p163
    %p165 = scmp.ne.s32.totalorder %s153, %s154
    %p166 = scmp.eq.s32.totalorder %s20, 1
    %p167 = por %p165, %p166
    %p169 = scmp.ne.s32.totalorder %s154, %s168
    %p170 = scmp.eq.s32.totalorder %s20, 0
    %p171 = por %p169, %p170
    %s173 = sadd.s32 %s172, 1
    %p176 = scmp.eq.s32.totalorder %s14, 1
    %p177 = scmp.ne.s32.totalorder %s172, %s174
    %p178 = scmp.eq.s32.totalorder %s14, 0
    %p179 = por %p177, %p178
    %p180 = scmp.ne.s32.totalorder %s172, %s174
    %p181 = scmp.eq.s32.totalorder %s19, 1
    %p182 = por %p180, %p181
    %p183 = scmp.ne.s32.totalorder %s174, %s175
    %p184 = scmp.eq.s32.totalorder %s19, 0
    %p185 = por %p183, %p184
    %p186 = scmp.ne.s32.totalorder %s174, %s175
    %p187 = scmp.eq.s32.totalorder %s20, 1
    %p188 = por %p186, %p187
    %p190 = scmp.ne.s32.totalorder %s175, %s189
    %p191 = scmp.eq.s32.totalorder %s20, 0
    %p192 = por %p190, %p191
    %s194 = sadd.s32 %s193, 1
    %p197 = scmp.eq.s32.totalorder %s14, 1
    %p198 = scmp.ne.s32.totalorder %s193, %s195
    %p199 = scmp.eq.s32.totalorder %s14, 0
    %p200 = por %p198, %p199
    %p201 = scmp.ne.s32.totalorder %s193, %s195
    %p202 = scmp.eq.s32.totalorder %s19, 1
    %p203 = por %p201, %p202
    %p204 = scmp.ne.s32.totalorder %s195, %s196
    %p205 = scmp.eq.s32.totalorder %s19, 0
    %p206 = por %p204, %p205
    %p207 = scmp.ne.s32.totalorder %s195, %s196
    %p208 = scmp.eq.s32.totalorder %s20, 1
    %p209 = por %p207, %p208
    %p211 = scmp.ne.s32.totalorder %s196, %s210
    %p212 = scmp.eq.s32.totalorder %s20, 0
    %p213 = por %p211, %p212
    %s214 = ssub.s32 %s21, %s33
    %p215 = scmp.eq.s32.totalorder %s214, 0
    %s217 = sadd.s32 %s216, 1
    %s218 = scalar_select %p215, %s216, %s217
    %p221 = pneg %p215
    %p222 = scmp.eq.s32.totalorder %s14, 1
    %p223 = por %p221, %p222
    %p224 = scmp.ne.s32.totalorder %s216, %s219
    %p225 = scmp.eq.s32.totalorder %s14, 0
    %p226 = por %p224, %p225
    %p227 = scmp.ne.s32.totalorder %s216, %s219
    %p228 = scmp.eq.s32.totalorder %s19, 1
    %p229 = por %p227, %p228
    %p230 = scmp.ne.s32.totalorder %s219, %s220
    %p231 = scmp.eq.s32.totalorder %s19, 0
    %p232 = por %p230, %p231
    %p233 = scmp.ne.s32.totalorder %s219, %s220
    %p234 = scmp.eq.s32.totalorder %s20, 1
    %p235 = por %p233, %p234
    %p237 = scmp.ne.s32.totalorder %s220, %s236
    %p238 = scmp.eq.s32.totalorder %s20, 0
    %p239 = por %p237, %p238
    %p240 = scmp.le.s32.totalorder 1, %s14
    %p241 = scmp.lt.s32.totalorder %s14, 3
    %p242 = pnand %p240, %p241
    %p243 = pneg %p242
    // Predicated region
    $region9: #{sketch_rnn_forward.1} parent=5 // pred_check
      _
    $region10: #{sketch_rnn_forward.1} parent=5 // pred_check_branch
      %245 = sbr.rel (%p242) target = $region12
    $region11: #{sketch_rnn_forward.1} parent=5 // pred_region
      %s246 = ssub.s32 %s14, 1
      // Predicated region
      $region13: #{sketch_rnn_forward.1} parent=11 // pred_check
        %p247 = pneg %p80
      $region14: #{sketch_rnn_forward.1} parent=11 // pred_check_branch
        %249 = sbr.rel (%p247) target = $region16
      $region15: #{sketch_rnn_forward.1} parent=11 // pred_region
        %p250 = scmp.lt.s32.totalorder %s23, 0
        %s251 = scalar_select %p250, %s23, 0
        %s252 = smul.addr %s251, 8
        %s253 = scalar_lea.vmem %s1, %s252
      $region16: #{sketch_rnn_forward.1} parent=11 // pred_fallthru
        _
      // Predicated region
      $region17: #{sketch_rnn_forward.1} parent=11 // pred_check
        %p254 = pneg %p101
      $region18: #{sketch_rnn_forward.1} parent=11 // pred_check_branch
        %256 = sbr.rel (%p254) target = $region20
      $region19: #{sketch_rnn_forward.1} parent=11 // pred_region
        _
      $region20: #{sketch_rnn_forward.1} parent=11 // pred_fallthru
        _
      // Predicated region
      $region21: #{sketch_rnn_forward.1} parent=11 // pred_check
        %p257 = pneg %p122
      $region22: #{sketch_rnn_forward.1} parent=11 // pred_check_branch
        %259 = sbr.rel (%p257) target = $region24
      $region23: #{sketch_rnn_forward.1} parent=11 // pred_region
        _
      $region24: #{sketch_rnn_forward.1} parent=11 // pred_fallthru
        _
      // Predicated region
      $region25: #{sketch_rnn_forward.1} parent=11 // pred_check
        %p260 = pneg %p143
      $region26: #{sketch_rnn_forward.1} parent=11 // pred_check_branch
        %262 = sbr.rel (%p260) target = $region28
      $region27: #{sketch_rnn_forward.1} parent=11 // pred_region
        _
      $region28: #{sketch_rnn_forward.1} parent=11 // pred_fallthru
        _
      // Predicated region
      $region29: #{sketch_rnn_forward.1} parent=11 // pred_check
        %p263 = pneg %p164
      $region30: #{sketch_rnn_forward.1} parent=11 // pred_check_branch
        %265 = sbr.rel (%p263) target = $region32
      $region31: #{sketch_rnn_forward.1} parent=11 // pred_region
        _
      $region32: #{sketch_rnn_forward.1} parent=11 // pred_fallthru
        _
      // Predicated region
      $region33: #{sketch_rnn_forward.1} parent=11 // pred_check
        %p266 = pneg %p185
      $region34: #{sketch_rnn_forward.1} parent=11 // pred_check_branch
        %268 = sbr.rel (%p266) target = $region36
      $region35: #{sketch_rnn_forward.1} parent=11 // pred_region
        _
      $region36: #{sketch_rnn_forward.1} parent=11 // pred_fallthru
        _
      // Predicated region
      $region37: #{sketch_rnn_forward.1} parent=11 // pred_check
        %p269 = pneg %p206
      $region38: #{sketch_rnn_forward.1} parent=11 // pred_check_branch
        %271 = sbr.rel (%p269) target = $region40
      $region39: #{sketch_rnn_forward.1} parent=11 // pred_region
        _
      $region40: #{sketch_rnn_forward.1} parent=11 // pred_fallthru
        _
    $region12: #{sketch_rnn_forward.1} parent=5 // pred_fallthru
      _
    %p272 = scmp.lt.s32.totalorder %s14, 2
    // Predicated region
    $region41: #{sketch_rnn_forward.1} parent=5 // pred_check
      %p273 = pneg %p272
    $region42: #{sketch_rnn_forward.1} parent=5 // pred_check_branch
      %275 = sbr.rel (%p273) target = $region44
    $region43: #{sketch_rnn_forward.1} parent=5 // pred_region
      // Predicated region
      $region45: #{sketch_rnn_forward.1} parent=43 // pred_check
        %p276 = pneg %p48
      $region46: #{sketch_rnn_forward.1} parent=43 // pred_check_branch
        %278 = sbr.rel (%p276) target = $region48
      $region47: #{sketch_rnn_forward.1} parent=43 // pred_region
        %s279 = smul.u32 8, %s22
        %p280 = scmp.lt.s32.totalorder %s279, 15
        %s281 = scalar_select %p280, %s279, 15
        %p282 = scmp.lt.s32.totalorder %s21, 0
        %s283 = scalar_select %p282, %s21, 0
        %s284 = sadd.s32 %s283, %s281
        %s285 = smul.addr %s284, 8
        %s286 = scalar_lea.vmem %s0, %s285
        %s287 = smul.u32 8, %s22
      $region48: #{sketch_rnn_forward.1} parent=43 // pred_fallthru
        _
    $region44: #{sketch_rnn_forward.1} parent=5 // pred_fallthru
      _
    %p288 = scmp.le.s32.totalorder 1, %s14
    %p289 = scmp.lt.s32.totalorder %s14, 3
    %p290 = pnand %p288, %p289
    %p291 = pneg %p290
    // Predicated region
    $region49: #{sketch_rnn_forward.1} parent=5 // pred_check
      _
    $region50: #{sketch_rnn_forward.1} parent=5 // pred_check_branch
      %293 = sbr.rel (%p290) target = $region52
    $region51: #{sketch_rnn_forward.1} parent=5 // pred_region
      %s294 = ssub.s32 %s14, 1
      %s295 = smul.u32 8, %s24
      %p296 = scmp.lt.s32.totalorder %s295, 15
      %s297 = scalar_select %p296, %s295, 15
      %p298 = scmp.lt.s32.totalorder %s23, 0
      %s299 = scalar_select %p298, %s23, 0
      %s300 = sadd.s32 %s299, %s297
      %s301 = smul.addr %s300, 8
      %s302 = scalar_lea.vmem %s0, %s301
      %p303 = pneg %p54
      %p304 = pneg %p51
      %p305 = scmp.lt.s32.totalorder %s23, 0
      %s306 = scalar_select %p305, %s23, 0
      %s307 = smul.addr %s306, 8
      %s308 = scalar_lea.vmem %s1, %s307
      %p309 = pneg %p80
      %p310 = pneg %p77
      %p311 = pneg %p101
      %p312 = pneg %p98
      %p313 = pneg %p122
      %p314 = pneg %p119
      %p315 = pneg %p143
      %p316 = pneg %p140
      %p317 = pneg %p164
      %p318 = pneg %p161
      %p319 = pneg %p185
      %p320 = pneg %p182
      %p321 = pneg %p206
      %p322 = pneg %p203
      %p323 = pneg %p232
      %p324 = pneg %p229
      %p325 = scmp.lt.s32.totalorder %s23, 0
      %s326 = scalar_select %p325, %s23, 0
      %s327 = smul.addr %s326, 8
      %s328 = scalar_lea.vmem %s8, %s327
      %s329 = smul.u32 8, %s24
      %p330 = scmp.lt.s32.totalorder %s329, 15
      %s331 = scalar_select %p330, %s329, 15
      %p332 = scmp.lt.s32.totalorder %s23, 0
      %s333 = scalar_select %p332, %s23, 0
      %s334 = sadd.s32 %s333, %s331
      %s335 = smul.addr %s334, 8
      %s336 = scalar_lea.vmem %s0, %s335
      %s337 = smul.u32 8, %s24
      %p338 = scmp.lt.s32.totalorder %s23, 0
      %s339 = scalar_select %p338, %s23, 0
      %s340 = smul.addr %s339, 8
      %s341 = scalar_lea.vmem %s1, %s340
      %p342 = scmp.lt.s32.totalorder %s23, 0
      %s343 = scalar_select %p342, %s23, 0
      %s344 = smul.addr %s343, 8
      %s345 = scalar_lea.vmem %s8, %s344
      %p346 = scmp.eq.s32.totalorder %s24, 0
      // Predicated region
      $region53: #{sketch_rnn_forward.1} parent=51 // pred_check
        %p347 = pneg %p346
      $region54: #{sketch_rnn_forward.1} parent=51 // pred_check_branch
        %349 = sbr.rel (%p347) target = $region56
      $region55: #{sketch_rnn_forward.1} parent=51 // pred_region
        %vm350 = vcmask 261120
        %351 = vst.msk [vmem:[#allocation2] sm:$0xff] %vm350, 0.0
        %352 = vst.msk [vmem:[#allocation3] sm:$0xff] %vm350, 0.0
        %353 = vst.msk [vmem:[#allocation4] sm:$0xff] %vm350, 0.0
        %354 = vst.msk [vmem:[#allocation5] sm:$0xff] %vm350, 0.0
      $region56: #{sketch_rnn_forward.1} parent=51 // pred_fallthru
        _
      %v355 = vld [vmem:[%s2] sm:$0xff]
      %v356 = vld [vmem:[%s2 + $0x8] sm:$0xff]
      %v357 = vld [vmem:[%s2 + $0x10] sm:$0xff]
      %v358 = vld [vmem:[%s2 + $0x18] sm:$0xff]
      %v359 = vld [vmem:[%s3] sm:$0xff]
      %v360 = vld [vmem:[%s3 + $0x8] sm:$0xff]
      %v361 = vld [vmem:[%s3 + $0x10] sm:$0xff]
      %v362 = vld [vmem:[%s3 + $0x18] sm:$0xff]
      %v363 = vld [vmem:[%s4] sm:$0xff]
      %v364 = vld [vmem:[%s4 + $0x8] sm:$0xff]
      %v365 = vld [vmem:[%s4 + $0x10] sm:$0xff]
      %v366 = vld [vmem:[%s4 + $0x18] sm:$0xff]
      %v367 = vld [vmem:[%s5] sm:$0x1]
      %v369 = vlaneseq
      %v370 = vshrl.u32 %v369, 7
      %v371 = vsub.s32 0, %v370
      %v372 = vrot.slane %v367, %v371
      %v374 = vld [vmem:[%s341] sm:$0xff]
      %375 = vset.pattern.permute.xlu0 0
      %376 = vperm.xlu0 %375, %v374
      %v377 = vpop.permute.xlu0 %376
      %s378 = smul.u32 %s24, 8
      %v379 = vld [vmem:[#allocation2] sm:$0xff]
      %v380 = vld [vmem:[#allocation3] sm:$0xff]
      %v381 = vld [vmem:[#allocation4] sm:$0xff]
      %v382 = vld [vmem:[#allocation5] sm:$0xff]
      %vm383 = vcmask 261120
      %v385 = vsel %vm383, %v381, 0
      %387 = vmatprep.subr.mxu0 0.0
      %388 = vmatpush1.msra.mxu0 %v363
      %389 = vmatprep.subr.mxu0 0.0
      %390 = vmatpush1.msra.mxu0 %v364
      %391 = vmatprep.subr.mxu0 0.0
      %392 = vmatpush1.msra.mxu0 %v365
      %393 = vmatprep.subr.mxu0 0.0
      %394 = vmatpush1.msra.mxu0 %v366
      %395 = vmatprep.subr.mxu0 0.0
      %396 = vmatpush1.msra.mxu0 0.0
      %397 = vmatprep.subr.mxu0 0.0
      %398 = vmatpush1.msra.mxu0 0.0
      %399 = vmatprep.subr.mxu0 0.0
      %400 = vmatpush1.msra.mxu0 0.0
      %401 = vmatprep.subr.mxu0 0.0
      %402 = vmatpush1.msra.mxu0 0.0
      %403 = vmatprep.subr.mxu0 0.0
      %404 = vmatpush1.msra.mxu0 0.0
      %405 = vmatprep.subr.mxu0 0.0
      %406 = vmatpush1.msra.mxu0 0.0
      %407 = vmatprep.subr.mxu0 0.0
      %408 = vmatpush1.msra.mxu0 0.0
      %409 = vmatprep.subr.mxu0 0.0
      %410 = vmatpush1.msra.mxu0 0.0
      %411 = vmatprep.subr.mxu0 0.0
      %412 = vmatpush1.msra.mxu0 0.0
      %413 = vmatprep.subr.mxu0 0.0
      %414 = vmatpush1.msra.mxu0 0.0
      %415 = vmatprep.subr.mxu0 0.0
      %416 = vmatpush1.msra.mxu0 0.0
      %417 = vmatprep.subr.mxu0 0.0
      %418 = vmatpush1.msra.mxu0 0.0
      %419 = vmatprep.subr.mxu0 0.0
      %420 = vmatpush1.msra.mxu0 0.0
      %421 = vmatprep.subr.mxu0 0.0
      %422 = vmatpush1.msra.mxu0 0.0
      %423 = vmatprep.subr.mxu0 0.0
      %424 = vmatpush1.msra.mxu0 0.0
      %425 = vmatprep.subr.mxu0 0.0
      %426 = vmatpush1.msra.mxu0 0.0
      %427 = vmatprep.subr.mxu0 0.0
      %428 = vmatpush1.msra.mxu0 0.0
      %429 = vmatprep.subr.mxu0 0.0
      %430 = vmatpush1.msra.mxu0 0.0
      %431 = vmatprep.subr.mxu0 0.0
      %432 = vmatpush1.msra.mxu0 0.0
      %433 = vmatprep.subr.mxu0 0.0
      %434 = vmatpush1.msra.mxu0 0.0
      %435 = vmatprep.subr.mxu0 0.0
      %436 = vmatpush1.msra.mxu0 0.0
      %437 = vmatprep.subr.mxu0 0.0
      %438 = vmatpush1.msra.mxu0 0.0
      %439 = vmatprep.subr.mxu0 0.0
      %440 = vmatpush1.msra.mxu0 0.0
      %441 = vmatprep.subr.mxu0 0.0
      %442 = vmatpush1.msra.mxu0 0.0
      %443 = vmatprep.subr.mxu0 0.0
      %444 = vmatpush1.msra.mxu0 0.0
      %445 = vmatprep.subr.mxu0 0.0
      %446 = vmatpush1.msra.mxu0 0.0
      %447 = vmatprep.subr.mxu0 0.0
      %448 = vmatpush1.msra.mxu0 0.0
      %449 = vmatprep.subr.mxu0 0.0
      %450 = vmatpush1.msra.mxu0 0.0
      %451 = vmatprep.mubr.f32.mxu0 0.0
      %452 = vmatmul.mubr.f32.gmra.mrb[0].mxu0 %v385
      %v453 = vpop.f32.mrb[0].mxu0
      %v454 = vadd.f32 0.0, %v453
      %v455 = vpop.f32.mrb[0].mxu0
      %456 = vdwg.mxu0
      %v457 = vld [vmem:[%s336] sm:$0xff]
      %v459 = vsel %vm383, %v379, 0
      %461 = vmatprep.subr.mxu0 0.0
      %462 = vmatpush1.msra.mxu0 %v355
      %463 = vmatprep.subr.mxu0 0.0
      %464 = vmatpush1.msra.mxu0 %v356
      %465 = vmatprep.subr.mxu0 0.0
      %466 = vmatpush1.msra.mxu0 %v357
      %467 = vmatprep.subr.mxu0 0.0
      %468 = vmatpush1.msra.mxu0 %v358
      %469 = vmatprep.subr.mxu0 0.0
      %470 = vmatpush1.msra.mxu0 0.0
      %471 = vmatprep.subr.mxu0 0.0
      %472 = vmatpush1.msra.mxu0 0.0
      %473 = vmatprep.subr.mxu0 0.0
      %474 = vmatpush1.msra.mxu0 0.0
      %475 = vmatprep.subr.mxu0 0.0
      %476 = vmatpush1.msra.mxu0 0.0
      %477 = vmatprep.subr.mxu0 0.0
      %478 = vmatpush1.msra.mxu0 0.0
      %479 = vmatprep.subr.mxu0 0.0
      %480 = vmatpush1.msra.mxu0 0.0
      %481 = vmatprep.subr.mxu0 0.0
      %482 = vmatpush1.msra.mxu0 0.0
      %483 = vmatprep.subr.mxu0 0.0
      %484 = vmatpush1.msra.mxu0 0.0
      %485 = vmatprep.subr.mxu0 0.0
      %486 = vmatpush1.msra.mxu0 0.0
      %487 = vmatprep.subr.mxu0 0.0
      %488 = vmatpush1.msra.mxu0 0.0
      %489 = vmatprep.subr.mxu0 0.0
      %490 = vmatpush1.msra.mxu0 0.0
      %491 = vmatprep.subr.mxu0 0.0
      %492 = vmatpush1.msra.mxu0 0.0
      %493 = vmatprep.subr.mxu0 0.0
      %494 = vmatpush1.msra.mxu0 0.0
      %495 = vmatprep.subr.mxu0 0.0
      %496 = vmatpush1.msra.mxu0 0.0
      %497 = vmatprep.subr.mxu0 0.0
      %498 = vmatpush1.msra.mxu0 0.0
      %499 = vmatprep.subr.mxu0 0.0
      %500 = vmatpush1.msra.mxu0 0.0
      %501 = vmatprep.subr.mxu0 0.0
      %502 = vmatpush1.msra.mxu0 0.0
      %503 = vmatprep.subr.mxu0 0.0
      %504 = vmatpush1.msra.mxu0 0.0
      %505 = vmatprep.subr.mxu0 0.0
      %506 = vmatpush1.msra.mxu0 0.0
      %507 = vmatprep.subr.mxu0 0.0
      %508 = vmatpush1.msra.mxu0 0.0
      %509 = vmatprep.subr.mxu0 0.0
      %510 = vmatpush1.msra.mxu0 0.0
      %511 = vmatprep.subr.mxu0 0.0
      %512 = vmatpush1.msra.mxu0 0.0
      %513 = vmatprep.subr.mxu0 0.0
      %514 = vmatpush1.msra.mxu0 0.0
      %515 = vmatprep.subr.mxu0 0.0
      %516 = vmatpush1.msra.mxu0 0.0
      %517 = vmatprep.subr.mxu0 0.0
      %518 = vmatpush1.msra.mxu0 0.0
      %519 = vmatprep.subr.mxu0 0.0
      %520 = vmatpush1.msra.mxu0 0.0
      %521 = vmatprep.subr.mxu0 0.0
      %522 = vmatpush1.msra.mxu0 0.0
      %523 = vmatprep.subr.mxu0 0.0
      %524 = vmatpush1.msra.mxu0 0.0
      %525 = vmatprep.mubr.f32.mxu0 0.0
      %526 = vmatmul.mubr.f32.gmra.mrb[0].mxu0 %v459
      %v527 = vpop.f32.mrb[0].mxu0
      %v528 = vadd.f32 0.0, %v527
      %v529 = vpop.f32.mrb[0].mxu0
      %530 = vdwg.mxu0
      %v531 = vadd.f32 %v457, %v528
      %v532 = vxor.u32 %v531, 2147483648
      %v533 = vmul.f32 %v532, 1.442695
      %v534 = vpow.pop %v533
      %v535 = vadd.f32 %v534, 1.0
      %v536 = vrcp.pop %v535
      %v537 = vmul.f32 1.0, %v536
      %v538 = vtanh.pop %v531
      %540 = vrot.lane.b32.xlu0 %v380, 32
      %v541 = vpop.permute.xlu0 %540
      %v543 = vmul.f32 %v537, %v541
      %545 = vrot.lane.b32.xlu0 %v538, 32
      %v546 = vpop.permute.xlu0 %545
      %v548 = vmul.f32 %v537, %v546
      %550 = vrot.lane.b32.xlu0 %v548, 32
      %v551 = vpop.permute.xlu0 %550
      %v553 = vadd.f32 %v543, %v551
      %v554 = vtanh.pop %v553
      %556 = vrot.lane.b32.xlu0 %v554, 32
      %v557 = vpop.permute.xlu0 %556
      %v559 = vmul.f32 %v537, %v557
      %561 = vrot.lane.b32.xlu0 %v559, 64
      %v562 = vpop.permute.xlu0 %561
      %v563 = vsel %vm383, %v562, 0
      %565 = vmatprep.subr.mxu0 0.0
      %566 = vmatpush1.msra.mxu0 %v359
      %567 = vmatprep.subr.mxu0 0.0
      %568 = vmatpush1.msra.mxu0 %v360
      %569 = vmatprep.subr.mxu0 0.0
      %570 = vmatpush1.msra.mxu0 %v361
      %571 = vmatprep.subr.mxu0 0.0
      %572 = vmatpush1.msra.mxu0 %v362
      %573 = vmatprep.subr.mxu0 0.0
      %574 = vmatpush1.msra.mxu0 0.0
      %575 = vmatprep.subr.mxu0 0.0
      %576 = vmatpush1.msra.mxu0 0.0
      %577 = vmatprep.subr.mxu0 0.0
      %578 = vmatpush1.msra.mxu0 0.0
      %579 = vmatprep.subr.mxu0 0.0
      %580 = vmatpush1.msra.mxu0 0.0
      %581 = vmatprep.subr.mxu0 0.0
      %582 = vmatpush1.msra.mxu0 0.0
      %583 = vmatprep.subr.mxu0 0.0
      %584 = vmatpush1.msra.mxu0 0.0
      %585 = vmatprep.subr.mxu0 0.0
      %586 = vmatpush1.msra.mxu0 0.0
      %587 = vmatprep.subr.mxu0 0.0
      %588 = vmatpush1.msra.mxu0 0.0
      %589 = vmatprep.subr.mxu0 0.0
      %590 = vmatpush1.msra.mxu0 0.0
      %591 = vmatprep.subr.mxu0 0.0
      %592 = vmatpush1.msra.mxu0 0.0
      %593 = vmatprep.subr.mxu0 0.0
      %594 = vmatpush1.msra.mxu0 0.0
      %595 = vmatprep.subr.mxu0 0.0
      %596 = vmatpush1.msra.mxu0 0.0
      %597 = vmatprep.subr.mxu0 0.0
      %598 = vmatpush1.msra.mxu0 0.0
      %599 = vmatprep.subr.mxu0 0.0
      %600 = vmatpush1.msra.mxu0 0.0
      %601 = vmatprep.subr.mxu0 0.0
      %602 = vmatpush1.msra.mxu0 0.0
      %603 = vmatprep.subr.mxu0 0.0
      %604 = vmatpush1.msra.mxu0 0.0
      %605 = vmatprep.subr.mxu0 0.0
      %606 = vmatpush1.msra.mxu0 0.0
      %607 = vmatprep.subr.mxu0 0.0
      %608 = vmatpush1.msra.mxu0 0.0
      %609 = vmatprep.subr.mxu0 0.0
      %610 = vmatpush1.msra.mxu0 0.0
      %611 = vmatprep.subr.mxu0 0.0
      %612 = vmatpush1.msra.mxu0 0.0
      %613 = vmatprep.subr.mxu0 0.0
      %614 = vmatpush1.msra.mxu0 0.0
      %615 = vmatprep.subr.mxu0 0.0
      %616 = vmatpush1.msra.mxu0 0.0
      %617 = vmatprep.subr.mxu0 0.0
      %618 = vmatpush1.msra.mxu0 0.0
      %619 = vmatprep.subr.mxu0 0.0
      %620 = vmatpush1.msra.mxu0 0.0
      %621 = vmatprep.subr.mxu0 0.0
      %622 = vmatpush1.msra.mxu0 0.0
      %623 = vmatprep.subr.mxu0 0.0
      %624 = vmatpush1.msra.mxu0 0.0
      %625 = vmatprep.subr.mxu0 0.0
      %626 = vmatpush1.msra.mxu0 0.0
      %627 = vmatprep.subr.mxu0 0.0
      %628 = vmatpush1.msra.mxu0 0.0
      %629 = vmatprep.mubr.f32.mxu0 0.0
      %630 = vmatmul.mubr.f32.gmra.mrb[0].mxu0 %v563
      %v631 = vpop.f32.mrb[0].mxu0
      %v632 = vadd.f32 %v454, %v631
      %v633 = vpop.f32.mrb[0].mxu0
      %634 = vdwg.mxu0
      %v635 = vadd.f32 %v632, %v372
      %v636 = vxor.u32 %v635, 2147483648
      %v637 = vmul.f32 %v636, 1.442695
      %v638 = vpow.pop %v637
      %v639 = vadd.f32 %v638, 1.0
      %v640 = vrcp.pop %v639
      %v641 = vmul.f32 1.0, %v640
      %v642 = vtanh.pop %v635
      %644 = vrot.lane.b32.xlu0 %v382, 32
      %v645 = vpop.permute.xlu0 %644
      %v647 = vmul.f32 %v641, %v645
      %649 = vrot.lane.b32.xlu0 %v642, 32
      %v650 = vpop.permute.xlu0 %649
      %v652 = vmul.f32 %v641, %v650
      %654 = vrot.lane.b32.xlu0 %v652, 32
      %v655 = vpop.permute.xlu0 %654
      %v657 = vadd.f32 %v647, %v655
      %v658 = vtanh.pop %v657
      %660 = vrot.lane.b32.xlu0 %v658, 32
      %v661 = vpop.permute.xlu0 %660
      %v663 = vmul.f32 %v641, %v661
      %v664 = vstv %s378
      %vm665 = vcmp.lt.s32.totalorder %v664, %v377
      %666 = vrot.lane.b32.xlu0 %v381, 64
      %v667 = vpop.permute.xlu0 %666
      %v669 = vsel %vm665, %v663, %v667
      %671 = vrot.lane.b32.xlu0 %v669, 64
      %v672 = vpop.permute.xlu0 %671
      %v673 = vsel %vm383, %v672, 0
      %675 = vmatprep.subr.mxu0 0.0
      %676 = vmatpush1.msra.mxu0 %v363
      %677 = vmatprep.subr.mxu0 0.0
      %678 = vmatpush1.msra.mxu0 %v364
      %679 = vmatprep.subr.mxu0 0.0
      %680 = vmatpush1.msra.mxu0 %v365
      %681 = vmatprep.subr.mxu0 0.0
      %682 = vmatpush1.msra.mxu0 %v366
      %683 = vmatprep.subr.mxu0 0.0
      %684 = vmatpush1.msra.mxu0 0.0
      %685 = vmatprep.subr.mxu0 0.0
      %686 = vmatpush1.msra.mxu0 0.0
      %687 = vmatprep.subr.mxu0 0.0
      %688 = vmatpush1.msra.mxu0 0.0
      %689 = vmatprep.subr.mxu0 0.0
      %690 = vmatpush1.msra.mxu0 0.0
      %691 = vmatprep.subr.mxu0 0.0
      %692 = vmatpush1.msra.mxu0 0.0
      %693 = vmatprep.subr.mxu0 0.0
      %694 = vmatpush1.msra.mxu0 0.0
      %695 = vmatprep.subr.mxu0 0.0
      %696 = vmatpush1.msra.mxu0 0.0
      %697 = vmatprep.subr.mxu0 0.0
      %698 = vmatpush1.msra.mxu0 0.0
      %699 = vmatprep.subr.mxu0 0.0
      %700 = vmatpush1.msra.mxu0 0.0
      %701 = vmatprep.subr.mxu0 0.0
      %702 = vmatpush1.msra.mxu0 0.0
      %703 = vmatprep.subr.mxu0 0.0
      %704 = vmatpush1.msra.mxu0 0.0
      %705 = vmatprep.subr.mxu0 0.0
      %706 = vmatpush1.msra.mxu0 0.0
      %707 = vmatprep.subr.mxu0 0.0
      %708 = vmatpush1.msra.mxu0 0.0
      %709 = vmatprep.subr.mxu0 0.0
      %710 = vmatpush1.msra.mxu0 0.0
      %711 = vmatprep.subr.mxu0 0.0
      %712 = vmatpush1.msra.mxu0 0.0
      %713 = vmatprep.subr.mxu0 0.0
      %714 = vmatpush1.msra.mxu0 0.0
      %715 = vmatprep.subr.mxu0 0.0
      %716 = vmatpush1.msra.mxu0 0.0
      %717 = vmatprep.subr.mxu0 0.0
      %718 = vmatpush1.msra.mxu0 0.0
      %719 = vmatprep.subr.mxu0 0.0
      %720 = vmatpush1.msra.mxu0 0.0
      %721 = vmatprep.subr.mxu0 0.0
      %722 = vmatpush1.msra.mxu0 0.0
      %723 = vmatprep.subr.mxu0 0.0
      %724 = vmatpush1.msra.mxu0 0.0
      %725 = vmatprep.subr.mxu0 0.0
      %726 = vmatpush1.msra.mxu0 0.0
      %727 = vmatprep.subr.mxu0 0.0
      %728 = vmatpush1.msra.mxu0 0.0
      %729 = vmatprep.subr.mxu0 0.0
      %730 = vmatpush1.msra.mxu0 0.0
      %731 = vmatprep.subr.mxu0 0.0
      %732 = vmatpush1.msra.mxu0 0.0
      %733 = vmatprep.subr.mxu0 0.0
      %734 = vmatpush1.msra.mxu0 0.0
      %735 = vmatprep.subr.mxu0 0.0
      %736 = vmatpush1.msra.mxu0 0.0
      %737 = vmatprep.subr.mxu0 0.0
      %738 = vmatpush1.msra.mxu0 0.0
      %739 = vmatprep.mubr.f32.mxu0 0.0
      %740 = vmatmul.mubr.f32.gmra.mrb[0].mxu0 %v673
      %v741 = vpop.f32.mrb[0].mxu0
      %v742 = vadd.f32 0.0, %v741
      %v743 = vpop.f32.mrb[0].mxu0
      %744 = vdwg.mxu0
      %s745 = scalar_lea.vmem %s336, 8
      %v746 = vld [vmem:[%s745] sm:$0xff]
      %747 = vmatprep.subr.mxu0 0.0
      %748 = vmatpush1.msra.mxu0 %v355
      %749 = vmatprep.subr.mxu0 0.0
      %750 = vmatpush1.msra.mxu0 %v356
      %751 = vmatprep.subr.mxu0 0.0
      %752 = vmatpush1.msra.mxu0 %v357
      %753 = vmatprep.subr.mxu0 0.0
      %754 = vmatpush1.msra.mxu0 %v358
      %755 = vmatprep.subr.mxu0 0.0
      %756 = vmatpush1.msra.mxu0 0.0
      %757 = vmatprep.subr.mxu0 0.0
      %758 = vmatpush1.msra.mxu0 0.0
      %759 = vmatprep.subr.mxu0 0.0
      %760 = vmatpush1.msra.mxu0 0.0
      %761 = vmatprep.subr.mxu0 0.0
      %762 = vmatpush1.msra.mxu0 0.0
      %763 = vmatprep.subr.mxu0 0.0
      %764 = vmatpush1.msra.mxu0 0.0
      %765 = vmatprep.subr.mxu0 0.0
      %766 = vmatpush1.msra.mxu0 0.0
      %767 = vmatprep.subr.mxu0 0.0
      %768 = vmatpush1.msra.mxu0 0.0
      %769 = vmatprep.subr.mxu0 0.0
      %770 = vmatpush1.msra.mxu0 0.0
      %771 = vmatprep.subr.mxu0 0.0
      %772 = vmatpush1.msra.mxu0 0.0
      %773 = vmatprep.subr.mxu0 0.0
      %774 = vmatpush1.msra.mxu0 0.0
      %775 = vmatprep.subr.mxu0 0.0
      %776 = vmatpush1.msra.mxu0 0.0
      %777 = vmatprep.subr.mxu0 0.0
      %778 = vmatpush1.msra.mxu0 0.0
      %779 = vmatprep.subr.mxu0 0.0
      %780 = vmatpush1.msra.mxu0 0.0
      %781 = vmatprep.subr.mxu0 0.0
      %782 = vmatpush1.msra.mxu0 0.0
      %783 = vmatprep.subr.mxu0 0.0
      %784 = vmatpush1.msra.mxu0 0.0
      %785 = vmatprep.subr.mxu0 0.0
      %786 = vmatpush1.msra.mxu0 0.0
      %787 = vmatprep.subr.mxu0 0.0
      %788 = vmatpush1.msra.mxu0 0.0
      %789 = vmatprep.subr.mxu0 0.0
      %790 = vmatpush1.msra.mxu0 0.0
      %791 = vmatprep.subr.mxu0 0.0
      %792 = vmatpush1.msra.mxu0 0.0
      %793 = vmatprep.subr.mxu0 0.0
      %794 = vmatpush1.msra.mxu0 0.0
      %795 = vmatprep.subr.mxu0 0.0
      %796 = vmatpush1.msra.mxu0 0.0
      %797 = vmatprep.subr.mxu0 0.0
      %798 = vmatpush1.msra.mxu0 0.0
      %799 = vmatprep.subr.mxu0 0.0
      %800 = vmatpush1.msra.mxu0 0.0
      %801 = vmatprep.subr.mxu0 0.0
      %802 = vmatpush1.msra.mxu0 0.0
      %803 = vmatprep.subr.mxu0 0.0
      %804 = vmatpush1.msra.mxu0 0.0
      %805 = vmatprep.subr.mxu0 0.0
      %806 = vmatpush1.msra.mxu0 0.0
      %807 = vmatprep.subr.mxu0 0.0
      %808 = vmatpush1.msra.mxu0 0.0
      %809 = vmatprep.subr.mxu0 0.0
      %810 = vmatpush1.msra.mxu0 0.0
      %811 = vmatprep.mubr.f32.mxu0 0.0
      %812 = vmatmul.mubr.f32.gmra.mrb[0].mxu0 %v563
      %v813 = vpop.f32.mrb[0].mxu0
      %v814 = vadd.f32 0.0, %v813
      %v815 = vpop.f32.mrb[0].mxu0
      %816 = vdwg.mxu0
      %v817 = vadd.f32 %v746, %v814
      %v818 = vxor.u32 %v817, 2147483648
      %v819 = vmul.f32 %v818, 1.442695
      %v820 = vpow.pop %v819
      %v821 = vadd.f32 %v820, 1.0
      %v822 = vrcp.pop %v821
      %v823 = vmul.f32 1.0, %v822
      %v824 = vtanh.pop %v817
      %v825 = vmul.f32 %v823, %v553
      %827 = vrot.lane.b32.xlu0 %v824, 32
      %v828 = vpop.permute.xlu0 %827
      %v830 = vmul.f32 %v823, %v828
      %832 = vrot.lane.b32.xlu0 %v830, 32
      %v833 = vpop.permute.xlu0 %832
      %v835 = vadd.f32 %v825, %v833
      %v836 = vtanh.pop %v835
      %838 = vrot.lane.b32.xlu0 %v836, 32
      %v839 = vpop.permute.xlu0 %838
      %v841 = vmul.f32 %v823, %v839
      %843 = vrot.lane.b32.xlu0 %v841, 64
      %v844 = vpop.permute.xlu0 %843
      %v845 = vsel %vm383, %v844, 0
      %847 = vmatprep.subr.mxu0 0.0
      %848 = vmatpush1.msra.mxu0 %v359
      %849 = vmatprep.subr.mxu0 0.0
      %850 = vmatpush1.msra.mxu0 %v360
      %851 = vmatprep.subr.mxu0 0.0
      %852 = vmatpush1.msra.mxu0 %v361
      %853 = vmatprep.subr.mxu0 0.0
      %854 = vmatpush1.msra.mxu0 %v362
      %855 = vmatprep.subr.mxu0 0.0
      %856 = vmatpush1.msra.mxu0 0.0
      %857 = vmatprep.subr.mxu0 0.0
      %858 = vmatpush1.msra.mxu0 0.0
      %859 = vmatprep.subr.mxu0 0.0
      %860 = vmatpush1.msra.mxu0 0.0
      %861 = vmatprep.subr.mxu0 0.0
      %862 = vmatpush1.msra.mxu0 0.0
      %863 = vmatprep.subr.mxu0 0.0
      %864 = vmatpush1.msra.mxu0 0.0
      %865 = vmatprep.subr.mxu0 0.0
      %866 = vmatpush1.msra.mxu0 0.0
      %867 = vmatprep.subr.mxu0 0.0
      %868 = vmatpush1.msra.mxu0 0.0
      %869 = vmatprep.subr.mxu0 0.0
      %870 = vmatpush1.msra.mxu0 0.0
      %871 = vmatprep.subr.mxu0 0.0
      %872 = vmatpush1.msra.mxu0 0.0
      %873 = vmatprep.subr.mxu0 0.0
      %874 = vmatpush1.msra.mxu0 0.0
      %875 = vmatprep.subr.mxu0 0.0
      %876 = vmatpush1.msra.mxu0 0.0
      %877 = vmatprep.subr.mxu0 0.0
      %878 = vmatpush1.msra.mxu0 0.0
      %879 = vmatprep.subr.mxu0 0.0
      %880 = vmatpush1.msra.mxu0 0.0
      %881 = vmatprep.subr.mxu0 0.0
      %882 = vmatpush1.msra.mxu0 0.0
      %883 = vmatprep.subr.mxu0 0.0
      %884 = vmatpush1.msra.mxu0 0.0
      %885 = vmatprep.subr.mxu0 0.0
      %886 = vmatpush1.msra.mxu0 0.0
      %887 = vmatprep.subr.mxu0 0.0
      %888 = vmatpush1.msra.mxu0 0.0
      %889 = vmatprep.subr.mxu0 0.0
      %890 = vmatpush1.msra.mxu0 0.0
      %891 = vmatprep.subr.mxu0 0.0
      %892 = vmatpush1.msra.mxu0 0.0
      %893 = vmatprep.subr.mxu0 0.0
      %894 = vmatpush1.msra.mxu0 0.0
      %895 = vmatprep.subr.mxu0 0.0
      %896 = vmatpush1.msra.mxu0 0.0
      %897 = vmatprep.subr.mxu0 0.0
      %898 = vmatpush1.msra.mxu0 0.0
      %899 = vmatprep.subr.mxu0 0.0
      %900 = vmatpush1.msra.mxu0 0.0
      %901 = vmatprep.subr.mxu0 0.0
      %902 = vmatpush1.msra.mxu0 0.0
      %903 = vmatprep.subr.mxu0 0.0
      %904 = vmatpush1.msra.mxu0 0.0
      %905 = vmatprep.subr.mxu0 0.0
      %906 = vmatpush1.msra.mxu0 0.0
      %907 = vmatprep.subr.mxu0 0.0
      %908 = vmatpush1.msra.mxu0 0.0
      %909 = vmatprep.subr.mxu0 0.0
      %910 = vmatpush1.msra.mxu0 0.0
      %911 = vmatprep.mubr.f32.mxu0 0.0
      %912 = vmatmul.mubr.f32.gmra.mrb[0].mxu0 %v845
      %v913 = vpop.f32.mrb[0].mxu0
      %v914 = vadd.f32 %v742, %v913
      %v915 = vpop.f32.mrb[0].mxu0
      %916 = vdwg.mxu0
      %v917 = vadd.f32 %v914, %v372
      %v918 = vxor.u32 %v917, 2147483648
      %v919 = vmul.f32 %v918, 1.442695
      %v920 = vpow.pop %v919
      %v921 = vadd.f32 %v920, 1.0
      %v922 = vrcp.pop %v921
      %v923 = vmul.f32 1.0, %v922
      %v924 = vtanh.pop %v917
      %v925 = vmul.f32 %v923, %v657
      %927 = vrot.lane.b32.xlu0 %v924, 32
      %v928 = vpop.permute.xlu0 %927
      %v930 = vmul.f32 %v923, %v928
      %932 = vrot.lane.b32.xlu0 %v930, 32
      %v933 = vpop.permute.xlu0 %932
      %v935 = vadd.f32 %v925, %v933
      %v936 = vtanh.pop %v935
      %938 = vrot.lane.b32.xlu0 %v936, 32
      %v939 = vpop.permute.xlu0 %938
      %v941 = vmul.f32 %v923, %v939
      %s942 = sadd.s32 %s378, 1
      %v943 = vstv %s942
      %vm944 = vcmp.lt.s32.totalorder %v943, %v377
      %v945 = vsel %vm944, %v941, %v669
      %947 = vrot.lane.b32.xlu0 %v945, 64
      %v948 = vpop.permute.xlu0 %947
      %v949 = vsel %vm383, %v948, 0
      %951 = vmatprep.subr.mxu0 0.0
      %952 = vmatpush1.msra.mxu0 %v363
      %953 = vmatprep.subr.mxu0 0.0
      %954 = vmatpush1.msra.mxu0 %v364
      %955 = vmatprep.subr.mxu0 0.0
      %956 = vmatpush1.msra.mxu0 %v365
      %957 = vmatprep.subr.mxu0 0.0
      %958 = vmatpush1.msra.mxu0 %v366
      %959 = vmatprep.subr.mxu0 0.0
      %960 = vmatpush1.msra.mxu0 0.0
      %961 = vmatprep.subr.mxu0 0.0
      %962 = vmatpush1.msra.mxu0 0.0
      %963 = vmatprep.subr.mxu0 0.0
      %964 = vmatpush1.msra.mxu0 0.0
      %965 = vmatprep.subr.mxu0 0.0
      %966 = vmatpush1.msra.mxu0 0.0
      %967 = vmatprep.subr.mxu0 0.0
      %968 = vmatpush1.msra.mxu0 0.0
      %969 = vmatprep.subr.mxu0 0.0
      %970 = vmatpush1.msra.mxu0 0.0
      %971 = vmatprep.subr.mxu0 0.0
      %972 = vmatpush1.msra.mxu0 0.0
      %973 = vmatprep.subr.mxu0 0.0
      %974 = vmatpush1.msra.mxu0 0.0
      %975 = vmatprep.subr.mxu0 0.0
      %976 = vmatpush1.msra.mxu0 0.0
      %977 = vmatprep.subr.mxu0 0.0
      %978 = vmatpush1.msra.mxu0 0.0
      %979 = vmatprep.subr.mxu0 0.0
      %980 = vmatpush1.msra.mxu0 0.0
      %981 = vmatprep.subr.mxu0 0.0
      %982 = vmatpush1.msra.mxu0 0.0
      %983 = vmatprep.subr.mxu0 0.0
      %984 = vmatpush1.msra.mxu0 0.0
      %985 = vmatprep.subr.mxu0 0.0
      %986 = vmatpush1.msra.mxu0 0.0
      %987 = vmatprep.subr.mxu0 0.0
      %988 = vmatpush1.msra.mxu0 0.0
      %989 = vmatprep.subr.mxu0 0.0
      %990 = vmatpush1.msra.mxu0 0.0
      %991 = vmatprep.subr.mxu0 0.0
      %992 = vmatpush1.msra.mxu0 0.0
      %993 = vmatprep.subr.mxu0 0.0
      %994 = vmatpush1.msra.mxu0 0.0
      %995 = vmatprep.subr.mxu0 0.0
      %996 = vmatpush1.msra.mxu0 0.0
      %997 = vmatprep.subr.mxu0 0.0
      %998 = vmatpush1.msra.mxu0 0.0
      %999 = vmatprep.subr.mxu0 0.0
      %1000 = vmatpush1.msra.mxu0 0.0
      %1001 = vmatprep.subr.mxu0 0.0
      %1002 = vmatpush1.msra.mxu0 0.0
      %1003 = vmatprep.subr.mxu0 0.0
      %1004 = vmatpush1.msra.mxu0 0.0
      %1005 = vmatprep.subr.mxu0 0.0
      %1006 = vmatpush1.msra.mxu0 0.0
      %1007 = vmatprep.subr.mxu0 0.0
      %1008 = vmatpush1.msra.mxu0 0.0
      %1009 = vmatprep.subr.mxu0 0.0
      %1010 = vmatpush1.msra.mxu0 0.0
      %1011 = vmatprep.subr.mxu0 0.0
      %1012 = vmatpush1.msra.mxu0 0.0
      %1013 = vmatprep.subr.mxu0 0.0
      %1014 = vmatpush1.msra.mxu0 0.0
      %1015 = vmatprep.mubr.f32.mxu0 0.0
      %1016 = vmatmul.mubr.f32.gmra.mrb[0].mxu0 %v949
      %v1017 = vpop.f32.mrb[0].mxu0
      %v1018 = vadd.f32 0.0, %v1017
      %v1019 = vpop.f32.mrb[0].mxu0
      %1020 = vdwg.mxu0
      %s1021 = scalar_lea.vmem %s336, 16
      %v1022 = vld [vmem:[%s1021] sm:$0xff]
      %1023 = vmatprep.subr.mxu0 0.0
      %1024 = vmatpush1.msra.mxu0 %v355
      %1025 = vmatprep.subr.mxu0 0.0
      %1026 = vmatpush1.msra.mxu0 %v356
      %1027 = vmatprep.subr.mxu0 0.0
      %1028 = vmatpush1.msra.mxu0 %v357
      %1029 = vmatprep.subr.mxu0 0.0
      %1030 = vmatpush1.msra.mxu0 %v358
      %1031 = vmatprep.subr.mxu0 0.0
      %1032 = vmatpush1.msra.mxu0 0.0
      %1033 = vmatprep.subr.mxu0 0.0
      %1034 = vmatpush1.msra.mxu0 0.0
      %1035 = vmatprep.subr.mxu0 0.0
      %1036 = vmatpush1.msra.mxu0 0.0
      %1037 = vmatprep.subr.mxu0 0.0
      %1038 = vmatpush1.msra.mxu0 0.0
      %1039 = vmatprep.subr.mxu0 0.0
      %1040 = vmatpush1.msra.mxu0 0.0
      %1041 = vmatprep.subr.mxu0 0.0
      %1042 = vmatpush1.msra.mxu0 0.0
      %1043 = vmatprep.subr.mxu0 0.0
      %1044 = vmatpush1.msra.mxu0 0.0
      %1045 = vmatprep.subr.mxu0 0.0
      %1046 = vmatpush1.msra.mxu0 0.0
      %1047 = vmatprep.subr.mxu0 0.0
      %1048 = vmatpush1.msra.mxu0 0.0
      %1049 = vmatprep.subr.mxu0 0.0
      %1050 = vmatpush1.msra.mxu0 0.0
      %1051 = vmatprep.subr.mxu0 0.0
      %1052 = vmatpush1.msra.mxu0 0.0
      %1053 = vmatprep.subr.mxu0 0.0
      %1054 = vmatpush1.msra.mxu0 0.0
      %1055 = vmatprep.subr.mxu0 0.0
      %1056 = vmatpush1.msra.mxu0 0.0
      %1057 = vmatprep.subr.mxu0 0.0
      %1058 = vmatpush1.msra.mxu0 0.0
      %1059 = vmatprep.subr.mxu0 0.0
      %1060 = vmatpush1.msra.mxu0 0.0
      %1061 = vmatprep.subr.mxu0 0.0
      %1062 = vmatpush1.msra.mxu0 0.0
      %1063 = vmatprep.subr.mxu0 0.0
      %1064 = vmatpush1.msra.mxu0 0.0
      %1065 = vmatprep.subr.mxu0 0.0
      %1066 = vmatpush1.msra.mxu0 0.0
      %1067 = vmatprep.subr.mxu0 0.0
      %1068 = vmatpush1.msra.mxu0 0.0
      %1069 = vmatprep.subr.mxu0 0.0
      %1070 = vmatpush1.msra.mxu0 0.0
      %1071 = vmatprep.subr.mxu0 0.0
      %1072 = vmatpush1.msra.mxu0 0.0
      %1073 = vmatprep.subr.mxu0 0.0
      %1074 = vmatpush1.msra.mxu0 0.0
      %1075 = vmatprep.subr.mxu0 0.0
      %1076 = vmatpush1.msra.mxu0 0.0
      %1077 = vmatprep.subr.mxu0 0.0
      %1078 = vmatpush1.msra.mxu0 0.0
      %1079 = vmatprep.subr.mxu0 0.0
      %1080 = vmatpush1.msra.mxu0 0.0
      %1081 = vmatprep.subr.mxu0 0.0
      %1082 = vmatpush1.msra.mxu0 0.0
      %1083 = vmatprep.subr.mxu0 0.0
      %1084 = vmatpush1.msra.mxu0 0.0
      %1085 = vmatprep.subr.mxu0 0.0
      %1086 = vmatpush1.msra.mxu0 0.0
      %1087 = vmatprep.mubr.f32.mxu0 0.0
      %1088 = vmatmul.mubr.f32.gmra.mrb[0].mxu0 %v845
      %v1089 = vpop.f32.mrb[0].mxu0
      %v1090 = vadd.f32 0.0, %v1089
      %v1091 = vpop.f32.mrb[0].mxu0
      %1092 = vdwg.mxu0
      %v1093 = vadd.f32 %v1022, %v1090
      %v1094 = vxor.u32 %v1093, 2147483648
      %v1095 = vmul.f32 %v1094, 1.442695
      %v1096 = vpow.pop %v1095
      %v1097 = vadd.f32 %v1096, 1.0
      %v1098 = vrcp.pop %v1097
      %v1099 = vmul.f32 1.0, %v1098
      %v1100 = vtanh.pop %v1093
      %v1101 = vmul.f32 %v1099, %v835
      %1103 = vrot.lane.b32.xlu0 %v1100, 32
      %v1104 = vpop.permute.xlu0 %1103
      %v1106 = vmul.f32 %v1099, %v1104
      %1108 = vrot.lane.b32.xlu0 %v1106, 32
      %v1109 = vpop.permute.xlu0 %1108
      %v1111 = vadd.f32 %v1101, %v1109
      %v1112 = vtanh.pop %v1111
      %1114 = vrot.lane.b32.xlu0 %v1112, 32
      %v1115 = vpop.permute.xlu0 %1114
      %v1117 = vmul.f32 %v1099, %v1115
      %1119 = vrot.lane.b32.xlu0 %v1117, 64
      %v1120 = vpop.permute.xlu0 %1119
      %v1121 = vsel %vm383, %v1120, 0
      %1123 = vmatprep.subr.mxu0 0.0
      %1124 = vmatpush1.msra.mxu0 %v359
      %1125 = vmatprep.subr.mxu0 0.0
      %1126 = vmatpush1.msra.mxu0 %v360
      %1127 = vmatprep.subr.mxu0 0.0
      %1128 = vmatpush1.msra.mxu0 %v361
      %1129 = vmatprep.subr.mxu0 0.0
      %1130 = vmatpush1.msra.mxu0 %v362
      %1131 = vmatprep.subr.mxu0 0.0
      %1132 = vmatpush1.msra.mxu0 0.0
      %1133 = vmatprep.subr.mxu0 0.0
      %1134 = vmatpush1.msra.mxu0 0.0
      %1135 = vmatprep.subr.mxu0 0.0
      %1136 = vmatpush1.msra.mxu0 0.0
      %1137 = vmatprep.subr.mxu0 0.0
      %1138 = vmatpush1.msra.mxu0 0.0
      %1139 = vmatprep.subr.mxu0 0.0
      %1140 = vmatpush1.msra.mxu0 0.0
      %1141 = vmatprep.subr.mxu0 0.0
      %1142 = vmatpush1.msra.mxu0 0.0
      %1143 = vmatprep.subr.mxu0 0.0
      %1144 = vmatpush1.msra.mxu0 0.0
      %1145 = vmatprep.subr.mxu0 0.0
      %1146 = vmatpush1.msra.mxu0 0.0
      %1147 = vmatprep.subr.mxu0 0.0
      %1148 = vmatpush1.msra.mxu0 0.0
      %1149 = vmatprep.subr.mxu0 0.0
      %1150 = vmatpush1.msra.mxu0 0.0
      %1151 = vmatprep.subr.mxu0 0.0
      %1152 = vmatpush1.msra.mxu0 0.0
      %1153 = vmatprep.subr.mxu0 0.0
      %1154 = vmatpush1.msra.mxu0 0.0
      %1155 = vmatprep.subr.mxu0 0.0
      %1156 = vmatpush1.msra.mxu0 0.0
      %1157 = vmatprep.subr.mxu0 0.0
      %1158 = vmatpush1.msra.mxu0 0.0
      %1159 = vmatprep.subr.mxu0 0.0
      %1160 = vmatpush1.msra.mxu0 0.0
      %1161 = vmatprep.subr.mxu0 0.0
      %1162 = vmatpush1.msra.mxu0 0.0
      %1163 = vmatprep.subr.mxu0 0.0
      %1164 = vmatpush1.msra.mxu0 0.0
      %1165 = vmatprep.subr.mxu0 0.0
      %1166 = vmatpush1.msra.mxu0 0.0
      %1167 = vmatprep.subr.mxu0 0.0
      %1168 = vmatpush1.msra.mxu0 0.0
      %1169 = vmatprep.subr.mxu0 0.0
      %1170 = vmatpush1.msra.mxu0 0.0
      %1171 = vmatprep.subr.mxu0 0.0
      %1172 = vmatpush1.msra.mxu0 0.0
      %1173 = vmatprep.subr.mxu0 0.0
      %1174 = vmatpush1.msra.mxu0 0.0
      %1175 = vmatprep.subr.mxu0 0.0
      %1176 = vmatpush1.msra.mxu0 0.0
      %1177 = vmatprep.subr.mxu0 0.0
      %1178 = vmatpush1.msra.mxu0 0.0
      %1179 = vmatprep.subr.mxu0 0.0
      %1180 = vmatpush1.msra.mxu0 0.0
      %1181 = vmatprep.subr.mxu0 0.0
      %1182 = vmatpush1.msra.mxu0 0.0
      %1183 = vmatprep.subr.mxu0 0.0
      %1184 = vmatpush1.msra.mxu0 0.0
      %1185 = vmatprep.subr.mxu0 0.0
      %1186 = vmatpush1.msra.mxu0 0.0
      %1187 = vmatprep.mubr.f32.mxu0 0.0
      %1188 = vmatmul.mubr.f32.gmra.mrb[0].mxu0 %v1121
      %v1189 = vpop.f32.mrb[0].mxu0
      %v1190 = vadd.f32 %v1018, %v1189
      %v1191 = vpop.f32.mrb[0].mxu0
      %1192 = vdwg.mxu0
      %v1193 = vadd.f32 %v1190, %v372
      %v1194 = vxor.u32 %v1193, 2147483648
      %v1195 = vmul.f32 %v1194, 1.442695
      %v1196 = vpow.pop %v1195
      %v1197 = vadd.f32 %v1196, 1.0
      %v1198 = vrcp.pop %v1197
      %v1199 = vmul.f32 1.0, %v1198
      %v1200 = vtanh.pop %v1193
      %v1201 = vmul.f32 %v1199, %v935
      %1203 = vrot.lane.b32.xlu0 %v1200, 32
      %v1204 = vpop.permute.xlu0 %1203
      %v1206 = vmul.f32 %v1199, %v1204
      %1208 = vrot.lane.b32.xlu0 %v1206, 32
      %v1209 = vpop.permute.xlu0 %1208
      %v1211 = vadd.f32 %v1201, %v1209
      %v1212 = vtanh.pop %v1211
      %1214 = vrot.lane.b32.xlu0 %v1212, 32
      %v1215 = vpop.permute.xlu0 %1214
      %v1217 = vmul.f32 %v1199, %v1215
      %s1218 = sadd.s32 %s378, 2
      %v1219 = vstv %s1218
      %vm1220 = vcmp.lt.s32.totalorder %v1219, %v377
      %v1221 = vsel %vm1220, %v1217, %v945
      %1223 = vrot.lane.b32.xlu0 %v1221, 64
      %v1224 = vpop.permute.xlu0 %1223
      %v1225 = vsel %vm383, %v1224, 0
      %1227 = vmatprep.subr.mxu0 0.0
      %1228 = vmatpush1.msra.mxu0 %v363
      %1229 = vmatprep.subr.mxu0 0.0
      %1230 = vmatpush1.msra.mxu0 %v364
      %1231 = vmatprep.subr.mxu0 0.0
      %1232 = vmatpush1.msra.mxu0 %v365
      %1233 = vmatprep.subr.mxu0 0.0
      %1234 = vmatpush1.msra.mxu0 %v366
      %1235 = vmatprep.subr.mxu0 0.0
      %1236 = vmatpush1.msra.mxu0 0.0
      %1237 = vmatprep.subr.mxu0 0.0
      %1238 = vmatpush1.msra.mxu0 0.0
      %1239 = vmatprep.subr.mxu0 0.0
      %1240 = vmatpush1.msra.mxu0 0.0
      %1241 = vmatprep.subr.mxu0 0.0
      %1242 = vmatpush1.msra.mxu0 0.0
      %1243 = vmatprep.subr.mxu0 0.0
      %1244 = vmatpush1.msra.mxu0 0.0
      %1245 = vmatprep.subr.mxu0 0.0
      %1246 = vmatpush1.msra.mxu0 0.0
      %1247 = vmatprep.subr.mxu0 0.0
      %1248 = vmatpush1.msra.mxu0 0.0
      %1249 = vmatprep.subr.mxu0 0.0
      %1250 = vmatpush1.msra.mxu0 0.0
      %1251 = vmatprep.subr.mxu0 0.0
      %1252 = vmatpush1.msra.mxu0 0.0
      %1253 = vmatprep.subr.mxu0 0.0
      %1254 = vmatpush1.msra.mxu0 0.0
      %1255 = vmatprep.subr.mxu0 0.0
      %1256 = vmatpush1.msra.mxu0 0.0
      %1257 = vmatprep.subr.mxu0 0.0
      %1258 = vmatpush1.msra.mxu0 0.0
      %1259 = vmatprep.subr.mxu0 0.0
      %1260 = vmatpush1.msra.mxu0 0.0
      %1261 = vmatprep.subr.mxu0 0.0
      %1262 = vmatpush1.msra.mxu0 0.0
      %1263 = vmatprep.subr.mxu0 0.0
      %1264 = vmatpush1.msra.mxu0 0.0
      %1265 = vmatprep.subr.mxu0 0.0
      %1266 = vmatpush1.msra.mxu0 0.0
      %1267 = vmatprep.subr.mxu0 0.0
      %1268 = vmatpush1.msra.mxu0 0.0
      %1269 = vmatprep.subr.mxu0 0.0
      %1270 = vmatpush1.msra.mxu0 0.0
      %1271 = vmatprep.subr.mxu0 0.0
      %1272 = vmatpush1.msra.mxu0 0.0
      %1273 = vmatprep.subr.mxu0 0.0
      %1274 = vmatpush1.msra.mxu0 0.0
      %1275 = vmatprep.subr.mxu0 0.0
      %1276 = vmatpush1.msra.mxu0 0.0
      %1277 = vmatprep.subr.mxu0 0.0
      %1278 = vmatpush1.msra.mxu0 0.0
      %1279 = vmatprep.subr.mxu0 0.0
      %1280 = vmatpush1.msra.mxu0 0.0
      %1281 = vmatprep.subr.mxu0 0.0
      %1282 = vmatpush1.msra.mxu0 0.0
      %1283 = vmatprep.subr.mxu0 0.0
      %1284 = vmatpush1.msra.mxu0 0.0
      %1285 = vmatprep.subr.mxu0 0.0
      %1286 = vmatpush1.msra.mxu0 0.0
      %1287 = vmatprep.subr.mxu0 0.0
      %1288 = vmatpush1.msra.mxu0 0.0
      %1289 = vmatprep.subr.mxu0 0.0
      %1290 = vmatpush1.msra.mxu0 0.0
      %1291 = vmatprep.mubr.f32.mxu0 0.0
      %1292 = vmatmul.mubr.f32.gmra.mrb[0].mxu0 %v1225
      %v1293 = vpop.f32.mrb[0].mxu0
      %v1294 = vadd.f32 0.0, %v1293
      %v1295 = vpop.f32.mrb[0].mxu0
      %1296 = vdwg.mxu0
      %s1297 = scalar_lea.vmem %s336, 24
      %v1298 = vld [vmem:[%s1297] sm:$0xff]
      %1299 = vmatprep.subr.mxu0 0.0
      %1300 = vmatpush1.msra.mxu0 %v355
      %1301 = vmatprep.subr.mxu0 0.0
      %1302 = vmatpush1.msra.mxu0 %v356
      %1303 = vmatprep.subr.mxu0 0.0
      %1304 = vmatpush1.msra.mxu0 %v357
      %1305 = vmatprep.subr.mxu0 0.0
      %1306 = vmatpush1.msra.mxu0 %v358
      %1307 = vmatprep.subr.mxu0 0.0
      %1308 = vmatpush1.msra.mxu0 0.0
      %1309 = vmatprep.subr.mxu0 0.0
      %1310 = vmatpush1.msra.mxu0 0.0
      %1311 = vmatprep.subr.mxu0 0.0
      %1312 = vmatpush1.msra.mxu0 0.0
      %1313 = vmatprep.subr.mxu0 0.0
      %1314 = vmatpush1.msra.mxu0 0.0
      %1315 = vmatprep.subr.mxu0 0.0
      %1316 = vmatpush1.msra.mxu0 0.0
      %1317 = vmatprep.subr.mxu0 0.0
      %1318 = vmatpush1.msra.mxu0 0.0
      %1319 = vmatprep.subr.mxu0 0.0
      %1320 = vmatpush1.msra.mxu0 0.0
      %1321 = vmatprep.subr.mxu0 0.0
      %1322 = vmatpush1.msra.mxu0 0.0
      %1323 = vmatprep.subr.mxu0 0.0
      %1324 = vmatpush1.msra.mxu0 0.0
      %1325 = vmatprep.subr.mxu0 0.0
      %1326 = vmatpush1.msra.mxu0 0.0
      %1327 = vmatprep.subr.mxu0 0.0
      %1328 = vmatpush1.msra.mxu0 0.0
      %1329 = vmatprep.subr.mxu0 0.0
      %1330 = vmatpush1.msra.mxu0 0.0
      %1331 = vmatprep.subr.mxu0 0.0
      %1332 = vmatpush1.msra.mxu0 0.0
      %1333 = vmatprep.subr.mxu0 0.0
      %1334 = vmatpush1.msra.mxu0 0.0
      %1335 = vmatprep.subr.mxu0 0.0
      %1336 = vmatpush1.msra.mxu0 0.0
      %1337 = vmatprep.subr.mxu0 0.0
      %1338 = vmatpush1.msra.mxu0 0.0
      %1339 = vmatprep.subr.mxu0 0.0
      %1340 = vmatpush1.msra.mxu0 0.0
      %1341 = vmatprep.subr.mxu0 0.0
      %1342 = vmatpush1.msra.mxu0 0.0
      %1343 = vmatprep.subr.mxu0 0.0
      %1344 = vmatpush1.msra.mxu0 0.0
      %1345 = vmatprep.subr.mxu0 0.0
      %1346 = vmatpush1.msra.mxu0 0.0
      %1347 = vmatprep.subr.mxu0 0.0
      %1348 = vmatpush1.msra.mxu0 0.0
      %1349 = vmatprep.subr.mxu0 0.0
      %1350 = vmatpush1.msra.mxu0 0.0
      %1351 = vmatprep.subr.mxu0 0.0
      %1352 = vmatpush1.msra.mxu0 0.0
      %1353 = vmatprep.subr.mxu0 0.0
      %1354 = vmatpush1.msra.mxu0 0.0
      %1355 = vmatprep.subr.mxu0 0.0
      %1356 = vmatpush1.msra.mxu0 0.0
      %1357 = vmatprep.subr.mxu0 0.0
      %1358 = vmatpush1.msra.mxu0 0.0
      %1359 = vmatprep.subr.mxu0 0.0
      %1360 = vmatpush1.msra.mxu0 0.0
      %1361 = vmatprep.subr.mxu0 0.0
      %1362 = vmatpush1.msra.mxu0 0.0
      %1363 = vmatprep.mubr.f32.mxu0 0.0
      %1364 = vmatmul.mubr.f32.gmra.mrb[0].mxu0 %v1121
      %v1365 = vpop.f32.mrb[0].mxu0
      %v1366 = vadd.f32 0.0, %v1365
      %v1367 = vpop.f32.mrb[0].mxu0
      %1368 = vdwg.mxu0
      %v1369 = vadd.f32 %v1298, %v1366
      %v1370 = vxor.u32 %v1369, 2147483648
      %v1371 = vmul.f32 %v1370, 1.442695
      %v1372 = vpow.pop %v1371
      %v1373 = vadd.f32 %v1372, 1.0
      %v1374 = vrcp.pop %v1373
      %v1375 = vmul.f32 1.0, %v1374
      %v1376 = vtanh.pop %v1369
      %v1377 = vmul.f32 %v1375, %v1111
      %1379 = vrot.lane.b32.xlu0 %v1376, 32
      %v1380 = vpop.permute.xlu0 %1379
      %v1382 = vmul.f32 %v1375, %v1380
      %1384 = vrot.lane.b32.xlu0 %v1382, 32
      %v1385 = vpop.permute.xlu0 %1384
      %v1387 = vadd.f32 %v1377, %v1385
      %v1388 = vtanh.pop %v1387
      %1390 = vrot.lane.b32.xlu0 %v1388, 32
      %v1391 = vpop.permute.xlu0 %1390
      %v1393 = vmul.f32 %v1375, %v1391
      %1395 = vrot.lane.b32.xlu0 %v1393, 64
      %v1396 = vpop.permute.xlu0 %1395
      %v1397 = vsel %vm383, %v1396, 0
      %1399 = vmatprep.subr.mxu0 0.0
      %1400 = vmatpush1.msra.mxu0 %v359
      %1401 = vmatprep.subr.mxu0 0.0
      %1402 = vmatpush1.msra.mxu0 %v360
      %1403 = vmatprep.subr.mxu0 0.0
      %1404 = vmatpush1.msra.mxu0 %v361
      %1405 = vmatprep.subr.mxu0 0.0
      %1406 = vmatpush1.msra.mxu0 %v362
      %1407 = vmatprep.subr.mxu0 0.0
      %1408 = vmatpush1.msra.mxu0 0.0
      %1409 = vmatprep.subr.mxu0 0.0
      %1410 = vmatpush1.msra.mxu0 0.0
      %1411 = vmatprep.subr.mxu0 0.0
      %1412 = vmatpush1.msra.mxu0 0.0
      %1413 = vmatprep.subr.mxu0 0.0
      %1414 = vmatpush1.msra.mxu0 0.0
      %1415 = vmatprep.subr.mxu0 0.0
      %1416 = vmatpush1.msra.mxu0 0.0
      %1417 = vmatprep.subr.mxu0 0.0
      %1418 = vmatpush1.msra.mxu0 0.0
      %1419 = vmatprep.subr.mxu0 0.0
      %1420 = vmatpush1.msra.mxu0 0.0
      %1421 = vmatprep.subr.mxu0 0.0
      %1422 = vmatpush1.msra.mxu0 0.0
      %1423 = vmatprep.subr.mxu0 0.0
      %1424 = vmatpush1.msra.mxu0 0.0
      %1425 = vmatprep.subr.mxu0 0.0
      %1426 = vmatpush1.msra.mxu0 0.0
      %1427 = vmatprep.subr.mxu0 0.0
      %1428 = vmatpush1.msra.mxu0 0.0
      %1429 = vmatprep.subr.mxu0 0.0
      %1430 = vmatpush1.msra.mxu0 0.0
      %1431 = vmatprep.subr.mxu0 0.0
      %1432 = vmatpush1.msra.mxu0 0.0
      %1433 = vmatprep.subr.mxu0 0.0
      %1434 = vmatpush1.msra.mxu0 0.0
      %1435 = vmatprep.subr.mxu0 0.0
      %1436 = vmatpush1.msra.mxu0 0.0
      %1437 = vmatprep.subr.mxu0 0.0
      %1438 = vmatpush1.msra.mxu0 0.0
      %1439 = vmatprep.subr.mxu0 0.0
      %1440 = vmatpush1.msra.mxu0 0.0
      %1441 = vmatprep.subr.mxu0 0.0
      %1442 = vmatpush1.msra.mxu0 0.0
      %1443 = vmatprep.subr.mxu0 0.0
      %1444 = vmatpush1.msra.mxu0 0.0
      %1445 = vmatprep.subr.mxu0 0.0
      %1446 = vmatpush1.msra.mxu0 0.0
      %1447 = vmatprep.subr.mxu0 0.0
      %1448 = vmatpush1.msra.mxu0 0.0
      %1449 = vmatprep.subr.mxu0 0.0
      %1450 = vmatpush1.msra.mxu0 0.0
      %1451 = vmatprep.subr.mxu0 0.0
      %1452 = vmatpush1.msra.mxu0 0.0
      %1453 = vmatprep.subr.mxu0 0.0
      %1454 = vmatpush1.msra.mxu0 0.0
      %1455 = vmatprep.subr.mxu0 0.0
      %1456 = vmatpush1.msra.mxu0 0.0
      %1457 = vmatprep.subr.mxu0 0.0
      %1458 = vmatpush1.msra.mxu0 0.0
      %1459 = vmatprep.subr.mxu0 0.0
      %1460 = vmatpush1.msra.mxu0 0.0
      %1461 = vmatprep.subr.mxu0 0.0
      %1462 = vmatpush1.msra.mxu0 0.0
      %1463 = vmatprep.mubr.f32.mxu0 0.0
      %1464 = vmatmul.mubr.f32.gmra.mrb[0].mxu0 %v1397
      %v1465 = vpop.f32.mrb[0].mxu0
      %v1466 = vadd.f32 %v1294, %v1465
      %v1467 = vpop.f32.mrb[0].mxu0
      %1468 = vdwg.mxu0
      %v1469 = vadd.f32 %v1466, %v372
      %v1470 = vxor.u32 %v1469, 2147483648
      %v1471 = vmul.f32 %v1470, 1.442695
      %v1472 = vpow.pop %v1471
      %v1473 = vadd.f32 %v1472, 1.0
      %v1474 = vrcp.pop %v1473
      %v1475 = vmul.f32 1.0, %v1474
      %v1476 = vtanh.pop %v1469
      %v1477 = vmul.f32 %v1475, %v1211
      %1479 = vrot.lane.b32.xlu0 %v1476, 32
      %v1480 = vpop.permute.xlu0 %1479
      %v1482 = vmul.f32 %v1475, %v1480
      %1484 = vrot.lane.b32.xlu0 %v1482, 32
      %v1485 = vpop.permute.xlu0 %1484
      %v1487 = vadd.f32 %v1477, %v1485
      %v1488 = vtanh.pop %v1487
      %1490 = vrot.lane.b32.xlu0 %v1488, 32
      %v1491 = vpop.permute.xlu0 %1490
      %v1493 = vmul.f32 %v1475, %v1491
      %s1494 = sadd.s32 %s378, 3
      %v1495 = vstv %s1494
      %vm1496 = vcmp.lt.s32.totalorder %v1495, %v377
      %v1497 = vsel %vm1496, %v1493, %v1221
      %1499 = vrot.lane.b32.xlu0 %v1497, 64
      %v1500 = vpop.permute.xlu0 %1499
      %v1501 = vsel %vm383, %v1500, 0
      %1503 = vmatprep.subr.mxu0 0.0
      %1504 = vmatpush1.msra.mxu0 %v363
      %1505 = vmatprep.subr.mxu0 0.0
      %1506 = vmatpush1.msra.mxu0 %v364
      %1507 = vmatprep.subr.mxu0 0.0
      %1508 = vmatpush1.msra.mxu0 %v365
      %1509 = vmatprep.subr.mxu0 0.0
      %1510 = vmatpush1.msra.mxu0 %v366
      %1511 = vmatprep.subr.mxu0 0.0
      %1512 = vmatpush1.msra.mxu0 0.0
      %1513 = vmatprep.subr.mxu0 0.0
      %1514 = vmatpush1.msra.mxu0 0.0
      %1515 = vmatprep.subr.mxu0 0.0
      %1516 = vmatpush1.msra.mxu0 0.0
      %1517 = vmatprep.subr.mxu0 0.0
      %1518 = vmatpush1.msra.mxu0 0.0
      %1519 = vmatprep.subr.mxu0 0.0
      %1520 = vmatpush1.msra.mxu0 0.0
      %1521 = vmatprep.subr.mxu0 0.0
      %1522 = vmatpush1.msra.mxu0 0.0
      %1523 = vmatprep.subr.mxu0 0.0
      %1524 = vmatpush1.msra.mxu0 0.0
      %1525 = vmatprep.subr.mxu0 0.0
      %1526 = vmatpush1.msra.mxu0 0.0
      %1527 = vmatprep.subr.mxu0 0.0
      %1528 = vmatpush1.msra.mxu0 0.0
      %1529 = vmatprep.subr.mxu0 0.0
      %1530 = vmatpush1.msra.mxu0 0.0
      %1531 = vmatprep.subr.mxu0 0.0
      %1532 = vmatpush1.msra.mxu0 0.0
      %1533 = vmatprep.subr.mxu0 0.0
      %1534 = vmatpush1.msra.mxu0 0.0
      %1535 = vmatprep.subr.mxu0 0.0
      %1536 = vmatpush1.msra.mxu0 0.0
      %1537 = vmatprep.subr.mxu0 0.0
      %1538 = vmatpush1.msra.mxu0 0.0
      %1539 = vmatprep.subr.mxu0 0.0
      %1540 = vmatpush1.msra.mxu0 0.0
      %1541 = vmatprep.subr.mxu0 0.0
      %1542 = vmatpush1.msra.mxu0 0.0
      %1543 = vmatprep.subr.mxu0 0.0
      %1544 = vmatpush1.msra.mxu0 0.0
      %1545 = vmatprep.subr.mxu0 0.0
      %1546 = vmatpush1.msra.mxu0 0.0
      %1547 = vmatprep.subr.mxu0 0.0
      %1548 = vmatpush1.msra.mxu0 0.0
      %1549 = vmatprep.subr.mxu0 0.0
      %1550 = vmatpush1.msra.mxu0 0.0
      %1551 = vmatprep.subr.mxu0 0.0
      %1552 = vmatpush1.msra.mxu0 0.0
      %1553 = vmatprep.subr.mxu0 0.0
      %1554 = vmatpush1.msra.mxu0 0.0
      %1555 = vmatprep.subr.mxu0 0.0
      %1556 = vmatpush1.msra.mxu0 0.0
      %1557 = vmatprep.subr.mxu0 0.0
      %1558 = vmatpush1.msra.mxu0 0.0
      %1559 = vmatprep.subr.mxu0 0.0
      %1560 = vmatpush1.msra.mxu0 0.0
      %1561 = vmatprep.subr.mxu0 0.0
      %1562 = vmatpush1.msra.mxu0 0.0
      %1563 = vmatprep.subr.mxu0 0.0
      %1564 = vmatpush1.msra.mxu0 0.0
      %1565 = vmatprep.subr.mxu0 0.0
      %1566 = vmatpush1.msra.mxu0 0.0
      %1567 = vmatprep.mubr.f32.mxu0 0.0
      %1568 = vmatmul.mubr.f32.gmra.mrb[0].mxu0 %v1501
      %v1569 = vpop.f32.mrb[0].mxu0
      %v1570 = vadd.f32 0.0, %v1569
      %v1571 = vpop.f32.mrb[0].mxu0
      %1572 = vdwg.mxu0
      %s1573 = scalar_lea.vmem %s336, 32
      %v1574 = vld [vmem:[%s1573] sm:$0xff]
      %1575 = vmatprep.subr.mxu0 0.0
      %1576 = vmatpush1.msra.mxu0 %v355
      %1577 = vmatprep.subr.mxu0 0.0
      %1578 = vmatpush1.msra.mxu0 %v356
      %1579 = vmatprep.subr.mxu0 0.0
      %1580 = vmatpush1.msra.mxu0 %v357
      %1581 = vmatprep.subr.mxu0 0.0
      %1582 = vmatpush1.msra.mxu0 %v358
      %1583 = vmatprep.subr.mxu0 0.0
      %1584 = vmatpush1.msra.mxu0 0.0
      %1585 = vmatprep.subr.mxu0 0.0
      %1586 = vmatpush1.msra.mxu0 0.0
      %1587 = vmatprep.subr.mxu0 0.0
      %1588 = vmatpush1.msra.mxu0 0.0
      %1589 = vmatprep.subr.mxu0 0.0
      %1590 = vmatpush1.msra.mxu0 0.0
      %1591 = vmatprep.subr.mxu0 0.0
      %1592 = vmatpush1.msra.mxu0 0.0
      %1593 = vmatprep.subr.mxu0 0.0
      %1594 = vmatpush1.msra.mxu0 0.0
      %1595 = vmatprep.subr.mxu0 0.0
      %1596 = vmatpush1.msra.mxu0 0.0
      %1597 = vmatprep.subr.mxu0 0.0
      %1598 = vmatpush1.msra.mxu0 0.0
      %1599 = vmatprep.subr.mxu0 0.0
      %1600 = vmatpush1.msra.mxu0 0.0
      %1601 = vmatprep.subr.mxu0 0.0
      %1602 = vmatpush1.msra.mxu0 0.0
      %1603 = vmatprep.subr.mxu0 0.0
      %1604 = vmatpush1.msra.mxu0 0.0
      %1605 = vmatprep.subr.mxu0 0.0
      %1606 = vmatpush1.msra.mxu0 0.0
      %1607 = vmatprep.subr.mxu0 0.0
      %1608 = vmatpush1.msra.mxu0 0.0
      %1609 = vmatprep.subr.mxu0 0.0
      %1610 = vmatpush1.msra.mxu0 0.0
      %1611 = vmatprep.subr.mxu0 0.0
      %1612 = vmatpush1.msra.mxu0 0.0
      %1613 = vmatprep.subr.mxu0 0.0
      %1614 = vmatpush1.msra.mxu0 0.0
      %1615 = vmatprep.subr.mxu0 0.0
      %1616 = vmatpush1.msra.mxu0 0.0
      %1617 = vmatprep.subr.mxu0 0.0
      %1618 = vmatpush1.msra.mxu0 0.0
      %1619 = vmatprep.subr.mxu0 0.0
      %1620 = vmatpush1.msra.mxu0 0.0
      %1621 = vmatprep.subr.mxu0 0.0
      %1622 = vmatpush1.msra.mxu0 0.0
      %1623 = vmatprep.subr.mxu0 0.0
      %1624 = vmatpush1.msra.mxu0 0.0
      %1625 = vmatprep.subr.mxu0 0.0
      %1626 = vmatpush1.msra.mxu0 0.0
      %1627 = vmatprep.subr.mxu0 0.0
      %1628 = vmatpush1.msra.mxu0 0.0
      %1629 = vmatprep.subr.mxu0 0.0
      %1630 = vmatpush1.msra.mxu0 0.0
      %1631 = vmatprep.subr.mxu0 0.0
      %1632 = vmatpush1.msra.mxu0 0.0
      %1633 = vmatprep.subr.mxu0 0.0
      %1634 = vmatpush1.msra.mxu0 0.0
      %1635 = vmatprep.subr.mxu0 0.0
      %1636 = vmatpush1.msra.mxu0 0.0
      %1637 = vmatprep.subr.mxu0 0.0
      %1638 = vmatpush1.msra.mxu0 0.0
      %1639 = vmatprep.mubr.f32.mxu0 0.0
      %1640 = vmatmul.mubr.f32.gmra.mrb[0].mxu0 %v1397
      %v1641 = vpop.f32.mrb[0].mxu0
      %v1642 = vadd.f32 0.0, %v1641
      %v1643 = vpop.f32.mrb[0].mxu0
      %1644 = vdwg.mxu0
      %v1645 = vadd.f32 %v1574, %v1642
      %v1646 = vxor.u32 %v1645, 2147483648
      %v1647 = vmul.f32 %v1646, 1.442695
      %v1648 = vpow.pop %v1647
      %v1649 = vadd.f32 %v1648, 1.0
      %v1650 = vrcp.pop %v1649
      %v1651 = vmul.f32 1.0, %v1650
      %v1652 = vtanh.pop %v1645
      %v1653 = vmul.f32 %v1651, %v1387
      %1655 = vrot.lane.b32.xlu0 %v1652, 32
      %v1656 = vpop.permute.xlu0 %1655
      %v1658 = vmul.f32 %v1651, %v1656
      %1660 = vrot.lane.b32.xlu0 %v1658, 32
      %v1661 = vpop.permute.xlu0 %1660
      %v1663 = vadd.f32 %v1653, %v1661
      %v1664 = vtanh.pop %v1663
      %1666 = vrot.lane.b32.xlu0 %v1664, 32
      %v1667 = vpop.permute.xlu0 %1666
      %v1669 = vmul.f32 %v1651, %v1667
      %1671 = vrot.lane.b32.xlu0 %v1669, 64
      %v1672 = vpop.permute.xlu0 %1671
      %v1673 = vsel %vm383, %v1672, 0
      %1675 = vmatprep.subr.mxu0 0.0
      %1676 = vmatpush1.msra.mxu0 %v359
      %1677 = vmatprep.subr.mxu0 0.0
      %1678 = vmatpush1.msra.mxu0 %v360
      %1679 = vmatprep.subr.mxu0 0.0
      %1680 = vmatpush1.msra.mxu0 %v361
      %1681 = vmatprep.subr.mxu0 0.0
      %1682 = vmatpush1.msra.mxu0 %v362
      %1683 = vmatprep.subr.mxu0 0.0
      %1684 = vmatpush1.msra.mxu0 0.0
      %1685 = vmatprep.subr.mxu0 0.0
      %1686 = vmatpush1.msra.mxu0 0.0
      %1687 = vmatprep.subr.mxu0 0.0
      %1688 = vmatpush1.msra.mxu0 0.0
      %1689 = vmatprep.subr.mxu0 0.0
      %1690 = vmatpush1.msra.mxu0 0.0
      %1691 = vmatprep.subr.mxu0 0.0
      %1692 = vmatpush1.msra.mxu0 0.0
      %1693 = vmatprep.subr.mxu0 0.0
      %1694 = vmatpush1.msra.mxu0 0.0
      %1695 = vmatprep.subr.mxu0 0.0
      %1696 = vmatpush1.msra.mxu0 0.0
      %1697 = vmatprep.subr.mxu0 0.0
      %1698 = vmatpush1.msra.mxu0 0.0
      %1699 = vmatprep.subr.mxu0 0.0
      %1700 = vmatpush1.msra.mxu0 0.0
      %1701 = vmatprep.subr.mxu0 0.0
      %1702 = vmatpush1.msra.mxu0 0.0
      %1703 = vmatprep.subr.mxu0 0.0
      %1704 = vmatpush1.msra.mxu0 0.0
      %1705 = vmatprep.subr.mxu0 0.0
      %1706 = vmatpush1.msra.mxu0 0.0
      %1707 = vmatprep.subr.mxu0 0.0
      %1708 = vmatpush1.msra.mxu0 0.0
      %1709 = vmatprep.subr.mxu0 0.0
      %1710 = vmatpush1.msra.mxu0 0.0
      %1711 = vmatprep.subr.mxu0 0.0
      %1712 = vmatpush1.msra.mxu0 0.0
      %1713 = vmatprep.subr.mxu0 0.0
      %1714 = vmatpush1.msra.mxu0 0.0
      %1715 = vmatprep.subr.mxu0 0.0
      %1716 = vmatpush1.msra.mxu0 0.0
      %1717 = vmatprep.subr.mxu0 0.0
      %1718 = vmatpush1.msra.mxu0 0.0
      %1719 = vmatprep.subr.mxu0 0.0
      %1720 = vmatpush1.msra.mxu0 0.0
      %1721 = vmatprep.subr.mxu0 0.0
      %1722 = vmatpush1.msra.mxu0 0.0
      %1723 = vmatprep.subr.mxu0 0.0
      %1724 = vmatpush1.msra.mxu0 0.0
      %1725 = vmatprep.subr.mxu0 0.0
      %1726 = vmatpush1.msra.mxu0 0.0
      %1727 = vmatprep.subr.mxu0 0.0
      %1728 = vmatpush1.msra.mxu0 0.0
      %1729 = vmatprep.subr.mxu0 0.0
      %1730 = vmatpush1.msra.mxu0 0.0
      %1731 = vmatprep.subr.mxu0 0.0
      %1732 = vmatpush1.msra.mxu0 0.0
      %1733 = vmatprep.subr.mxu0 0.0
      %1734 = vmatpush1.msra.mxu0 0.0
      %1735 = vmatprep.subr.mxu0 0.0
      %1736 = vmatpush1.msra.mxu0 0.0
      %1737 = vmatprep.subr.mxu0 0.0
      %1738 = vmatpush1.msra.mxu0 0.0
      %1739 = vmatprep.mubr.f32.mxu0 0.0
      %1740 = vmatmul.mubr.f32.gmra.mrb[0].mxu0 %v1673
      %v1741 = vpop.f32.mrb[0].mxu0
      %v1742 = vadd.f32 %v1570, %v1741
      %v1743 = vpop.f32.mrb[0].mxu0
      %1744 = vdwg.mxu0
      %v1745 = vadd.f32 %v1742, %v372
      %v1746 = vxor.u32 %v1745, 2147483648
      %v1747 = vmul.f32 %v1746, 1.442695
      %v1748 = vpow.pop %v1747
      %v1749 = vadd.f32 %v1748, 1.0
      %v1750 = vrcp.pop %v1749
      %v1751 = vmul.f32 1.0, %v1750
      %v1752 = vtanh.pop %v1745
      %v1753 = vmul.f32 %v1751, %v1487
      %1755 = vrot.lane.b32.xlu0 %v1752, 32
      %v1756 = vpop.permute.xlu0 %1755
      %v1758 = vmul.f32 %v1751, %v1756
      %1760 = vrot.lane.b32.xlu0 %v1758, 32
      %v1761 = vpop.permute.xlu0 %1760
      %v1763 = vadd.f32 %v1753, %v1761
      %v1764 = vtanh.pop %v1763
      %1766 = vrot.lane.b32.xlu0 %v1764, 32
      %v1767 = vpop.permute.xlu0 %1766
      %v1769 = vmul.f32 %v1751, %v1767
      %s1770 = sadd.s32 %s378, 4
      %v1771 = vstv %s1770
      %vm1772 = vcmp.lt.s32.totalorder %v1771, %v377
      %v1773 = vsel %vm1772, %v1769, %v1497
      %1775 = vrot.lane.b32.xlu0 %v1773, 64
      %v1776 = vpop.permute.xlu0 %1775
      %v1777 = vsel %vm383, %v1776, 0
      %1779 = vmatprep.subr.mxu0 0.0
      %1780 = vmatpush1.msra.mxu0 %v363
      %1781 = vmatprep.subr.mxu0 0.0
      %1782 = vmatpush1.msra.mxu0 %v364
      %1783 = vmatprep.subr.mxu0 0.0
      %1784 = vmatpush1.msra.mxu0 %v365
      %1785 = vmatprep.subr.mxu0 0.0
      %1786 = vmatpush1.msra.mxu0 %v366
      %1787 = vmatprep.subr.mxu0 0.0
      %1788 = vmatpush1.msra.mxu0 0.0
      %1789 = vmatprep.subr.mxu0 0.0
      %1790 = vmatpush1.msra.mxu0 0.0
      %1791 = vmatprep.subr.mxu0 0.0
      %1792 = vmatpush1.msra.mxu0 0.0
      %1793 = vmatprep.subr.mxu0 0.0
      %1794 = vmatpush1.msra.mxu0 0.0
      %1795 = vmatprep.subr.mxu0 0.0
      %1796 = vmatpush1.msra.mxu0 0.0
      %1797 = vmatprep.subr.mxu0 0.0
      %1798 = vmatpush1.msra.mxu0 0.0
      %1799 = vmatprep.subr.mxu0 0.0
      %1800 = vmatpush1.msra.mxu0 0.0
      %1801 = vmatprep.subr.mxu0 0.0
      %1802 = vmatpush1.msra.mxu0 0.0
      %1803 = vmatprep.subr.mxu0 0.0
      %1804 = vmatpush1.msra.mxu0 0.0
      %1805 = vmatprep.subr.mxu0 0.0
      %1806 = vmatpush1.msra.mxu0 0.0
      %1807 = vmatprep.subr.mxu0 0.0
      %1808 = vmatpush1.msra.mxu0 0.0
      %1809 = vmatprep.subr.mxu0 0.0
      %1810 = vmatpush1.msra.mxu0 0.0
      %1811 = vmatprep.subr.mxu0 0.0
      %1812 = vmatpush1.msra.mxu0 0.0
      %1813 = vmatprep.subr.mxu0 0.0
      %1814 = vmatpush1.msra.mxu0 0.0
      %1815 = vmatprep.subr.mxu0 0.0
      %1816 = vmatpush1.msra.mxu0 0.0
      %1817 = vmatprep.subr.mxu0 0.0
      %1818 = vmatpush1.msra.mxu0 0.0
      %1819 = vmatprep.subr.mxu0 0.0
      %1820 = vmatpush1.msra.mxu0 0.0
      %1821 = vmatprep.subr.mxu0 0.0
      %1822 = vmatpush1.msra.mxu0 0.0
      %1823 = vmatprep.subr.mxu0 0.0
      %1824 = vmatpush1.msra.mxu0 0.0
      %1825 = vmatprep.subr.mxu0 0.0
      %1826 = vmatpush1.msra.mxu0 0.0
      %1827 = vmatprep.subr.mxu0 0.0
      %1828 = vmatpush1.msra.mxu0 0.0
      %1829 = vmatprep.subr.mxu0 0.0
      %1830 = vmatpush1.msra.mxu0 0.0
      %1831 = vmatprep.subr.mxu0 0.0
      %1832 = vmatpush1.msra.mxu0 0.0
      %1833 = vmatprep.subr.mxu0 0.0
      %1834 = vmatpush1.msra.mxu0 0.0
      %1835 = vmatprep.subr.mxu0 0.0
      %1836 = vmatpush1.msra.mxu0 0.0
      %1837 = vmatprep.subr.mxu0 0.0
      %1838 = vmatpush1.msra.mxu0 0.0
      %1839 = vmatprep.subr.mxu0 0.0
      %1840 = vmatpush1.msra.mxu0 0.0
      %1841 = vmatprep.subr.mxu0 0.0
      %1842 = vmatpush1.msra.mxu0 0.0
      %1843 = vmatprep.mubr.f32.mxu0 0.0
      %1844 = vmatmul.mubr.f32.gmra.mrb[0].mxu0 %v1777
      %v1845 = vpop.f32.mrb[0].mxu0
      %v1846 = vadd.f32 0.0, %v1845
      %v1847 = vpop.f32.mrb[0].mxu0
      %1848 = vdwg.mxu0
      %s1849 = scalar_lea.vmem %s336, 40
      %v1850 = vld [vmem:[%s1849] sm:$0xff]
      %1851 = vmatprep.subr.mxu0 0.0
      %1852 = vmatpush1.msra.mxu0 %v355
      %1853 = vmatprep.subr.mxu0 0.0
      %1854 = vmatpush1.msra.mxu0 %v356
      %1855 = vmatprep.subr.mxu0 0.0
      %1856 = vmatpush1.msra.mxu0 %v357
      %1857 = vmatprep.subr.mxu0 0.0
      %1858 = vmatpush1.msra.mxu0 %v358
      %1859 = vmatprep.subr.mxu0 0.0
      %1860 = vmatpush1.msra.mxu0 0.0
      %1861 = vmatprep.subr.mxu0 0.0
      %1862 = vmatpush1.msra.mxu0 0.0
      %1863 = vmatprep.subr.mxu0 0.0
      %1864 = vmatpush1.msra.mxu0 0.0
      %1865 = vmatprep.subr.mxu0 0.0
      %1866 = vmatpush1.msra.mxu0 0.0
      %1867 = vmatprep.subr.mxu0 0.0
      %1868 = vmatpush1.msra.mxu0 0.0
      %1869 = vmatprep.subr.mxu0 0.0
      %1870 = vmatpush1.msra.mxu0 0.0
      %1871 = vmatprep.subr.mxu0 0.0
      %1872 = vmatpush1.msra.mxu0 0.0
      %1873 = vmatprep.subr.mxu0 0.0
      %1874 = vmatpush1.msra.mxu0 0.0
      %1875 = vmatprep.subr.mxu0 0.0
      %1876 = vmatpush1.msra.mxu0 0.0
      %1877 = vmatprep.subr.mxu0 0.0
      %1878 = vmatpush1.msra.mxu0 0.0
      %1879 = vmatprep.subr.mxu0 0.0
      %1880 = vmatpush1.msra.mxu0 0.0
      %1881 = vmatprep.subr.mxu0 0.0
      %1882 = vmatpush1.msra.mxu0 0.0
      %1883 = vmatprep.subr.mxu0 0.0
      %1884 = vmatpush1.msra.mxu0 0.0
      %1885 = vmatprep.subr.mxu0 0.0
      %1886 = vmatpush1.msra.mxu0 0.0
      %1887 = vmatprep.subr.mxu0 0.0
      %1888 = vmatpush1.msra.mxu0 0.0
      %1889 = vmatprep.subr.mxu0 0.0
      %1890 = vmatpush1.msra.mxu0 0.0
      %1891 = vmatprep.subr.mxu0 0.0
      %1892 = vmatpush1.msra.mxu0 0.0
      %1893 = vmatprep.subr.mxu0 0.0
      %1894 = vmatpush1.msra.mxu0 0.0
      %1895 = vmatprep.subr.mxu0 0.0
      %1896 = vmatpush1.msra.mxu0 0.0
      %1897 = vmatprep.subr.mxu0 0.0
      %1898 = vmatpush1.msra.mxu0 0.0
      %1899 = vmatprep.subr.mxu0 0.0
      %1900 = vmatpush1.msra.mxu0 0.0
      %1901 = vmatprep.subr.mxu0 0.0
      %1902 = vmatpush1.msra.mxu0 0.0
      %1903 = vmatprep.subr.mxu0 0.0
      %1904 = vmatpush1.msra.mxu0 0.0
      %1905 = vmatprep.subr.mxu0 0.0
      %1906 = vmatpush1.msra.mxu0 0.0
      %1907 = vmatprep.subr.mxu0 0.0
      %1908 = vmatpush1.msra.mxu0 0.0
      %1909 = vmatprep.subr.mxu0 0.0
      %1910 = vmatpush1.msra.mxu0 0.0
      %1911 = vmatprep.subr.mxu0 0.0
      %1912 = vmatpush1.msra.mxu0 0.0
      %1913 = vmatprep.subr.mxu0 0.0
      %1914 = vmatpush1.msra.mxu0 0.0
      %1915 = vmatprep.mubr.f32.mxu0 0.0
      %1916 = vmatmul.mubr.f32.gmra.mrb[0].mxu0 %v1673
      %v1917 = vpop.f32.mrb[0].mxu0
      %v1918 = vadd.f32 0.0, %v1917
      %v1919 = vpop.f32.mrb[0].mxu0
      %1920 = vdwg.mxu0
      %v1921 = vadd.f32 %v1850, %v1918
      %v1922 = vxor.u32 %v1921, 2147483648
      %v1923 = vmul.f32 %v1922, 1.442695
      %v1924 = vpow.pop %v1923
      %v1925 = vadd.f32 %v1924, 1.0
      %v1926 = vrcp.pop %v1925
      %v1927 = vmul.f32 1.0, %v1926
      %v1928 = vtanh.pop %v1921
      %v1929 = vmul.f32 %v1927, %v1663
      %1931 = vrot.lane.b32.xlu0 %v1928, 32
      %v1932 = vpop.permute.xlu0 %1931
      %v1934 = vmul.f32 %v1927, %v1932
      %1936 = vrot.lane.b32.xlu0 %v1934, 32
      %v1937 = vpop.permute.xlu0 %1936
      %v1939 = vadd.f32 %v1929, %v1937
      %v1940 = vtanh.pop %v1939
      %1942 = vrot.lane.b32.xlu0 %v1940, 32
      %v1943 = vpop.permute.xlu0 %1942
      %v1945 = vmul.f32 %v1927, %v1943
      %1947 = vrot.lane.b32.xlu0 %v1945, 64
      %v1948 = vpop.permute.xlu0 %1947
      %v1949 = vsel %vm383, %v1948, 0
      %1951 = vmatprep.subr.mxu0 0.0
      %1952 = vmatpush1.msra.mxu0 %v359
      %1953 = vmatprep.subr.mxu0 0.0
      %1954 = vmatpush1.msra.mxu0 %v360
      %1955 = vmatprep.subr.mxu0 0.0
      %1956 = vmatpush1.msra.mxu0 %v361
      %1957 = vmatprep.subr.mxu0 0.0
      %1958 = vmatpush1.msra.mxu0 %v362
      %1959 = vmatprep.subr.mxu0 0.0
      %1960 = vmatpush1.msra.mxu0 0.0
      %1961 = vmatprep.subr.mxu0 0.0
      %1962 = vmatpush1.msra.mxu0 0.0
      %1963 = vmatprep.subr.mxu0 0.0
      %1964 = vmatpush1.msra.mxu0 0.0
      %1965 = vmatprep.subr.mxu0 0.0
      %1966 = vmatpush1.msra.mxu0 0.0
      %1967 = vmatprep.subr.mxu0 0.0
      %1968 = vmatpush1.msra.mxu0 0.0
      %1969 = vmatprep.subr.mxu0 0.0
      %1970 = vmatpush1.msra.mxu0 0.0
      %1971 = vmatprep.subr.mxu0 0.0
      %1972 = vmatpush1.msra.mxu0 0.0
      %1973 = vmatprep.subr.mxu0 0.0
      %1974 = vmatpush1.msra.mxu0 0.0
      %1975 = vmatprep.subr.mxu0 0.0
      %1976 = vmatpush1.msra.mxu0 0.0
      %1977 = vmatprep.subr.mxu0 0.0
      %1978 = vmatpush1.msra.mxu0 0.0
      %1979 = vmatprep.subr.mxu0 0.0
      %1980 = vmatpush1.msra.mxu0 0.0
      %1981 = vmatprep.subr.mxu0 0.0
      %1982 = vmatpush1.msra.mxu0 0.0
      %1983 = vmatprep.subr.mxu0 0.0
      %1984 = vmatpush1.msra.mxu0 0.0
      %1985 = vmatprep.subr.mxu0 0.0
      %1986 = vmatpush1.msra.mxu0 0.0
      %1987 = vmatprep.subr.mxu0 0.0
      %1988 = vmatpush1.msra.mxu0 0.0
      %1989 = vmatprep.subr.mxu0 0.0
      %1990 = vmatpush1.msra.mxu0 0.0
      %1991 = vmatprep.subr.mxu0 0.0
      %1992 = vmatpush1.msra.mxu0 0.0
      %1993 = vmatprep.subr.mxu0 0.0
      %1994 = vmatpush1.msra.mxu0 0.0
      %1995 = vmatprep.subr.mxu0 0.0
      %1996 = vmatpush1.msra.mxu0 0.0
      %1997 = vmatprep.subr.mxu0 0.0
      %1998 = vmatpush1.msra.mxu0 0.0
      %1999 = vmatprep.subr.mxu0 0.0
      %2000 = vmatpush1.msra.mxu0 0.0
      %2001 = vmatprep.subr.mxu0 0.0
      %2002 = vmatpush1.msra.mxu0 0.0
      %2003 = vmatprep.subr.mxu0 0.0
      %2004 = vmatpush1.msra.mxu0 0.0
      %2005 = vmatprep.subr.mxu0 0.0
      %2006 = vmatpush1.msra.mxu0 0.0
      %2007 = vmatprep.subr.mxu0 0.0
      %2008 = vmatpush1.msra.mxu0 0.0
      %2009 = vmatprep.subr.mxu0 0.0
      %2010 = vmatpush1.msra.mxu0 0.0
      %2011 = vmatprep.subr.mxu0 0.0
      %2012 = vmatpush1.msra.mxu0 0.0
      %2013 = vmatprep.subr.mxu0 0.0
      %2014 = vmatpush1.msra.mxu0 0.0
      %2015 = vmatprep.mubr.f32.mxu0 0.0
      %2016 = vmatmul.mubr.f32.gmra.mrb[0].mxu0 %v1949
      %v2017 = vpop.f32.mrb[0].mxu0
      %v2018 = vadd.f32 %v1846, %v2017
      %v2019 = vpop.f32.mrb[0].mxu0
      %2020 = vdwg.mxu0
      %v2021 = vadd.f32 %v2018, %v372
      %v2022 = vxor.u32 %v2021, 2147483648
      %v2023 = vmul.f32 %v2022, 1.442695
      %v2024 = vpow.pop %v2023
      %v2025 = vadd.f32 %v2024, 1.0
      %v2026 = vrcp.pop %v2025
      %v2027 = vmul.f32 1.0, %v2026
      %v2028 = vtanh.pop %v2021
      %v2029 = vmul.f32 %v2027, %v1763
      %2031 = vrot.lane.b32.xlu0 %v2028, 32
      %v2032 = vpop.permute.xlu0 %2031
      %v2034 = vmul.f32 %v2027, %v2032
      %2036 = vrot.lane.b32.xlu0 %v2034, 32
      %v2037 = vpop.permute.xlu0 %2036
      %v2039 = vadd.f32 %v2029, %v2037
      %v2040 = vtanh.pop %v2039
      %2042 = vrot.lane.b32.xlu0 %v2040, 32
      %v2043 = vpop.permute.xlu0 %2042
      %v2045 = vmul.f32 %v2027, %v2043
      %s2046 = sadd.s32 %s378, 5
      %v2047 = vstv %s2046
      %vm2048 = vcmp.lt.s32.totalorder %v2047, %v377
      %v2049 = vsel %vm2048, %v2045, %v1773
      %2051 = vrot.lane.b32.xlu0 %v2049, 64
      %v2052 = vpop.permute.xlu0 %2051
      %v2053 = vsel %vm383, %v2052, 0
      %2055 = vmatprep.subr.mxu0 0.0
      %2056 = vmatpush1.msra.mxu0 %v363
      %2057 = vmatprep.subr.mxu0 0.0
      %2058 = vmatpush1.msra.mxu0 %v364
      %2059 = vmatprep.subr.mxu0 0.0
      %2060 = vmatpush1.msra.mxu0 %v365
      %2061 = vmatprep.subr.mxu0 0.0
      %2062 = vmatpush1.msra.mxu0 %v366
      %2063 = vmatprep.subr.mxu0 0.0
      %2064 = vmatpush1.msra.mxu0 0.0
      %2065 = vmatprep.subr.mxu0 0.0
      %2066 = vmatpush1.msra.mxu0 0.0
      %2067 = vmatprep.subr.mxu0 0.0
      %2068 = vmatpush1.msra.mxu0 0.0
      %2069 = vmatprep.subr.mxu0 0.0
      %2070 = vmatpush1.msra.mxu0 0.0
      %2071 = vmatprep.subr.mxu0 0.0
      %2072 = vmatpush1.msra.mxu0 0.0
      %2073 = vmatprep.subr.mxu0 0.0
      %2074 = vmatpush1.msra.mxu0 0.0
      %2075 = vmatprep.subr.mxu0 0.0
      %2076 = vmatpush1.msra.mxu0 0.0
      %2077 = vmatprep.subr.mxu0 0.0
      %2078 = vmatpush1.msra.mxu0 0.0
      %2079 = vmatprep.subr.mxu0 0.0
      %2080 = vmatpush1.msra.mxu0 0.0
      %2081 = vmatprep.subr.mxu0 0.0
      %2082 = vmatpush1.msra.mxu0 0.0
      %2083 = vmatprep.subr.mxu0 0.0
      %2084 = vmatpush1.msra.mxu0 0.0
      %2085 = vmatprep.subr.mxu0 0.0
      %2086 = vmatpush1.msra.mxu0 0.0
      %2087 = vmatprep.subr.mxu0 0.0
      %2088 = vmatpush1.msra.mxu0 0.0
      %2089 = vmatprep.subr.mxu0 0.0
      %2090 = vmatpush1.msra.mxu0 0.0
      %2091 = vmatprep.subr.mxu0 0.0
      %2092 = vmatpush1.msra.mxu0 0.0
      %2093 = vmatprep.subr.mxu0 0.0
      %2094 = vmatpush1.msra.mxu0 0.0
      %2095 = vmatprep.subr.mxu0 0.0
      %2096 = vmatpush1.msra.mxu0 0.0
      %2097 = vmatprep.subr.mxu0 0.0
      %2098 = vmatpush1.msra.mxu0 0.0
      %2099 = vmatprep.subr.mxu0 0.0
      %2100 = vmatpush1.msra.mxu0 0.0
      %2101 = vmatprep.subr.mxu0 0.0
      %2102 = vmatpush1.msra.mxu0 0.0
      %2103 = vmatprep.subr.mxu0 0.0
      %2104 = vmatpush1.msra.mxu0 0.0
      %2105 = vmatprep.subr.mxu0 0.0
      %2106 = vmatpush1.msra.mxu0 0.0
      %2107 = vmatprep.subr.mxu0 0.0
      %2108 = vmatpush1.msra.mxu0 0.0
      %2109 = vmatprep.subr.mxu0 0.0
      %2110 = vmatpush1.msra.mxu0 0.0
      %2111 = vmatprep.subr.mxu0 0.0
      %2112 = vmatpush1.msra.mxu0 0.0
      %2113 = vmatprep.subr.mxu0 0.0
      %2114 = vmatpush1.msra.mxu0 0.0
      %2115 = vmatprep.subr.mxu0 0.0
      %2116 = vmatpush1.msra.mxu0 0.0
      %2117 = vmatprep.subr.mxu0 0.0
      %2118 = vmatpush1.msra.mxu0 0.0
      %2119 = vmatprep.mubr.f32.mxu0 0.0
      %2120 = vmatmul.mubr.f32.gmra.mrb[0].mxu0 %v2053
      %v2121 = vpop.f32.mrb[0].mxu0
      %v2122 = vadd.f32 0.0, %v2121
      %v2123 = vpop.f32.mrb[0].mxu0
      %2124 = vdwg.mxu0
      %s2125 = scalar_lea.vmem %s336, 48
      %v2126 = vld [vmem:[%s2125] sm:$0xff]
      %2127 = vmatprep.subr.mxu0 0.0
      %2128 = vmatpush1.msra.mxu0 %v355
      %2129 = vmatprep.subr.mxu0 0.0
      %2130 = vmatpush1.msra.mxu0 %v356
      %2131 = vmatprep.subr.mxu0 0.0
      %2132 = vmatpush1.msra.mxu0 %v357
      %2133 = vmatprep.subr.mxu0 0.0
      %2134 = vmatpush1.msra.mxu0 %v358
      %2135 = vmatprep.subr.mxu0 0.0
      %2136 = vmatpush1.msra.mxu0 0.0
      %2137 = vmatprep.subr.mxu0 0.0
      %2138 = vmatpush1.msra.mxu0 0.0
      %2139 = vmatprep.subr.mxu0 0.0
      %2140 = vmatpush1.msra.mxu0 0.0
      %2141 = vmatprep.subr.mxu0 0.0
      %2142 = vmatpush1.msra.mxu0 0.0
      %2143 = vmatprep.subr.mxu0 0.0
      %2144 = vmatpush1.msra.mxu0 0.0
      %2145 = vmatprep.subr.mxu0 0.0
      %2146 = vmatpush1.msra.mxu0 0.0
      %2147 = vmatprep.subr.mxu0 0.0
      %2148 = vmatpush1.msra.mxu0 0.0
      %2149 = vmatprep.subr.mxu0 0.0
      %2150 = vmatpush1.msra.mxu0 0.0
      %2151 = vmatprep.subr.mxu0 0.0
      %2152 = vmatpush1.msra.mxu0 0.0
      %2153 = vmatprep.subr.mxu0 0.0
      %2154 = vmatpush1.msra.mxu0 0.0
      %2155 = vmatprep.subr.mxu0 0.0
      %2156 = vmatpush1.msra.mxu0 0.0
      %2157 = vmatprep.subr.mxu0 0.0
      %2158 = vmatpush1.msra.mxu0 0.0
      %2159 = vmatprep.subr.mxu0 0.0
      %2160 = vmatpush1.msra.mxu0 0.0
      %2161 = vmatprep.subr.mxu0 0.0
      %2162 = vmatpush1.msra.mxu0 0.0
      %2163 = vmatprep.subr.mxu0 0.0
      %2164 = vmatpush1.msra.mxu0 0.0
      %2165 = vmatprep.subr.mxu0 0.0
      %2166 = vmatpush1.msra.mxu0 0.0
      %2167 = vmatprep.subr.mxu0 0.0
      %2168 = vmatpush1.msra.mxu0 0.0
      %2169 = vmatprep.subr.mxu0 0.0
      %2170 = vmatpush1.msra.mxu0 0.0
      %2171 = vmatprep.subr.mxu0 0.0
      %2172 = vmatpush1.msra.mxu0 0.0
      %2173 = vmatprep.subr.mxu0 0.0
      %2174 = vmatpush1.msra.mxu0 0.0
      %2175 = vmatprep.subr.mxu0 0.0
      %2176 = vmatpush1.msra.mxu0 0.0
      %2177 = vmatprep.subr.mxu0 0.0
      %2178 = vmatpush1.msra.mxu0 0.0
      %2179 = vmatprep.subr.mxu0 0.0
      %2180 = vmatpush1.msra.mxu0 0.0
      %2181 = vmatprep.subr.mxu0 0.0
      %2182 = vmatpush1.msra.mxu0 0.0
      %2183 = vmatprep.subr.mxu0 0.0
      %2184 = vmatpush1.msra.mxu0 0.0
      %2185 = vmatprep.subr.mxu0 0.0
      %2186 = vmatpush1.msra.mxu0 0.0
      %2187 = vmatprep.subr.mxu0 0.0
      %2188 = vmatpush1.msra.mxu0 0.0
      %2189 = vmatprep.subr.mxu0 0.0
      %2190 = vmatpush1.msra.mxu0 0.0
      %2191 = vmatprep.mubr.f32.mxu0 0.0
      %2192 = vmatmul.mubr.f32.gmra.mrb[0].mxu0 %v1949
      %v2193 = vpop.f32.mrb[0].mxu0
      %v2194 = vadd.f32 0.0, %v2193
      %v2195 = vpop.f32.mrb[0].mxu0
      %2196 = vdwg.mxu0
      %v2197 = vadd.f32 %v2126, %v2194
      %v2198 = vxor.u32 %v2197, 2147483648
      %v2199 = vmul.f32 %v2198, 1.442695
      %v2200 = vpow.pop %v2199
      %v2201 = vadd.f32 %v2200, 1.0
      %v2202 = vrcp.pop %v2201
      %v2203 = vmul.f32 1.0, %v2202
      %v2204 = vtanh.pop %v2197
      %v2205 = vmul.f32 %v2203, %v1939
      %2207 = vrot.lane.b32.xlu0 %v2204, 32
      %v2208 = vpop.permute.xlu0 %2207
      %v2210 = vmul.f32 %v2203, %v2208
      %2212 = vrot.lane.b32.xlu0 %v2210, 32
      %v2213 = vpop.permute.xlu0 %2212
      %v2215 = vadd.f32 %v2205, %v2213
      %v2216 = vtanh.pop %v2215
      %2218 = vrot.lane.b32.xlu0 %v2216, 32
      %v2219 = vpop.permute.xlu0 %2218
      %v2221 = vmul.f32 %v2203, %v2219
      %2223 = vrot.lane.b32.xlu0 %v2221, 64
      %v2224 = vpop.permute.xlu0 %2223
      %v2225 = vsel %vm383, %v2224, 0
      %2227 = vmatprep.subr.mxu0 0.0
      %2228 = vmatpush1.msra.mxu0 %v359
      %2229 = vmatprep.subr.mxu0 0.0
      %2230 = vmatpush1.msra.mxu0 %v360
      %2231 = vmatprep.subr.mxu0 0.0
      %2232 = vmatpush1.msra.mxu0 %v361
      %2233 = vmatprep.subr.mxu0 0.0
      %2234 = vmatpush1.msra.mxu0 %v362
      %2235 = vmatprep.subr.mxu0 0.0
      %2236 = vmatpush1.msra.mxu0 0.0
      %2237 = vmatprep.subr.mxu0 0.0
      %2238 = vmatpush1.msra.mxu0 0.0
      %2239 = vmatprep.subr.mxu0 0.0
      %2240 = vmatpush1.msra.mxu0 0.0
      %2241 = vmatprep.subr.mxu0 0.0
      %2242 = vmatpush1.msra.mxu0 0.0
      %2243 = vmatprep.subr.mxu0 0.0
      %2244 = vmatpush1.msra.mxu0 0.0
      %2245 = vmatprep.subr.mxu0 0.0
      %2246 = vmatpush1.msra.mxu0 0.0
      %2247 = vmatprep.subr.mxu0 0.0
      %2248 = vmatpush1.msra.mxu0 0.0
      %2249 = vmatprep.subr.mxu0 0.0
      %2250 = vmatpush1.msra.mxu0 0.0
      %2251 = vmatprep.subr.mxu0 0.0
      %2252 = vmatpush1.msra.mxu0 0.0
      %2253 = vmatprep.subr.mxu0 0.0
      %2254 = vmatpush1.msra.mxu0 0.0
      %2255 = vmatprep.subr.mxu0 0.0
      %2256 = vmatpush1.msra.mxu0 0.0
      %2257 = vmatprep.subr.mxu0 0.0
      %2258 = vmatpush1.msra.mxu0 0.0
      %2259 = vmatprep.subr.mxu0 0.0
      %2260 = vmatpush1.msra.mxu0 0.0
      %2261 = vmatprep.subr.mxu0 0.0
      %2262 = vmatpush1.msra.mxu0 0.0
      %2263 = vmatprep.subr.mxu0 0.0
      %2264 = vmatpush1.msra.mxu0 0.0
      %2265 = vmatprep.subr.mxu0 0.0
      %2266 = vmatpush1.msra.mxu0 0.0
      %2267 = vmatprep.subr.mxu0 0.0
      %2268 = vmatpush1.msra.mxu0 0.0
      %2269 = vmatprep.subr.mxu0 0.0
      %2270 = vmatpush1.msra.mxu0 0.0
      %2271 = vmatprep.subr.mxu0 0.0
      %2272 = vmatpush1.msra.mxu0 0.0
      %2273 = vmatprep.subr.mxu0 0.0
      %2274 = vmatpush1.msra.mxu0 0.0
      %2275 = vmatprep.subr.mxu0 0.0
      %2276 = vmatpush1.msra.mxu0 0.0
      %2277 = vmatprep.subr.mxu0 0.0
      %2278 = vmatpush1.msra.mxu0 0.0
      %2279 = vmatprep.subr.mxu0 0.0
      %2280 = vmatpush1.msra.mxu0 0.0
      %2281 = vmatprep.subr.mxu0 0.0
      %2282 = vmatpush1.msra.mxu0 0.0
      %2283 = vmatprep.subr.mxu0 0.0
      %2284 = vmatpush1.msra.mxu0 0.0
      %2285 = vmatprep.subr.mxu0 0.0
      %2286 = vmatpush1.msra.mxu0 0.0
      %2287 = vmatprep.subr.mxu0 0.0
      %2288 = vmatpush1.msra.mxu0 0.0
      %2289 = vmatprep.subr.mxu0 0.0
      %2290 = vmatpush1.msra.mxu0 0.0
      %2291 = vmatprep.mubr.f32.mxu0 0.0
      %2292 = vmatmul.mubr.f32.gmra.mrb[0].mxu0 %v2225
      %v2293 = vpop.f32.mrb[0].mxu0
      %v2294 = vadd.f32 %v2122, %v2293
      %v2295 = vpop.f32.mrb[0].mxu0
      %2296 = vdwg.mxu0
      %v2297 = vadd.f32 %v2294, %v372
      %v2298 = vxor.u32 %v2297, 2147483648
      %v2299 = vmul.f32 %v2298, 1.442695
      %v2300 = vpow.pop %v2299
      %v2301 = vadd.f32 %v2300, 1.0
      %v2302 = vrcp.pop %v2301
      %v2303 = vmul.f32 1.0, %v2302
      %v2304 = vtanh.pop %v2297
      %v2305 = vmul.f32 %v2303, %v2039
      %2307 = vrot.lane.b32.xlu0 %v2304, 32
      %v2308 = vpop.permute.xlu0 %2307
      %v2310 = vmul.f32 %v2303, %v2308
      %2312 = vrot.lane.b32.xlu0 %v2310, 32
      %v2313 = vpop.permute.xlu0 %2312
      %v2315 = vadd.f32 %v2305, %v2313
      %v2316 = vtanh.pop %v2315
      %2318 = vrot.lane.b32.xlu0 %v2316, 32
      %v2319 = vpop.permute.xlu0 %2318
      %v2321 = vmul.f32 %v2303, %v2319
      %s2322 = sadd.s32 %s378, 6
      %v2323 = vstv %s2322
      %vm2324 = vcmp.lt.s32.totalorder %v2323, %v377
      %v2325 = vsel %vm2324, %v2321, %v2049
      %2327 = vrot.lane.b32.xlu0 %v2325, 64
      %v2328 = vpop.permute.xlu0 %2327
      %v2329 = vsel %vm383, %v2328, 0
      %2331 = vmatprep.subr.mxu0 0.0
      %2332 = vmatpush1.msra.mxu0 %v363
      %2333 = vmatprep.subr.mxu0 0.0
      %2334 = vmatpush1.msra.mxu0 %v364
      %2335 = vmatprep.subr.mxu0 0.0
      %2336 = vmatpush1.msra.mxu0 %v365
      %2337 = vmatprep.subr.mxu0 0.0
      %2338 = vmatpush1.msra.mxu0 %v366
      %2339 = vmatprep.subr.mxu0 0.0
      %2340 = vmatpush1.msra.mxu0 0.0
      %2341 = vmatprep.subr.mxu0 0.0
      %2342 = vmatpush1.msra.mxu0 0.0
      %2343 = vmatprep.subr.mxu0 0.0
      %2344 = vmatpush1.msra.mxu0 0.0
      %2345 = vmatprep.subr.mxu0 0.0
      %2346 = vmatpush1.msra.mxu0 0.0
      %2347 = vmatprep.subr.mxu0 0.0
      %2348 = vmatpush1.msra.mxu0 0.0
      %2349 = vmatprep.subr.mxu0 0.0
      %2350 = vmatpush1.msra.mxu0 0.0
      %2351 = vmatprep.subr.mxu0 0.0
      %2352 = vmatpush1.msra.mxu0 0.0
      %2353 = vmatprep.subr.mxu0 0.0
      %2354 = vmatpush1.msra.mxu0 0.0
      %2355 = vmatprep.subr.mxu0 0.0
      %2356 = vmatpush1.msra.mxu0 0.0
      %2357 = vmatprep.subr.mxu0 0.0
      %2358 = vmatpush1.msra.mxu0 0.0
      %2359 = vmatprep.subr.mxu0 0.0
      %2360 = vmatpush1.msra.mxu0 0.0
      %2361 = vmatprep.subr.mxu0 0.0
      %2362 = vmatpush1.msra.mxu0 0.0
      %2363 = vmatprep.subr.mxu0 0.0
      %2364 = vmatpush1.msra.mxu0 0.0
      %2365 = vmatprep.subr.mxu0 0.0
      %2366 = vmatpush1.msra.mxu0 0.0
      %2367 = vmatprep.subr.mxu0 0.0
      %2368 = vmatpush1.msra.mxu0 0.0
      %2369 = vmatprep.subr.mxu0 0.0
      %2370 = vmatpush1.msra.mxu0 0.0
      %2371 = vmatprep.subr.mxu0 0.0
      %2372 = vmatpush1.msra.mxu0 0.0
      %2373 = vmatprep.subr.mxu0 0.0
      %2374 = vmatpush1.msra.mxu0 0.0
      %2375 = vmatprep.subr.mxu0 0.0
      %2376 = vmatpush1.msra.mxu0 0.0
      %2377 = vmatprep.subr.mxu0 0.0
      %2378 = vmatpush1.msra.mxu0 0.0
      %2379 = vmatprep.subr.mxu0 0.0
      %2380 = vmatpush1.msra.mxu0 0.0
      %2381 = vmatprep.subr.mxu0 0.0
      %2382 = vmatpush1.msra.mxu0 0.0
      %2383 = vmatprep.subr.mxu0 0.0
      %2384 = vmatpush1.msra.mxu0 0.0
      %2385 = vmatprep.subr.mxu0 0.0
      %2386 = vmatpush1.msra.mxu0 0.0
      %2387 = vmatprep.subr.mxu0 0.0
      %2388 = vmatpush1.msra.mxu0 0.0
      %2389 = vmatprep.subr.mxu0 0.0
      %2390 = vmatpush1.msra.mxu0 0.0
      %2391 = vmatprep.subr.mxu0 0.0
      %2392 = vmatpush1.msra.mxu0 0.0
      %2393 = vmatprep.subr.mxu0 0.0
      %2394 = vmatpush1.msra.mxu0 0.0
      %2395 = vmatprep.mubr.f32.mxu0 0.0
      %2396 = vmatmul.mubr.f32.gmra.mrb[0].mxu0 %v2329
      %v2397 = vpop.f32.mrb[0].mxu0
      %v2398 = vadd.f32 0.0, %v2397
      %v2399 = vpop.f32.mrb[0].mxu0
      %2400 = vdwg.mxu0
      %s2401 = scalar_lea.vmem %s336, 56
      %v2402 = vld [vmem:[%s2401] sm:$0xff]
      %2403 = vmatprep.subr.mxu0 0.0
      %2404 = vmatpush1.msra.mxu0 %v355
      %2405 = vmatprep.subr.mxu0 0.0
      %2406 = vmatpush1.msra.mxu0 %v356
      %2407 = vmatprep.subr.mxu0 0.0
      %2408 = vmatpush1.msra.mxu0 %v357
      %2409 = vmatprep.subr.mxu0 0.0
      %2410 = vmatpush1.msra.mxu0 %v358
      %2411 = vmatprep.subr.mxu0 0.0
      %2412 = vmatpush1.msra.mxu0 0.0
      %2413 = vmatprep.subr.mxu0 0.0
      %2414 = vmatpush1.msra.mxu0 0.0
      %2415 = vmatprep.subr.mxu0 0.0
      %2416 = vmatpush1.msra.mxu0 0.0
      %2417 = vmatprep.subr.mxu0 0.0
      %2418 = vmatpush1.msra.mxu0 0.0
      %2419 = vmatprep.subr.mxu0 0.0
      %2420 = vmatpush1.msra.mxu0 0.0
      %2421 = vmatprep.subr.mxu0 0.0
      %2422 = vmatpush1.msra.mxu0 0.0
      %2423 = vmatprep.subr.mxu0 0.0
      %2424 = vmatpush1.msra.mxu0 0.0
      %2425 = vmatprep.subr.mxu0 0.0
      %2426 = vmatpush1.msra.mxu0 0.0
      %2427 = vmatprep.subr.mxu0 0.0
      %2428 = vmatpush1.msra.mxu0 0.0
      %2429 = vmatprep.subr.mxu0 0.0
      %2430 = vmatpush1.msra.mxu0 0.0
      %2431 = vmatprep.subr.mxu0 0.0
      %2432 = vmatpush1.msra.mxu0 0.0
      %2433 = vmatprep.subr.mxu0 0.0
      %2434 = vmatpush1.msra.mxu0 0.0
      %2435 = vmatprep.subr.mxu0 0.0
      %2436 = vmatpush1.msra.mxu0 0.0
      %2437 = vmatprep.subr.mxu0 0.0
      %2438 = vmatpush1.msra.mxu0 0.0
      %2439 = vmatprep.subr.mxu0 0.0
      %2440 = vmatpush1.msra.mxu0 0.0
      %2441 = vmatprep.subr.mxu0 0.0
      %2442 = vmatpush1.msra.mxu0 0.0
      %2443 = vmatprep.subr.mxu0 0.0
      %2444 = vmatpush1.msra.mxu0 0.0
      %2445 = vmatprep.subr.mxu0 0.0
      %2446 = vmatpush1.msra.mxu0 0.0
      %2447 = vmatprep.subr.mxu0 0.0
      %2448 = vmatpush1.msra.mxu0 0.0
      %2449 = vmatprep.subr.mxu0 0.0
      %2450 = vmatpush1.msra.mxu0 0.0
      %2451 = vmatprep.subr.mxu0 0.0
      %2452 = vmatpush1.msra.mxu0 0.0
      %2453 = vmatprep.subr.mxu0 0.0
      %2454 = vmatpush1.msra.mxu0 0.0
      %2455 = vmatprep.subr.mxu0 0.0
      %2456 = vmatpush1.msra.mxu0 0.0
      %2457 = vmatprep.subr.mxu0 0.0
      %2458 = vmatpush1.msra.mxu0 0.0
      %2459 = vmatprep.subr.mxu0 0.0
      %2460 = vmatpush1.msra.mxu0 0.0
      %2461 = vmatprep.subr.mxu0 0.0
      %2462 = vmatpush1.msra.mxu0 0.0
      %2463 = vmatprep.subr.mxu0 0.0
      %2464 = vmatpush1.msra.mxu0 0.0
      %2465 = vmatprep.subr.mxu0 0.0
      %2466 = vmatpush1.msra.mxu0 0.0
      %2467 = vmatprep.mubr.f32.mxu0 0.0
      %2468 = vmatmul.mubr.f32.gmra.mrb[0].mxu0 %v2225
      %v2469 = vpop.f32.mrb[0].mxu0
      %v2470 = vadd.f32 0.0, %v2469
      %v2471 = vpop.f32.mrb[0].mxu0
      %2472 = vdwg.mxu0
      %v2473 = vadd.f32 %v2402, %v2470
      %v2474 = vxor.u32 %v2473, 2147483648
      %v2475 = vmul.f32 %v2474, 1.442695
      %v2476 = vpow.pop %v2475
      %v2477 = vadd.f32 %v2476, 1.0
      %v2478 = vrcp.pop %v2477
      %v2479 = vmul.f32 1.0, %v2478
      %v2480 = vtanh.pop %v2473
      %v2481 = vmul.f32 %v2479, %v2215
      %2483 = vrot.lane.b32.xlu0 %v2480, 32
      %v2484 = vpop.permute.xlu0 %2483
      %v2486 = vmul.f32 %v2479, %v2484
      %2488 = vrot.lane.b32.xlu0 %v2486, 32
      %v2489 = vpop.permute.xlu0 %2488
      %v2491 = vadd.f32 %v2481, %v2489
      %v2492 = vtanh.pop %v2491
      %2494 = vrot.lane.b32.xlu0 %v2492, 32
      %v2495 = vpop.permute.xlu0 %2494
      %v2497 = vmul.f32 %v2479, %v2495
      %2499 = vrot.lane.b32.xlu0 %v2497, 64
      %v2500 = vpop.permute.xlu0 %2499
      %v2501 = vsel %vm383, %v2500, 0
      %2503 = vmatprep.subr.mxu0 0.0
      %2504 = vmatpush1.msra.mxu0 %v359
      %2505 = vmatprep.subr.mxu0 0.0
      %2506 = vmatpush1.msra.mxu0 %v360
      %2507 = vmatprep.subr.mxu0 0.0
      %2508 = vmatpush1.msra.mxu0 %v361
      %2509 = vmatprep.subr.mxu0 0.0
      %2510 = vmatpush1.msra.mxu0 %v362
      %2511 = vmatprep.subr.mxu0 0.0
      %2512 = vmatpush1.msra.mxu0 0.0
      %2513 = vmatprep.subr.mxu0 0.0
      %2514 = vmatpush1.msra.mxu0 0.0
      %2515 = vmatprep.subr.mxu0 0.0
      %2516 = vmatpush1.msra.mxu0 0.0
      %2517 = vmatprep.subr.mxu0 0.0
      %2518 = vmatpush1.msra.mxu0 0.0
      %2519 = vmatprep.subr.mxu0 0.0
      %2520 = vmatpush1.msra.mxu0 0.0
      %2521 = vmatprep.subr.mxu0 0.0
      %2522 = vmatpush1.msra.mxu0 0.0
      %2523 = vmatprep.subr.mxu0 0.0
      %2524 = vmatpush1.msra.mxu0 0.0
      %2525 = vmatprep.subr.mxu0 0.0
      %2526 = vmatpush1.msra.mxu0 0.0
      %2527 = vmatprep.subr.mxu0 0.0
      %2528 = vmatpush1.msra.mxu0 0.0
      %2529 = vmatprep.subr.mxu0 0.0
      %2530 = vmatpush1.msra.mxu0 0.0
      %2531 = vmatprep.subr.mxu0 0.0
      %2532 = vmatpush1.msra.mxu0 0.0
      %2533 = vmatprep.subr.mxu0 0.0
      %2534 = vmatpush1.msra.mxu0 0.0
      %2535 = vmatprep.subr.mxu0 0.0
      %2536 = vmatpush1.msra.mxu0 0.0
      %2537 = vmatprep.subr.mxu0 0.0
      %2538 = vmatpush1.msra.mxu0 0.0
      %2539 = vmatprep.subr.mxu0 0.0
      %2540 = vmatpush1.msra.mxu0 0.0
      %2541 = vmatprep.subr.mxu0 0.0
      %2542 = vmatpush1.msra.mxu0 0.0
      %2543 = vmatprep.subr.mxu0 0.0
      %2544 = vmatpush1.msra.mxu0 0.0
      %2545 = vmatprep.subr.mxu0 0.0
      %2546 = vmatpush1.msra.mxu0 0.0
      %2547 = vmatprep.subr.mxu0 0.0
      %2548 = vmatpush1.msra.mxu0 0.0
      %2549 = vmatprep.subr.mxu0 0.0
      %2550 = vmatpush1.msra.mxu0 0.0
      %2551 = vmatprep.subr.mxu0 0.0
      %2552 = vmatpush1.msra.mxu0 0.0
      %2553 = vmatprep.subr.mxu0 0.0
      %2554 = vmatpush1.msra.mxu0 0.0
      %2555 = vmatprep.subr.mxu0 0.0
      %2556 = vmatpush1.msra.mxu0 0.0
      %2557 = vmatprep.subr.mxu0 0.0
      %2558 = vmatpush1.msra.mxu0 0.0
      %2559 = vmatprep.subr.mxu0 0.0
      %2560 = vmatpush1.msra.mxu0 0.0
      %2561 = vmatprep.subr.mxu0 0.0
      %2562 = vmatpush1.msra.mxu0 0.0
      %2563 = vmatprep.subr.mxu0 0.0
      %2564 = vmatpush1.msra.mxu0 0.0
      %2565 = vmatprep.subr.mxu0 0.0
      %2566 = vmatpush1.msra.mxu0 0.0
      %2567 = vmatprep.mubr.f32.mxu0 0.0
      %2568 = vmatmul.mubr.f32.gmra.mrb[0].mxu0 %v2501
      %v2569 = vpop.f32.mrb[0].mxu0
      %v2570 = vadd.f32 %v2398, %v2569
      %v2571 = vpop.f32.mrb[0].mxu0
      %2572 = vdwg.mxu0
      %v2573 = vadd.f32 %v2570, %v372
      %v2574 = vxor.u32 %v2573, 2147483648
      %v2575 = vmul.f32 %v2574, 1.442695
      %v2576 = vpow.pop %v2575
      %v2577 = vadd.f32 %v2576, 1.0
      %v2578 = vrcp.pop %v2577
      %v2579 = vmul.f32 1.0, %v2578
      %v2580 = vtanh.pop %v2573
      %v2581 = vmul.f32 %v2579, %v2315
      %2583 = vrot.lane.b32.xlu0 %v2580, 32
      %v2584 = vpop.permute.xlu0 %2583
      %v2586 = vmul.f32 %v2579, %v2584
      %2588 = vrot.lane.b32.xlu0 %v2586, 32
      %v2589 = vpop.permute.xlu0 %2588
      %v2591 = vadd.f32 %v2581, %v2589
      %v2592 = vtanh.pop %v2591
      %2594 = vrot.lane.b32.xlu0 %v2592, 32
      %v2595 = vpop.permute.xlu0 %2594
      %v2597 = vmul.f32 %v2579, %v2595
      %s2598 = sadd.s32 %s378, 7
      %v2599 = vstv %s2598
      %vm2600 = vcmp.lt.s32.totalorder %v2599, %v377
      %v2601 = vsel %vm2600, %v2597, %v2325
      %2603 = vst.msk [vmem:[#allocation2] sm:$0xff] %vm383, %v2500
      %2605 = vrot.lane.b32.xlu0 %v2491, 96
      %v2606 = vpop.permute.xlu0 %2605
      %2608 = vst.msk [vmem:[#allocation3] sm:$0xff] %vm383, %v2606
      %2610 = vrot.lane.b32.xlu0 %v2601, 64
      %v2611 = vpop.permute.xlu0 %2610
      %2613 = vst.msk [vmem:[#allocation4] sm:$0xff] %vm383, %v2611
      %2615 = vrot.lane.b32.xlu0 %v2591, 96
      %v2616 = vpop.permute.xlu0 %2615
      %2618 = vst.msk [vmem:[#allocation5] sm:$0xff] %vm383, %v2616
      %p2619 = scmp.eq.s32.totalorder %s24, 1
      // Predicated region
      $region57: #{sketch_rnn_forward.1} parent=51 // pred_check
        %p2620 = pneg %p2619
      $region58: #{sketch_rnn_forward.1} parent=51 // pred_check_branch
        %2622 = sbr.rel (%p2620) target = $region60
      $region59: #{sketch_rnn_forward.1} parent=51 // pred_region
        %v2623 = vld [vmem:[%s6] sm:$0xff]
        %v2624 = vld [vmem:[%s6 + $0x8] sm:$0xff]
        %v2625 = vld [vmem:[%s6 + $0x10] sm:$0xff]
        %v2626 = vld [vmem:[%s6 + $0x18] sm:$0xff]
        %v2627 = vld [vmem:[%s7] sm:$0x1]
        %v2629 = vlaneseq
        %v2630 = vshrl.u32 %v2629, 7
        %v2631 = vsub.s32 0, %v2630
        %v2632 = vrot.slane %v2627, %v2631
        %v2634 = vsel %vm383, %v2611, 0
        %2636 = vmatprep.subr.mxu0 0.0
        %2637 = vmatpush1.msra.mxu0 %v2623
        %2638 = vmatprep.subr.mxu0 0.0
        %2639 = vmatpush1.msra.mxu0 %v2624
        %2640 = vmatprep.subr.mxu0 0.0
        %2641 = vmatpush1.msra.mxu0 %v2625
        %2642 = vmatprep.subr.mxu0 0.0
        %2643 = vmatpush1.msra.mxu0 %v2626
        %2644 = vmatprep.subr.mxu0 0.0
        %2645 = vmatpush1.msra.mxu0 0.0
        %2646 = vmatprep.subr.mxu0 0.0
        %2647 = vmatpush1.msra.mxu0 0.0
        %2648 = vmatprep.subr.mxu0 0.0
        %2649 = vmatpush1.msra.mxu0 0.0
        %2650 = vmatprep.subr.mxu0 0.0
        %2651 = vmatpush1.msra.mxu0 0.0
        %2652 = vmatprep.subr.mxu0 0.0
        %2653 = vmatpush1.msra.mxu0 0.0
        %2654 = vmatprep.subr.mxu0 0.0
        %2655 = vmatpush1.msra.mxu0 0.0
        %2656 = vmatprep.subr.mxu0 0.0
        %2657 = vmatpush1.msra.mxu0 0.0
        %2658 = vmatprep.subr.mxu0 0.0
        %2659 = vmatpush1.msra.mxu0 0.0
        %2660 = vmatprep.subr.mxu0 0.0
        %2661 = vmatpush1.msra.mxu0 0.0
        %2662 = vmatprep.subr.mxu0 0.0
        %2663 = vmatpush1.msra.mxu0 0.0
        %2664 = vmatprep.subr.mxu0 0.0
        %2665 = vmatpush1.msra.mxu0 0.0
        %2666 = vmatprep.subr.mxu0 0.0
        %2667 = vmatpush1.msra.mxu0 0.0
        %2668 = vmatprep.subr.mxu0 0.0
        %2669 = vmatpush1.msra.mxu0 0.0
        %2670 = vmatprep.subr.mxu0 0.0
        %2671 = vmatpush1.msra.mxu0 0.0
        %2672 = vmatprep.subr.mxu0 0.0
        %2673 = vmatpush1.msra.mxu0 0.0
        %2674 = vmatprep.subr.mxu0 0.0
        %2675 = vmatpush1.msra.mxu0 0.0
        %2676 = vmatprep.subr.mxu0 0.0
        %2677 = vmatpush1.msra.mxu0 0.0
        %2678 = vmatprep.subr.mxu0 0.0
        %2679 = vmatpush1.msra.mxu0 0.0
        %2680 = vmatprep.subr.mxu0 0.0
        %2681 = vmatpush1.msra.mxu0 0.0
        %2682 = vmatprep.subr.mxu0 0.0
        %2683 = vmatpush1.msra.mxu0 0.0
        %2684 = vmatprep.subr.mxu0 0.0
        %2685 = vmatpush1.msra.mxu0 0.0
        %2686 = vmatprep.subr.mxu0 0.0
        %2687 = vmatpush1.msra.mxu0 0.0
        %2688 = vmatprep.subr.mxu0 0.0
        %2689 = vmatpush1.msra.mxu0 0.0
        %2690 = vmatprep.subr.mxu0 0.0
        %2691 = vmatpush1.msra.mxu0 0.0
        %2692 = vmatprep.subr.mxu0 0.0
        %2693 = vmatpush1.msra.mxu0 0.0
        %2694 = vmatprep.subr.mxu0 0.0
        %2695 = vmatpush1.msra.mxu0 0.0
        %2696 = vmatprep.subr.mxu0 0.0
        %2697 = vmatpush1.msra.mxu0 0.0
        %2698 = vmatprep.subr.mxu0 0.0
        %2699 = vmatpush1.msra.mxu0 0.0
        %2700 = vmatprep.mubr.f32.mxu0 0.0
        %2701 = vmatmul.mubr.f32.gmra.mrb[0].mxu0 %v2634
        %v2702 = vpop.f32.mrb[0].mxu0
        %v2703 = vadd.f32 %v2632, %v2702
        %v2704 = vpop.f32.mrb[0].mxu0
        %2705 = vdwg.mxu0
        %2706 = vst [vmem:[%s345] sm:$0xff] %v2703
      $region60: #{sketch_rnn_forward.1} parent=51 // pred_fallthru
        _
      %p2707 = scmp.lt.s32.totalorder %s23, 0
      %s2708 = scalar_select %p2707, %s23, 0
      %s2709 = smul.addr %s2708, 8
      %s2710 = scalar_lea.vmem %s8, %s2709
      // Predicated region
      $region61: #{sketch_rnn_forward.1} parent=51 // pred_check
        %p2711 = pneg %p229
      $region62: #{sketch_rnn_forward.1} parent=51 // pred_check_branch
        %2713 = sbr.rel (%p2711) target = $region64
      $region63: #{sketch_rnn_forward.1} parent=51 // pred_region
        _
      $region64: #{sketch_rnn_forward.1} parent=51 // pred_fallthru
        _
      // Predicated region
      $region65: #{sketch_rnn_forward.1} parent=51 // pred_check
        %p2714 = pneg %p229
      $region66: #{sketch_rnn_forward.1} parent=51 // pred_check_branch
        %2716 = sbr.rel (%p2714) target = $region68
      $region67: #{sketch_rnn_forward.1} parent=51 // pred_region
        %p2717 = scmp.lt.s32.totalorder %s23, 0
        %s2718 = scalar_select %p2717, %s23, 0
        %s2719 = smul.addr %s2718, 8
        %s2720 = scalar_lea.vmem %s8, %s2719
      $region68: #{sketch_rnn_forward.1} parent=51 // pred_fallthru
        _
    $region52: #{sketch_rnn_forward.1} parent=5 // pred_fallthru
      _
    %p2721 = scmp.le.s32.totalorder 2, %s14
    // Predicated region
    $region69: #{sketch_rnn_forward.1} parent=5 // pred_check
      %p2722 = pneg %p2721
    $region70: #{sketch_rnn_forward.1} parent=5 // pred_check_branch
      %2724 = sbr.rel (%p2722) target = $region72
    $region71: #{sketch_rnn_forward.1} parent=5 // pred_region
      %s2725 = ssub.s32 %s14, 2
    $region72: #{sketch_rnn_forward.1} parent=5 // pred_fallthru
      _
  $region6: #{sketch_rnn_forward.1} parent=0 // loop_footer
    %s18 = sadd.s32 1, %s14
  $region7: #{sketch_rnn_forward.1} parent=0 // loop_footer_branch
    %13 = sbr.rel target = $region3
  $region8: #{sketch_rnn_forward.1} parent=0 // loop_exit
    _

</llo_original>
